<compile_context>
chip_gen: v7x
topology: tpu7x:2x2x1
jax: 0.10.0
libtpu: 0.0.40
codegen_flags: <defaults>
</compile_context>

<pallas_src>
import math
import functools
import jax
import jax.numpy as jnp
from jax import lax
from jax.experimental import pallas as pl
from jax.experimental.pallas import tpu as pltpu

BP = 8      # batch tile: one sublane group
KP = 128    # channel / contraction dim padded to full lane width


def _sigmoid(x):
    # sigmoid(x) == 0.5 * tanh(0.5 * x) + 0.5 : one EUP op + cheap VPU ops.
    return 0.5 * jnp.tanh(0.5 * x) + 0.5


# ---------------------------------------------------------------------------
# Fused kernel (one batch tile of 8 rows per grid step):
#   conv (3 shifted-slice matmuls) + folded BN + ReLU -> maxpool(3,3)
#   -> hoisted LSTM input projection -> unrolled 8-step recurrence
#   -> Linear(128->1) -> sigmoid.
# xin rows are laid out position-major / batch-minor: row = p*BP + b.
# ---------------------------------------------------------------------------
def _fused_kernel(xin_ref, wtaps_ref, shift_ref, wih_ref, whh_ref, bg_ref,
                  wfc_ref, bfc_ref, out_ref, gx_ref, *, width, T, H, Cout):
    TB = T * BP

    # (width+2, BP, KP) -> (width+2)*BP rows; tile-preserving reshape (free).
    xin = xin_ref[...].reshape((width + 2) * BP, KP)                  # bf16

    # Conv1d(k=3, s=1, pad=1): three shifted-slice MXU matmuls, f32 accumulate.
    acc = jnp.dot(xin[0:width * BP], wtaps_ref[0],
                  preferred_element_type=jnp.float32)
    acc += jnp.dot(xin[BP:(width + 1) * BP], wtaps_ref[1],
                   preferred_element_type=jnp.float32)
    acc += jnp.dot(xin[2 * BP:(width + 2) * BP], wtaps_ref[2],
                   preferred_element_type=jnp.float32)                 # (width*BP, Cout)

    # BN scale already folded into wtaps; only shift (+conv bias) and ReLU remain.
    z = jnp.maximum(acc + shift_ref[...], 0.0)

    # MaxPool1d(kernel=3, stride=3): vreg-wise max over the 3 positions per window.
    pooled = jnp.max(z[:3 * TB].reshape(T, 3, BP, Cout), axis=1).reshape(TB, Cout)

    # LSTM input projection hoisted out of the recurrence; stash in VMEM scratch.
    gx_ref[...] = jnp.dot(pooled.astype(jnp.bfloat16), wih_ref[...],
                          preferred_element_type=jnp.float32) + bg_ref[...]  # (TB, 4H)

    whh = whh_ref[...]                                                 # (H, 4H) bf16

    def step(t, carry):
        h, c = carry
        row = pl.multiple_of(t * BP, BP)
        g = gx_ref[pl.ds(row, BP), :] + jnp.dot(
            h.astype(jnp.bfloat16), whh, preferred_element_type=jnp.float32)  # (BP, 4H)
        i_g = _sigmoid(g[:, 0:H])
        f_g = _sigmoid(g[:, H:2 * H])
        g_g = jnp.tanh(g[:, 2 * H:3 * H])
        o_g = _sigmoid(g[:, 3 * H:4 * H])
        c = f_g * c + i_g * g_g
        h = o_g * jnp.tanh(c)
        return (h, c)

    h0 = jnp.zeros((BP, H), jnp.float32)
    c0 = jnp.zeros((BP, H), jnp.float32)
    h, _ = lax.fori_loop(0, T, step, (h0, c0), unroll=True)

    # Linear(128 -> 1) + sigmoid on the last hidden state.
    logits = jnp.dot(h, wfc_ref[...], preferred_element_type=jnp.float32) + bfc_ref[...]
    out_ref[...] = _sigmoid(logits).astype(out_ref.dtype)


# ---------------------------------------------------------------------------
# Parameter construction (deterministic, mirrors the PyTorch init_* helpers).
# ---------------------------------------------------------------------------
def make_params(key, cin=40, cout=128, k=3, hidden=128):
    keys = jax.random.split(key, 4)

    # ConvBlock1d: He-uniform (init_layer), bias = 0.
    n = cin * k
    s = math.sqrt(2.0 / n) * math.sqrt(3.0)
    conv_w = jax.random.uniform(keys[0], (cout, cin, k), jnp.float32, -s, s)
    conv_b = jnp.zeros((cout,), jnp.float32)

    # BatchNorm1d (init_bn + eval-mode running stats).
    bn_gamma = jnp.ones((cout,), jnp.float32)
    bn_beta = jnp.zeros((cout,), jnp.float32)
    bn_mean = jnp.zeros((cout,), jnp.float32)
    bn_var = jnp.ones((cout,), jnp.float32)

    # LSTM: PyTorch default uniform(-1/sqrt(H), 1/sqrt(H)).
    stdv = 1.0 / math.sqrt(hidden)
    lstm_wih = jax.random.uniform(keys[1], (4 * hidden, hidden), jnp.float32, -stdv, stdv)
    lstm_whh = jax.random.uniform(keys[2], (4 * hidden, hidden), jnp.float32, -stdv, stdv)
    lstm_bih = jnp.zeros((4 * hidden,), jnp.float32)
    lstm_bhh = jnp.zeros((4 * hidden,), jnp.float32)

    # FullyConnected 128 -> 1 (init_layer), bias = 0.
    s_fc = math.sqrt(2.0 / hidden) * math.sqrt(3.0)
    fc_w = jax.random.uniform(keys[3], (1, hidden), jnp.float32, -s_fc, s_fc)
    fc_b = jnp.zeros((1,), jnp.float32)

    return dict(conv_w=conv_w, conv_b=conv_b,
                bn_gamma=bn_gamma, bn_beta=bn_beta, bn_mean=bn_mean, bn_var=bn_var,
                lstm_wih=lstm_wih, lstm_whh=lstm_whh,
                lstm_bih=lstm_bih, lstm_bhh=lstm_bhh,
                fc_w=fc_w, fc_b=fc_b)


# ---------------------------------------------------------------------------
# One-time weight layout preparation (done at model load, NOT per forward).
# ---------------------------------------------------------------------------
def prepare_params(params, eps=1e-5):
    cout, cin, _ = params["conv_w"].shape
    hidden = params["lstm_whh"].shape[1]

    # Fold eval-mode BatchNorm into the conv weights / shift.
    scale = params["bn_gamma"] / jnp.sqrt(params["bn_var"] + eps)          # (Cout,)
    shift = ((params["conv_b"] - params["bn_mean"]) * scale
             + params["bn_beta"]).reshape(1, cout)                         # f32

    # wtaps[k][i, o] = conv_w[o, i, k] * scale[o]; pad Cin to 128 lanes; bf16.
    wt = jnp.transpose(params["conv_w"], (2, 1, 0)) * scale                # (3, Cin, Cout)
    wtaps = jnp.pad(wt, ((0, 0), (0, KP - cin), (0, 0))).astype(jnp.bfloat16)

    # LSTM / FC weights, pre-transposed for (row @ weight) matmuls.
    wih_t = jnp.transpose(params["lstm_wih"]).astype(jnp.bfloat16)         # (H, 4H)
    whh_t = jnp.transpose(params["lstm_whh"]).astype(jnp.bfloat16)         # (H, 4H)
    bg = (params["lstm_bih"] + params["lstm_bhh"]).reshape(1, 4 * hidden)  # f32
    wfc = jnp.transpose(params["fc_w"])                                    # (H, 1) f32
    bfc = params["fc_b"].reshape(1, 1)

    return dict(wtaps=wtaps, shift=shift, wih_t=wih_t, whh_t=whh_t,
                bg=bg, wfc=wfc, bfc=bfc)


# ---------------------------------------------------------------------------
# Per-call forward: minimal x layout prep + one fused pallas_call.
# ---------------------------------------------------------------------------
def custom_mel11_forward(x, prep):
    B, cin, width = x.shape
    cout = prep["shift"].shape[1]
    hidden = prep["wfc"].shape[0]
    T = width // 3                      # MaxPool1d(3, 3) output length
    nb = pl.cdiv(B, BP)                 # batch tiles (grid axis)
    b_pad = nb * BP

    # (B, Cin, width) -> (width, B, Cin); pad time by 1 each side (conv pad=1),
    # batch to a multiple of 8, channels to 128 lanes; cast to bf16 for the MXU.
    xt = jnp.transpose(x.astype(jnp.float32), (2, 0, 1))
    xin = jnp.pad(xt, ((1, 1), (0, b_pad - B), (0, KP - cin))).astype(jnp.bfloat16)

    kernel = functools.partial(_fused_kernel, width=width, T=T, H=hidden, Cout=cout)
    out = pl.pallas_call(
        kernel,
        grid=(nb,),
        in_specs=[
            pl.BlockSpec((width + 2, BP, KP), lambda b: (0, b, 0)),      # xin
            pl.BlockSpec((3, KP, cout), lambda b: (0, 0, 0)),            # wtaps
            pl.BlockSpec((1, cout), lambda b: (0, 0)),                   # shift
            pl.BlockSpec((hidden, 4 * hidden), lambda b: (0, 0)),        # wih_t
            pl.BlockSpec((hidden, 4 * hidden), lambda b: (0, 0)),        # whh_t
            pl.BlockSpec((1, 4 * hidden), lambda b: (0, 0)),             # bg
            pl.BlockSpec((hidden, 1), lambda b: (0, 0)),                 # wfc
            pl.BlockSpec((1, 1), lambda b: (0, 0)),                      # bfc
        ],
        out_specs=pl.BlockSpec((BP, 1), lambda b: (b, 0)),
        out_shape=jax.ShapeDtypeStruct((b_pad, 1), jnp.float32),
        scratch_shapes=[pltpu.VMEM((T * BP, 4 * hidden), jnp.float32)],  # gates_x
        compiler_params=pltpu.CompilerParams(
            dimension_semantics=("parallel",),
            vmem_limit_bytes=32 * 1024 * 1024),
        cost_estimate=pl.CostEstimate(flops=23_000_000, transcendentals=50_000,
                                      bytes_accessed=700_000),
    )(xin, prep["wtaps"], prep["shift"], prep["wih_t"], prep["whh_t"],
      prep["bg"], prep["wfc"], prep["bfc"])
    return out[:B]


# ---------------------------------------------------------------------------
# Pure-JAX f32 reference (numerical sanity check of the fused kernel).
# ---------------------------------------------------------------------------
def reference_forward(x, params):
    B, cin, width = x.shape
    cout = params["conv_w"].shape[0]
    H = params["lstm_whh"].shape[1]
    T = width // 3
    eps = 1e-5

    x_cl = jnp.transpose(x, (0, 2, 1)).astype(jnp.float32)
    x_pad = jnp.pad(x_cl, ((0, 0), (1, 1), (0, 0)))
    conv = sum(jnp.einsum("bwi,oi->bwo", x_pad[:, k:k + width, :], params["conv_w"][:, :, k])
               for k in range(3)) + params["conv_b"]
    y = (conv - params["bn_mean"]) / jnp.sqrt(params["bn_var"] + eps) \
        * params["bn_gamma"] + params["bn_beta"]
    y = jnp.maximum(y, 0.0)
    pooled = jnp.max(y[:, :3 * T, :].reshape(B, T, 3, cout), axis=2)

    wih, whh = params["lstm_wih"], params["lstm_whh"]
    b = params["lstm_bih"] + params["lstm_bhh"]

    def step(carry, x_t):
        h, c = carry
        gates = x_t @ wih.T + h @ whh.T + b
        i = jax.nn.sigmoid(gates[:, :H])
        f = jax.nn.sigmoid(gates[:, H:2 * H])
        g = jnp.tanh(gates[:, 2 * H:3 * H])
        o = jax.nn.sigmoid(gates[:, 3 * H:])
        c = f * c + i * g
        h = o * jnp.tanh(c)
        return (h, c), None

    init = (jnp.zeros((B, H), jnp.float32), jnp.zeros((B, H), jnp.float32))
    (h_last, _), _ = lax.scan(step, init, jnp.transpose(pooled, (1, 0, 2)))
    logits = h_last @ params["fc_w"].T + params["fc_b"]
    return jax.nn.sigmoid(logits)


if __name__ == "__main__":
    key = jax.random.PRNGKey(0)
    k_params, k_x = jax.random.split(key)

    B, FREQ, WIDTH = 2, 40, 24          # net_input: (batch, 40 mel bins, time frames)
    x = jax.random.normal(k_x, (B, FREQ, WIDTH), jnp.float32)
    params = make_params(k_params)

    prep = prepare_params(params)       # one-time weight layout prep (model load)
    fwd = jax.jit(custom_mel11_forward)

    out = jax.block_until_ready(fwd(x, prep))
    ref = jax.block_until_ready(reference_forward(x, params))

    assert out.shape == (B, 1), out.shape
    # bf16 MXU operands (f32 accumulate) vs. the pure-f32 reference -> relaxed tol.
    assert jnp.allclose(out, ref, atol=2e-2, rtol=2e-2), (out, ref)

    print("KERNEL_OK")
</pallas_src>

<mosaic_0001>
module attributes {stable_mosaic.version = 11 : i64} {
  func.func @_fused_kernel(%arg0: i32, %arg1: memref<26x8x128xbf16, #tpu.memory_space<vmem>>, %arg2: memref<3x128x128xbf16, #tpu.memory_space<vmem>>, %arg3: memref<1x128xf32, #tpu.memory_space<vmem>>, %arg4: memref<128x512xbf16, #tpu.memory_space<vmem>>, %arg5: memref<128x512xbf16, #tpu.memory_space<vmem>>, %arg6: memref<1x512xf32, #tpu.memory_space<vmem>>, %arg7: memref<128x1xf32, #tpu.memory_space<vmem>>, %arg8: memref<1x1xf32, #tpu.memory_space<vmem>>, %arg9: memref<8x1xf32, #tpu.memory_space<vmem>>, %arg10: memref<64x512xf32, #tpu.memory_space<vmem>>) attributes {dimension_semantics = [#tpu.dimension_semantics<parallel>], iteration_bounds = array<i64: 1>, scalar_prefetch = 0 : i64, scratch_operands = 1 : i64, tpu.core_type = #tpu.core_type<tc>, window_params = [{transform_indices = @transform_0, window_bounds = array<i64: 26, 8, 128>}, {pipeline_mode = #tpu.pipeline_mode<synchronous>, transform_indices = @transform_1, window_bounds = array<i64: 3, 128, 128>}, {pipeline_mode = #tpu.pipeline_mode<synchronous>, transform_indices = @transform_2, window_bounds = array<i64: 1, 128>}, {pipeline_mode = #tpu.pipeline_mode<synchronous>, transform_indices = @transform_3, window_bounds = array<i64: 128, 512>}, {pipeline_mode = #tpu.pipeline_mode<synchronous>, transform_indices = @transform_4, window_bounds = array<i64: 128, 512>}, {pipeline_mode = #tpu.pipeline_mode<synchronous>, transform_indices = @transform_5, window_bounds = array<i64: 1, 512>}, {pipeline_mode = #tpu.pipeline_mode<synchronous>, transform_indices = @transform_6, window_bounds = array<i64: 128, 1>}, {pipeline_mode = #tpu.pipeline_mode<synchronous>, transform_indices = @transform_7, window_bounds = array<i64: 1, 1>}, {transform_indices = @transform_8, window_bounds = array<i64: 8, 1>}]} {
    %c0 = arith.constant 0 : index
    %c0_0 = arith.constant 0 : index
    %c0_1 = arith.constant 0 : index
    %0 = vector.load %arg1[%c0, %c0_0, %c0_1] : memref<26x8x128xbf16, #tpu.memory_space<vmem>>, vector<26x8x128xbf16>
    %1 = vector.shape_cast %0 : vector<26x8x128xbf16> to vector<208x128xbf16>
    %2 = vector.extract_strided_slice %1 {offsets = [0, 0], sizes = [192, 128], strides = [1, 1]} : vector<208x128xbf16> to vector<192x128xbf16>
    %c0_2 = arith.constant 0 : index
    %c0_3 = arith.constant 0 : index
    %c0_4 = arith.constant 0 : index
    %3 = vector.load %arg2[%c0_2, %c0_3, %c0_4] : memref<3x128x128xbf16, #tpu.memory_space<vmem>>, vector<1x128x128xbf16>
    %4 = vector.shape_cast %3 : vector<1x128x128xbf16> to vector<128x128xbf16>
    %cst = arith.constant dense<0.000000e+00> : vector<192x128xf32>
    %5 = tpu.matmul %2, %4, %cst {dimension_numbers = #tpu.dot_dimension_numbers<[1], [0], [0], [1], [0, 0, 1, 1], [], []>} : vector<192x128xbf16>, vector<128x128xbf16>, vector<192x128xf32> -> vector<192x128xf32>
    %6 = vector.extract_strided_slice %1 {offsets = [8, 0], sizes = [192, 128], strides = [1, 1]} : vector<208x128xbf16> to vector<192x128xbf16>
    %c1 = arith.constant 1 : index
    %c0_5 = arith.constant 0 : index
    %c0_6 = arith.constant 0 : index
    %7 = vector.load %arg2[%c1, %c0_5, %c0_6] : memref<3x128x128xbf16, #tpu.memory_space<vmem>>, vector<1x128x128xbf16>
    %8 = vector.shape_cast %7 : vector<1x128x128xbf16> to vector<128x128xbf16>
    %cst_7 = arith.constant dense<0.000000e+00> : vector<192x128xf32>
    %9 = tpu.matmul %6, %8, %cst_7 {dimension_numbers = #tpu.dot_dimension_numbers<[1], [0], [0], [1], [0, 0, 1, 1], [], []>} : vector<192x128xbf16>, vector<128x128xbf16>, vector<192x128xf32> -> vector<192x128xf32>
    %10 = arith.addf %5, %9 : vector<192x128xf32>
    %11 = vector.extract_strided_slice %1 {offsets = [16, 0], sizes = [192, 128], strides = [1, 1]} : vector<208x128xbf16> to vector<192x128xbf16>
    %c2 = arith.constant 2 : index
    %c0_8 = arith.constant 0 : index
    %c0_9 = arith.constant 0 : index
    %12 = vector.load %arg2[%c2, %c0_8, %c0_9] : memref<3x128x128xbf16, #tpu.memory_space<vmem>>, vector<1x128x128xbf16>
    %13 = vector.shape_cast %12 : vector<1x128x128xbf16> to vector<128x128xbf16>
    %cst_10 = arith.constant dense<0.000000e+00> : vector<192x128xf32>
    %14 = tpu.matmul %11, %13, %cst_10 {dimension_numbers = #tpu.dot_dimension_numbers<[1], [0], [0], [1], [0, 0, 1, 1], [], []>} : vector<192x128xbf16>, vector<128x128xbf16>, vector<192x128xf32> -> vector<192x128xf32>
    %15 = arith.addf %10, %14 : vector<192x128xf32>
    %c0_11 = arith.constant 0 : index
    %c0_12 = arith.constant 0 : index
    %16 = vector.load %arg3[%c0_11, %c0_12] : memref<1x128xf32, #tpu.memory_space<vmem>>, vector<1x128xf32>
    %17 = vector.broadcast %16 : vector<1x128xf32> to vector<192x128xf32>
    %18 = arith.addf %15, %17 : vector<192x128xf32>
    %cst_13 = arith.constant 0.000000e+00 : f32
    %19 = vector.broadcast %cst_13 : f32 to vector<192x128xf32>
    %20 = arith.maximumf %18, %19 : vector<192x128xf32>
    %21 = vector.shape_cast %20 : vector<192x128xf32> to vector<8x3x8x128xf32>
    %cst_14 = arith.constant dense<0xFF800000> : vector<8x8x128xf32>
    %22 = vector.multi_reduction <maximumf>, %21, %cst_14 [1] : vector<8x3x8x128xf32> to vector<8x8x128xf32>
    %23 = vector.shape_cast %22 : vector<8x8x128xf32> to vector<64x128xf32>
    %24 = arith.truncf %23 : vector<64x128xf32> to vector<64x128xbf16>
    %c0_15 = arith.constant 0 : index
    %c0_16 = arith.constant 0 : index
    %25 = vector.load %arg4[%c0_15, %c0_16] : memref<128x512xbf16, #tpu.memory_space<vmem>>, vector<128x512xbf16>
    %cst_17 = arith.constant dense<0.000000e+00> : vector<64x512xf32>
    %26 = tpu.matmul %24, %25, %cst_17 {dimension_numbers = #tpu.dot_dimension_numbers<[1], [0], [0], [1], [0, 0, 1, 1], [], []>} : vector<64x128xbf16>, vector<128x512xbf16>, vector<64x512xf32> -> vector<64x512xf32>
    %c0_18 = arith.constant 0 : index
    %c0_19 = arith.constant 0 : index
    %27 = vector.load %arg6[%c0_18, %c0_19] : memref<1x512xf32, #tpu.memory_space<vmem>>, vector<1x512xf32>
    %28 = vector.broadcast %27 : vector<1x512xf32> to vector<64x512xf32>
    %29 = arith.addf %26, %28 : vector<64x512xf32>
    %c0_20 = arith.constant 0 : index
    %c0_21 = arith.constant 0 : index
    %30 = vector.load %arg10[%c0_20, %c0_21] : memref<64x512xf32, #tpu.memory_space<vmem>>, vector<64x512xf32>
    tpu.vector_store %arg10[%c0_20, %c0_21], %29 {strides = array<i32>} : memref<64x512xf32, #tpu.memory_space<vmem>>, vector<64x512xf32>,
    %c0_22 = arith.constant 0 : index
    %c0_23 = arith.constant 0 : index
    %31 = vector.load %arg5[%c0_22, %c0_23] : memref<128x512xbf16, #tpu.memory_space<vmem>>, vector<128x512xbf16>
    %cst_24 = arith.constant 0.000000e+00 : f32
    %32 = vector.broadcast %cst_24 : f32 to vector<8x128xf32>
    %cst_25 = arith.constant 0.000000e+00 : f32
    %33 = vector.broadcast %cst_25 : f32 to vector<8x128xf32>
    %c0_i32 = arith.constant 0 : i32
    %c8_i32 = arith.constant 8 : i32
    %34 = arith.muli %c0_i32, %c8_i32 : i32
    %35 = tpu.assume_multiple %34, 8 : i32
    %36 = arith.index_cast %35 : i32 to index
    %c0_26 = arith.constant 0 : index
    %37 = vector.load %arg10[%36, %c0_26] : memref<64x512xf32, #tpu.memory_space<vmem>>, vector<8x512xf32>
    %38 = arith.truncf %32 : vector<8x128xf32> to vector<8x128xbf16>
    %cst_27 = arith.constant dense<0.000000e+00> : vector<8x512xf32>
    %39 = tpu.matmul %38, %31, %cst_27 {dimension_numbers = #tpu.dot_dimension_numbers<[1], [0], [0], [1], [0, 0, 1, 1], [], []>} : vector<8x128xbf16>, vector<128x512xbf16>, vector<8x512xf32> -> vector<8x512xf32>
    %40 = arith.addf %37, %39 : vector<8x512xf32>
    %41 = vector.extract_strided_slice %40 {offsets = [0, 0], sizes = [8, 128], strides = [1, 1]} : vector<8x512xf32> to vector<8x128xf32>
    %cst_28 = arith.constant 5.000000e-01 : f32
    %42 = vector.broadcast %cst_28 : f32 to vector<8x128xf32>
    %43 = arith.mulf %42, %41 : vector<8x128xf32>
    %44 = math.tanh %43 : vector<8x128xf32>
    %cst_29 = arith.constant 5.000000e-01 : f32
    %45 = vector.broadcast %cst_29 : f32 to vector<8x128xf32>
    %46 = arith.mulf %45, %44 : vector<8x128xf32>
    %cst_30 = arith.constant 5.000000e-01 : f32
    %47 = vector.broadcast %cst_30 : f32 to vector<8x128xf32>
    %48 = arith.addf %46, %47 : vector<8x128xf32>
    %49 = vector.extract_strided_slice %40 {offsets = [0, 128], sizes = [8, 128], strides = [1, 1]} : vector<8x512xf32> to vector<8x128xf32>
    %cst_31 = arith.constant 5.000000e-01 : f32
    %50 = vector.broadcast %cst_31 : f32 to vector<8x128xf32>
    %51 = arith.mulf %50, %49 : vector<8x128xf32>
    %52 = math.tanh %51 : vector<8x128xf32>
    %cst_32 = arith.constant 5.000000e-01 : f32
    %53 = vector.broadcast %cst_32 : f32 to vector<8x128xf32>
    %54 = arith.mulf %53, %52 : vector<8x128xf32>
    %cst_33 = arith.constant 5.000000e-01 : f32
    %55 = vector.broadcast %cst_33 : f32 to vector<8x128xf32>
    %56 = arith.addf %54, %55 : vector<8x128xf32>
    %57 = vector.extract_strided_slice %40 {offsets = [0, 256], sizes = [8, 128], strides = [1, 1]} : vector<8x512xf32> to vector<8x128xf32>
    %58 = math.tanh %57 : vector<8x128xf32>
    %59 = vector.extract_strided_slice %40 {offsets = [0, 384], sizes = [8, 128], strides = [1, 1]} : vector<8x512xf32> to vector<8x128xf32>
    %cst_34 = arith.constant 5.000000e-01 : f32
    %60 = vector.broadcast %cst_34 : f32 to vector<8x128xf32>
    %61 = arith.mulf %60, %59 : vector<8x128xf32>
    %62 = math.tanh %61 : vector<8x128xf32>
    %cst_35 = arith.constant 5.000000e-01 : f32
    %63 = vector.broadcast %cst_35 : f32 to vector<8x128xf32>
    %64 = arith.mulf %63, %62 : vector<8x128xf32>
    %cst_36 = arith.constant 5.000000e-01 : f32
    %65 = vector.broadcast %cst_36 : f32 to vector<8x128xf32>
    %66 = arith.addf %64, %65 : vector<8x128xf32>
    %67 = arith.mulf %56, %33 : vector<8x128xf32>
    %68 = arith.mulf %48, %58 : vector<8x128xf32>
    %69 = arith.addf %67, %68 : vector<8x128xf32>
    %70 = math.tanh %69 : vector<8x128xf32>
    %71 = arith.mulf %66, %70 : vector<8x128xf32>
    %c1_i32 = arith.constant 1 : i32
    %c8_i32_37 = arith.constant 8 : i32
    %72 = arith.muli %c1_i32, %c8_i32_37 : i32
    %73 = tpu.assume_multiple %72, 8 : i32
    %74 = arith.index_cast %73 : i32 to index
    %c0_38 = arith.constant 0 : index
    %75 = vector.load %arg10[%74, %c0_38] : memref<64x512xf32, #tpu.memory_space<vmem>>, vector<8x512xf32>
    %76 = arith.truncf %71 : vector<8x128xf32> to vector<8x128xbf16>
    %cst_39 = arith.constant dense<0.000000e+00> : vector<8x512xf32>
    %77 = tpu.matmul %76, %31, %cst_39 {dimension_numbers = #tpu.dot_dimension_numbers<[1], [0], [0], [1], [0, 0, 1, 1], [], []>} : vector<8x128xbf16>, vector<128x512xbf16>, vector<8x512xf32> -> vector<8x512xf32>
    %78 = arith.addf %75, %77 : vector<8x512xf32>
    %79 = vector.extract_strided_slice %78 {offsets = [0, 0], sizes = [8, 128], strides = [1, 1]} : vector<8x512xf32> to vector<8x128xf32>
    %cst_40 = arith.constant 5.000000e-01 : f32
    %80 = vector.broadcast %cst_40 : f32 to vector<8x128xf32>
    %81 = arith.mulf %80, %79 : vector<8x128xf32>
    %82 = math.tanh %81 : vector<8x128xf32>
    %cst_41 = arith.constant 5.000000e-01 : f32
    %83 = vector.broadcast %cst_41 : f32 to vector<8x128xf32>
    %84 = arith.mulf %83, %82 : vector<8x128xf32>
    %cst_42 = arith.constant 5.000000e-01 : f32
    %85 = vector.broadcast %cst_42 : f32 to vector<8x128xf32>
    %86 = arith.addf %84, %85 : vector<8x128xf32>
    %87 = vector.extract_strided_slice %78 {offsets = [0, 128], sizes = [8, 128], strides = [1, 1]} : vector<8x512xf32> to vector<8x128xf32>
    %cst_43 = arith.constant 5.000000e-01 : f32
    %88 = vector.broadcast %cst_43 : f32 to vector<8x128xf32>
    %89 = arith.mulf %88, %87 : vector<8x128xf32>
    %90 = math.tanh %89 : vector<8x128xf32>
    %cst_44 = arith.constant 5.000000e-01 : f32
    %91 = vector.broadcast %cst_44 : f32 to vector<8x128xf32>
    %92 = arith.mulf %91, %90 : vector<8x128xf32>
    %cst_45 = arith.constant 5.000000e-01 : f32
    %93 = vector.broadcast %cst_45 : f32 to vector<8x128xf32>
    %94 = arith.addf %92, %93 : vector<8x128xf32>
    %95 = vector.extract_strided_slice %78 {offsets = [0, 256], sizes = [8, 128], strides = [1, 1]} : vector<8x512xf32> to vector<8x128xf32>
    %96 = math.tanh %95 : vector<8x128xf32>
    %97 = vector.extract_strided_slice %78 {offsets = [0, 384], sizes = [8, 128], strides = [1, 1]} : vector<8x512xf32> to vector<8x128xf32>
    %cst_46 = arith.constant 5.000000e-01 : f32
    %98 = vector.broadcast %cst_46 : f32 to vector<8x128xf32>
    %99 = arith.mulf %98, %97 : vector<8x128xf32>
    %100 = math.tanh %99 : vector<8x128xf32>
    %cst_47 = arith.constant 5.000000e-01 : f32
    %101 = vector.broadcast %cst_47 : f32 to vector<8x128xf32>
    %102 = arith.mulf %101, %100 : vector<8x128xf32>
    %cst_48 = arith.constant 5.000000e-01 : f32
    %103 = vector.broadcast %cst_48 : f32 to vector<8x128xf32>
    %104 = arith.addf %102, %103 : vector<8x128xf32>
    %105 = arith.mulf %94, %69 : vector<8x128xf32>
    %106 = arith.mulf %86, %96 : vector<8x128xf32>
    %107 = arith.addf %105, %106 : vector<8x128xf32>
    %108 = math.tanh %107 : vector<8x128xf32>
    %109 = arith.mulf %104, %108 : vector<8x128xf32>
    %c2_i32 = arith.constant 2 : i32
    %c8_i32_49 = arith.constant 8 : i32
    %110 = arith.muli %c2_i32, %c8_i32_49 : i32
    %111 = tpu.assume_multiple %110, 8 : i32
    %112 = arith.index_cast %111 : i32 to index
    %c0_50 = arith.constant 0 : index
    %113 = vector.load %arg10[%112, %c0_50] : memref<64x512xf32, #tpu.memory_space<vmem>>, vector<8x512xf32>
    %114 = arith.truncf %109 : vector<8x128xf32> to vector<8x128xbf16>
    %cst_51 = arith.constant dense<0.000000e+00> : vector<8x512xf32>
    %115 = tpu.matmul %114, %31, %cst_51 {dimension_numbers = #tpu.dot_dimension_numbers<[1], [0], [0], [1], [0, 0, 1, 1], [], []>} : vector<8x128xbf16>, vector<128x512xbf16>, vector<8x512xf32> -> vector<8x512xf32>
    %116 = arith.addf %113, %115 : vector<8x512xf32>
    %117 = vector.extract_strided_slice %116 {offsets = [0, 0], sizes = [8, 128], strides = [1, 1]} : vector<8x512xf32> to vector<8x128xf32>
    %cst_52 = arith.constant 5.000000e-01 : f32
    %118 = vector.broadcast %cst_52 : f32 to vector<8x128xf32>
    %119 = arith.mulf %118, %117 : vector<8x128xf32>
    %120 = math.tanh %119 : vector<8x128xf32>
    %cst_53 = arith.constant 5.000000e-01 : f32
    %121 = vector.broadcast %cst_53 : f32 to vector<8x128xf32>
    %122 = arith.mulf %121, %120 : vector<8x128xf32>
    %cst_54 = arith.constant 5.000000e-01 : f32
    %123 = vector.broadcast %cst_54 : f32 to vector<8x128xf32>
    %124 = arith.addf %122, %123 : vector<8x128xf32>
    %125 = vector.extract_strided_slice %116 {offsets = [0, 128], sizes = [8, 128], strides = [1, 1]} : vector<8x512xf32> to vector<8x128xf32>
    %cst_55 = arith.constant 5.000000e-01 : f32
    %126 = vector.broadcast %cst_55 : f32 to vector<8x128xf32>
    %127 = arith.mulf %126, %125 : vector<8x128xf32>
    %128 = math.tanh %127 : vector<8x128xf32>
    %cst_56 = arith.constant 5.000000e-01 : f32
    %129 = vector.broadcast %cst_56 : f32 to vector<8x128xf32>
    %130 = arith.mulf %129, %128 : vector<8x128xf32>
    %cst_57 = arith.constant 5.000000e-01 : f32
    %131 = vector.broadcast %cst_57 : f32 to vector<8x128xf32>
    %132 = arith.addf %130, %131 : vector<8x128xf32>
    %133 = vector.extract_strided_slice %116 {offsets = [0, 256], sizes = [8, 128], strides = [1, 1]} : vector<8x512xf32> to vector<8x128xf32>
    %134 = math.tanh %133 : vector<8x128xf32>
    %135 = vector.extract_strided_slice %116 {offsets = [0, 384], sizes = [8, 128], strides = [1, 1]} : vector<8x512xf32> to vector<8x128xf32>
    %cst_58 = arith.constant 5.000000e-01 : f32
    %136 = vector.broadcast %cst_58 : f32 to vector<8x128xf32>
    %137 = arith.mulf %136, %135 : vector<8x128xf32>
    %138 = math.tanh %137 : vector<8x128xf32>
    %cst_59 = arith.constant 5.000000e-01 : f32
    %139 = vector.broadcast %cst_59 : f32 to vector<8x128xf32>
    %140 = arith.mulf %139, %138 : vector<8x128xf32>
    %cst_60 = arith.constant 5.000000e-01 : f32
    %141 = vector.broadcast %cst_60 : f32 to vector<8x128xf32>
    %142 = arith.addf %140, %141 : vector<8x128xf32>
    %143 = arith.mulf %132, %107 : vector<8x128xf32>
    %144 = arith.mulf %124, %134 : vector<8x128xf32>
    %145 = arith.addf %143, %144 : vector<8x128xf32>
    %146 = math.tanh %145 : vector<8x128xf32>
    %147 = arith.mulf %142, %146 : vector<8x128xf32>
    %c3_i32 = arith.constant 3 : i32
    %c8_i32_61 = arith.constant 8 : i32
    %148 = arith.muli %c3_i32, %c8_i32_61 : i32
    %149 = tpu.assume_multiple %148, 8 : i32
    %150 = arith.index_cast %149 : i32 to index
    %c0_62 = arith.constant 0 : index
    %151 = vector.load %arg10[%150, %c0_62] : memref<64x512xf32, #tpu.memory_space<vmem>>, vector<8x512xf32>
    %152 = arith.truncf %147 : vector<8x128xf32> to vector<8x128xbf16>
    %cst_63 = arith.constant dense<0.000000e+00> : vector<8x512xf32>
    %153 = tpu.matmul %152, %31, %cst_63 {dimension_numbers = #tpu.dot_dimension_numbers<[1], [0], [0], [1], [0, 0, 1, 1], [], []>} : vector<8x128xbf16>, vector<128x512xbf16>, vector<8x512xf32> -> vector<8x512xf32>
    %154 = arith.addf %151, %153 : vector<8x512xf32>
    %155 = vector.extract_strided_slice %154 {offsets = [0, 0], sizes = [8, 128], strides = [1, 1]} : vector<8x512xf32> to vector<8x128xf32>
    %cst_64 = arith.constant 5.000000e-01 : f32
    %156 = vector.broadcast %cst_64 : f32 to vector<8x128xf32>
    %157 = arith.mulf %156, %155 : vector<8x128xf32>
    %158 = math.tanh %157 : vector<8x128xf32>
    %cst_65 = arith.constant 5.000000e-01 : f32
    %159 = vector.broadcast %cst_65 : f32 to vector<8x128xf32>
    %160 = arith.mulf %159, %158 : vector<8x128xf32>
    %cst_66 = arith.constant 5.000000e-01 : f32
    %161 = vector.broadcast %cst_66 : f32 to vector<8x128xf32>
    %162 = arith.addf %160, %161 : vector<8x128xf32>
    %163 = vector.extract_strided_slice %154 {offsets = [0, 128], sizes = [8, 128], strides = [1, 1]} : vector<8x512xf32> to vector<8x128xf32>
    %cst_67 = arith.constant 5.000000e-01 : f32
    %164 = vector.broadcast %cst_67 : f32 to vector<8x128xf32>
    %165 = arith.mulf %164, %163 : vector<8x128xf32>
    %166 = math.tanh %165 : vector<8x128xf32>
    %cst_68 = arith.constant 5.000000e-01 : f32
    %167 = vector.broadcast %cst_68 : f32 to vector<8x128xf32>
    %168 = arith.mulf %167, %166 : vector<8x128xf32>
    %cst_69 = arith.constant 5.000000e-01 : f32
    %169 = vector.broadcast %cst_69 : f32 to vector<8x128xf32>
    %170 = arith.addf %168, %169 : vector<8x128xf32>
    %171 = vector.extract_strided_slice %154 {offsets = [0, 256], sizes = [8, 128], strides = [1, 1]} : vector<8x512xf32> to vector<8x128xf32>
    %172 = math.tanh %171 : vector<8x128xf32>
    %173 = vector.extract_strided_slice %154 {offsets = [0, 384], sizes = [8, 128], strides = [1, 1]} : vector<8x512xf32> to vector<8x128xf32>
    %cst_70 = arith.constant 5.000000e-01 : f32
    %174 = vector.broadcast %cst_70 : f32 to vector<8x128xf32>
    %175 = arith.mulf %174, %173 : vector<8x128xf32>
    %176 = math.tanh %175 : vector<8x128xf32>
    %cst_71 = arith.constant 5.000000e-01 : f32
    %177 = vector.broadcast %cst_71 : f32 to vector<8x128xf32>
    %178 = arith.mulf %177, %176 : vector<8x128xf32>
    %cst_72 = arith.constant 5.000000e-01 : f32
    %179 = vector.broadcast %cst_72 : f32 to vector<8x128xf32>
    %180 = arith.addf %178, %179 : vector<8x128xf32>
    %181 = arith.mulf %170, %145 : vector<8x128xf32>
    %182 = arith.mulf %162, %172 : vector<8x128xf32>
    %183 = arith.addf %181, %182 : vector<8x128xf32>
    %184 = math.tanh %183 : vector<8x128xf32>
    %185 = arith.mulf %180, %184 : vector<8x128xf32>
    %c4_i32 = arith.constant 4 : i32
    %c8_i32_73 = arith.constant 8 : i32
    %186 = arith.muli %c4_i32, %c8_i32_73 : i32
    %187 = tpu.assume_multiple %186, 8 : i32
    %188 = arith.index_cast %187 : i32 to index
    %c0_74 = arith.constant 0 : index
    %189 = vector.load %arg10[%188, %c0_74] : memref<64x512xf32, #tpu.memory_space<vmem>>, vector<8x512xf32>
    %190 = arith.truncf %185 : vector<8x128xf32> to vector<8x128xbf16>
    %cst_75 = arith.constant dense<0.000000e+00> : vector<8x512xf32>
    %191 = tpu.matmul %190, %31, %cst_75 {dimension_numbers = #tpu.dot_dimension_numbers<[1], [0], [0], [1], [0, 0, 1, 1], [], []>} : vector<8x128xbf16>, vector<128x512xbf16>, vector<8x512xf32> -> vector<8x512xf32>
    %192 = arith.addf %189, %191 : vector<8x512xf32>
    %193 = vector.extract_strided_slice %192 {offsets = [0, 0], sizes = [8, 128], strides = [1, 1]} : vector<8x512xf32> to vector<8x128xf32>
    %cst_76 = arith.constant 5.000000e-01 : f32
    %194 = vector.broadcast %cst_76 : f32 to vector<8x128xf32>
    %195 = arith.mulf %194, %193 : vector<8x128xf32>
    %196 = math.tanh %195 : vector<8x128xf32>
    %cst_77 = arith.constant 5.000000e-01 : f32
    %197 = vector.broadcast %cst_77 : f32 to vector<8x128xf32>
    %198 = arith.mulf %197, %196 : vector<8x128xf32>
    %cst_78 = arith.constant 5.000000e-01 : f32
    %199 = vector.broadcast %cst_78 : f32 to vector<8x128xf32>
    %200 = arith.addf %198, %199 : vector<8x128xf32>
    %201 = vector.extract_strided_slice %192 {offsets = [0, 128], sizes = [8, 128], strides = [1, 1]} : vector<8x512xf32> to vector<8x128xf32>
    %cst_79 = arith.constant 5.000000e-01 : f32
    %202 = vector.broadcast %cst_79 : f32 to vector<8x128xf32>
    %203 = arith.mulf %202, %201 : vector<8x128xf32>
    %204 = math.tanh %203 : vector<8x128xf32>
    %cst_80 = arith.constant 5.000000e-01 : f32
    %205 = vector.broadcast %cst_80 : f32 to vector<8x128xf32>
    %206 = arith.mulf %205, %204 : vector<8x128xf32>
    %cst_81 = arith.constant 5.000000e-01 : f32
    %207 = vector.broadcast %cst_81 : f32 to vector<8x128xf32>
    %208 = arith.addf %206, %207 : vector<8x128xf32>
    %209 = vector.extract_strided_slice %192 {offsets = [0, 256], sizes = [8, 128], strides = [1, 1]} : vector<8x512xf32> to vector<8x128xf32>
    %210 = math.tanh %209 : vector<8x128xf32>
    %211 = vector.extract_strided_slice %192 {offsets = [0, 384], sizes = [8, 128], strides = [1, 1]} : vector<8x512xf32> to vector<8x128xf32>
    %cst_82 = arith.constant 5.000000e-01 : f32
    %212 = vector.broadcast %cst_82 : f32 to vector<8x128xf32>
    %213 = arith.mulf %212, %211 : vector<8x128xf32>
    %214 = math.tanh %213 : vector<8x128xf32>
    %cst_83 = arith.constant 5.000000e-01 : f32
    %215 = vector.broadcast %cst_83 : f32 to vector<8x128xf32>
    %216 = arith.mulf %215, %214 : vector<8x128xf32>
    %cst_84 = arith.constant 5.000000e-01 : f32
    %217 = vector.broadcast %cst_84 : f32 to vector<8x128xf32>
    %218 = arith.addf %216, %217 : vector<8x128xf32>
    %219 = arith.mulf %208, %183 : vector<8x128xf32>
    %220 = arith.mulf %200, %210 : vector<8x128xf32>
    %221 = arith.addf %219, %220 : vector<8x128xf32>
    %222 = math.tanh %221 : vector<8x128xf32>
    %223 = arith.mulf %218, %222 : vector<8x128xf32>
    %c5_i32 = arith.constant 5 : i32
    %c8_i32_85 = arith.constant 8 : i32
    %224 = arith.muli %c5_i32, %c8_i32_85 : i32
    %225 = tpu.assume_multiple %224, 8 : i32
    %226 = arith.index_cast %225 : i32 to index
    %c0_86 = arith.constant 0 : index
    %227 = vector.load %arg10[%226, %c0_86] : memref<64x512xf32, #tpu.memory_space<vmem>>, vector<8x512xf32>
    %228 = arith.truncf %223 : vector<8x128xf32> to vector<8x128xbf16>
    %cst_87 = arith.constant dense<0.000000e+00> : vector<8x512xf32>
    %229 = tpu.matmul %228, %31, %cst_87 {dimension_numbers = #tpu.dot_dimension_numbers<[1], [0], [0], [1], [0, 0, 1, 1], [], []>} : vector<8x128xbf16>, vector<128x512xbf16>, vector<8x512xf32> -> vector<8x512xf32>
    %230 = arith.addf %227, %229 : vector<8x512xf32>
    %231 = vector.extract_strided_slice %230 {offsets = [0, 0], sizes = [8, 128], strides = [1, 1]} : vector<8x512xf32> to vector<8x128xf32>
    %cst_88 = arith.constant 5.000000e-01 : f32
    %232 = vector.broadcast %cst_88 : f32 to vector<8x128xf32>
    %233 = arith.mulf %232, %231 : vector<8x128xf32>
    %234 = math.tanh %233 : vector<8x128xf32>
    %cst_89 = arith.constant 5.000000e-01 : f32
    %235 = vector.broadcast %cst_89 : f32 to vector<8x128xf32>
    %236 = arith.mulf %235, %234 : vector<8x128xf32>
    %cst_90 = arith.constant 5.000000e-01 : f32
    %237 = vector.broadcast %cst_90 : f32 to vector<8x128xf32>
    %238 = arith.addf %236, %237 : vector<8x128xf32>
    %239 = vector.extract_strided_slice %230 {offsets = [0, 128], sizes = [8, 128], strides = [1, 1]} : vector<8x512xf32> to vector<8x128xf32>
    %cst_91 = arith.constant 5.000000e-01 : f32
    %240 = vector.broadcast %cst_91 : f32 to vector<8x128xf32>
    %241 = arith.mulf %240, %239 : vector<8x128xf32>
    %242 = math.tanh %241 : vector<8x128xf32>
    %cst_92 = arith.constant 5.000000e-01 : f32
    %243 = vector.broadcast %cst_92 : f32 to vector<8x128xf32>
    %244 = arith.mulf %243, %242 : vector<8x128xf32>
    %cst_93 = arith.constant 5.000000e-01 : f32
    %245 = vector.broadcast %cst_93 : f32 to vector<8x128xf32>
    %246 = arith.addf %244, %245 : vector<8x128xf32>
    %247 = vector.extract_strided_slice %230 {offsets = [0, 256], sizes = [8, 128], strides = [1, 1]} : vector<8x512xf32> to vector<8x128xf32>
    %248 = math.tanh %247 : vector<8x128xf32>
    %249 = vector.extract_strided_slice %230 {offsets = [0, 384], sizes = [8, 128], strides = [1, 1]} : vector<8x512xf32> to vector<8x128xf32>
    %cst_94 = arith.constant 5.000000e-01 : f32
    %250 = vector.broadcast %cst_94 : f32 to vector<8x128xf32>
    %251 = arith.mulf %250, %249 : vector<8x128xf32>
    %252 = math.tanh %251 : vector<8x128xf32>
    %cst_95 = arith.constant 5.000000e-01 : f32
    %253 = vector.broadcast %cst_95 : f32 to vector<8x128xf32>
    %254 = arith.mulf %253, %252 : vector<8x128xf32>
    %cst_96 = arith.constant 5.000000e-01 : f32
    %255 = vector.broadcast %cst_96 : f32 to vector<8x128xf32>
    %256 = arith.addf %254, %255 : vector<8x128xf32>
    %257 = arith.mulf %246, %221 : vector<8x128xf32>
    %258 = arith.mulf %238, %248 : vector<8x128xf32>
    %259 = arith.addf %257, %258 : vector<8x128xf32>
    %260 = math.tanh %259 : vector<8x128xf32>
    %261 = arith.mulf %256, %260 : vector<8x128xf32>
    %c6_i32 = arith.constant 6 : i32
    %c8_i32_97 = arith.constant 8 : i32
    %262 = arith.muli %c6_i32, %c8_i32_97 : i32
    %263 = tpu.assume_multiple %262, 8 : i32
    %264 = arith.index_cast %263 : i32 to index
    %c0_98 = arith.constant 0 : index
    %265 = vector.load %arg10[%264, %c0_98] : memref<64x512xf32, #tpu.memory_space<vmem>>, vector<8x512xf32>
    %266 = arith.truncf %261 : vector<8x128xf32> to vector<8x128xbf16>
    %cst_99 = arith.constant dense<0.000000e+00> : vector<8x512xf32>
    %267 = tpu.matmul %266, %31, %cst_99 {dimension_numbers = #tpu.dot_dimension_numbers<[1], [0], [0], [1], [0, 0, 1, 1], [], []>} : vector<8x128xbf16>, vector<128x512xbf16>, vector<8x512xf32> -> vector<8x512xf32>
    %268 = arith.addf %265, %267 : vector<8x512xf32>
    %269 = vector.extract_strided_slice %268 {offsets = [0, 0], sizes = [8, 128], strides = [1, 1]} : vector<8x512xf32> to vector<8x128xf32>
    %cst_100 = arith.constant 5.000000e-01 : f32
    %270 = vector.broadcast %cst_100 : f32 to vector<8x128xf32>
    %271 = arith.mulf %270, %269 : vector<8x128xf32>
    %272 = math.tanh %271 : vector<8x128xf32>
    %cst_101 = arith.constant 5.000000e-01 : f32
    %273 = vector.broadcast %cst_101 : f32 to vector<8x128xf32>
    %274 = arith.mulf %273, %272 : vector<8x128xf32>
    %cst_102 = arith.constant 5.000000e-01 : f32
    %275 = vector.broadcast %cst_102 : f32 to vector<8x128xf32>
    %276 = arith.addf %274, %275 : vector<8x128xf32>
    %277 = vector.extract_strided_slice %268 {offsets = [0, 128], sizes = [8, 128], strides = [1, 1]} : vector<8x512xf32> to vector<8x128xf32>
    %cst_103 = arith.constant 5.000000e-01 : f32
    %278 = vector.broadcast %cst_103 : f32 to vector<8x128xf32>
    %279 = arith.mulf %278, %277 : vector<8x128xf32>
    %280 = math.tanh %279 : vector<8x128xf32>
    %cst_104 = arith.constant 5.000000e-01 : f32
    %281 = vector.broadcast %cst_104 : f32 to vector<8x128xf32>
    %282 = arith.mulf %281, %280 : vector<8x128xf32>
    %cst_105 = arith.constant 5.000000e-01 : f32
    %283 = vector.broadcast %cst_105 : f32 to vector<8x128xf32>
    %284 = arith.addf %282, %283 : vector<8x128xf32>
    %285 = vector.extract_strided_slice %268 {offsets = [0, 256], sizes = [8, 128], strides = [1, 1]} : vector<8x512xf32> to vector<8x128xf32>
    %286 = math.tanh %285 : vector<8x128xf32>
    %287 = vector.extract_strided_slice %268 {offsets = [0, 384], sizes = [8, 128], strides = [1, 1]} : vector<8x512xf32> to vector<8x128xf32>
    %cst_106 = arith.constant 5.000000e-01 : f32
    %288 = vector.broadcast %cst_106 : f32 to vector<8x128xf32>
    %289 = arith.mulf %288, %287 : vector<8x128xf32>
    %290 = math.tanh %289 : vector<8x128xf32>
    %cst_107 = arith.constant 5.000000e-01 : f32
    %291 = vector.broadcast %cst_107 : f32 to vector<8x128xf32>
    %292 = arith.mulf %291, %290 : vector<8x128xf32>
    %cst_108 = arith.constant 5.000000e-01 : f32
    %293 = vector.broadcast %cst_108 : f32 to vector<8x128xf32>
    %294 = arith.addf %292, %293 : vector<8x128xf32>
    %295 = arith.mulf %284, %259 : vector<8x128xf32>
    %296 = arith.mulf %276, %286 : vector<8x128xf32>
    %297 = arith.addf %295, %296 : vector<8x128xf32>
    %298 = math.tanh %297 : vector<8x128xf32>
    %299 = arith.mulf %294, %298 : vector<8x128xf32>
    %c7_i32 = arith.constant 7 : i32
    %c8_i32_109 = arith.constant 8 : i32
    %300 = arith.muli %c7_i32, %c8_i32_109 : i32
    %301 = tpu.assume_multiple %300, 8 : i32
    %302 = arith.index_cast %301 : i32 to index
    %c0_110 = arith.constant 0 : index
    %303 = vector.load %arg10[%302, %c0_110] : memref<64x512xf32, #tpu.memory_space<vmem>>, vector<8x512xf32>
    %304 = arith.truncf %299 : vector<8x128xf32> to vector<8x128xbf16>
    %cst_111 = arith.constant dense<0.000000e+00> : vector<8x512xf32>
    %305 = tpu.matmul %304, %31, %cst_111 {dimension_numbers = #tpu.dot_dimension_numbers<[1], [0], [0], [1], [0, 0, 1, 1], [], []>} : vector<8x128xbf16>, vector<128x512xbf16>, vector<8x512xf32> -> vector<8x512xf32>
    %306 = arith.addf %303, %305 : vector<8x512xf32>
    %307 = vector.extract_strided_slice %306 {offsets = [0, 0], sizes = [8, 128], strides = [1, 1]} : vector<8x512xf32> to vector<8x128xf32>
    %cst_112 = arith.constant 5.000000e-01 : f32
    %308 = vector.broadcast %cst_112 : f32 to vector<8x128xf32>
    %309 = arith.mulf %308, %307 : vector<8x128xf32>
    %310 = math.tanh %309 : vector<8x128xf32>
    %cst_113 = arith.constant 5.000000e-01 : f32
    %311 = vector.broadcast %cst_113 : f32 to vector<8x128xf32>
    %312 = arith.mulf %311, %310 : vector<8x128xf32>
    %cst_114 = arith.constant 5.000000e-01 : f32
    %313 = vector.broadcast %cst_114 : f32 to vector<8x128xf32>
    %314 = arith.addf %312, %313 : vector<8x128xf32>
    %315 = vector.extract_strided_slice %306 {offsets = [0, 128], sizes = [8, 128], strides = [1, 1]} : vector<8x512xf32> to vector<8x128xf32>
    %cst_115 = arith.constant 5.000000e-01 : f32
    %316 = vector.broadcast %cst_115 : f32 to vector<8x128xf32>
    %317 = arith.mulf %316, %315 : vector<8x128xf32>
    %318 = math.tanh %317 : vector<8x128xf32>
    %cst_116 = arith.constant 5.000000e-01 : f32
    %319 = vector.broadcast %cst_116 : f32 to vector<8x128xf32>
    %320 = arith.mulf %319, %318 : vector<8x128xf32>
    %cst_117 = arith.constant 5.000000e-01 : f32
    %321 = vector.broadcast %cst_117 : f32 to vector<8x128xf32>
    %322 = arith.addf %320, %321 : vector<8x128xf32>
    %323 = vector.extract_strided_slice %306 {offsets = [0, 256], sizes = [8, 128], strides = [1, 1]} : vector<8x512xf32> to vector<8x128xf32>
    %324 = math.tanh %323 : vector<8x128xf32>
    %325 = vector.extract_strided_slice %306 {offsets = [0, 384], sizes = [8, 128], strides = [1, 1]} : vector<8x512xf32> to vector<8x128xf32>
    %cst_118 = arith.constant 5.000000e-01 : f32
    %326 = vector.broadcast %cst_118 : f32 to vector<8x128xf32>
    %327 = arith.mulf %326, %325 : vector<8x128xf32>
    %328 = math.tanh %327 : vector<8x128xf32>
    %cst_119 = arith.constant 5.000000e-01 : f32
    %329 = vector.broadcast %cst_119 : f32 to vector<8x128xf32>
    %330 = arith.mulf %329, %328 : vector<8x128xf32>
    %cst_120 = arith.constant 5.000000e-01 : f32
    %331 = vector.broadcast %cst_120 : f32 to vector<8x128xf32>
    %332 = arith.addf %330, %331 : vector<8x128xf32>
    %333 = arith.mulf %322, %297 : vector<8x128xf32>
    %334 = arith.mulf %314, %324 : vector<8x128xf32>
    %335 = arith.addf %333, %334 : vector<8x128xf32>
    %336 = math.tanh %335 : vector<8x128xf32>
    %337 = arith.mulf %332, %336 : vector<8x128xf32>
    %c8_i32_121 = arith.constant 8 : i32
    %c0_122 = arith.constant 0 : index
    %c0_123 = arith.constant 0 : index
    %338 = vector.load %arg7[%c0_122, %c0_123] : memref<128x1xf32, #tpu.memory_space<vmem>>, vector<128x1xf32>
    %cst_124 = arith.constant dense<0.000000e+00> : vector<8x1xf32>
    %339 = tpu.matmul %337, %338, %cst_124 {dimension_numbers = #tpu.dot_dimension_numbers<[1], [0], [0], [1], [0, 0, 1, 1], [], []>} : vector<8x128xf32>, vector<128x1xf32>, vector<8x1xf32> -> vector<8x1xf32>
    %c0_125 = arith.constant 0 : index
    %c0_126 = arith.constant 0 : index
    %340 = vector.load %arg8[%c0_125, %c0_126] : memref<1x1xf32, #tpu.memory_space<vmem>>, vector<1x1xf32>
    %341 = vector.broadcast %340 : vector<1x1xf32> to vector<8x1xf32>
    %342 = arith.addf %339, %341 : vector<8x1xf32>
    %cst_127 = arith.constant 5.000000e-01 : f32
    %343 = vector.broadcast %cst_127 : f32 to vector<8x1xf32>
    %344 = arith.mulf %343, %342 : vector<8x1xf32>
    %345 = math.tanh %344 : vector<8x1xf32>
    %cst_128 = arith.constant 5.000000e-01 : f32
    %346 = vector.broadcast %cst_128 : f32 to vector<8x1xf32>
    %347 = arith.mulf %346, %345 : vector<8x1xf32>
    %cst_129 = arith.constant 5.000000e-01 : f32
    %348 = vector.broadcast %cst_129 : f32 to vector<8x1xf32>
    %349 = arith.addf %347, %348 : vector<8x1xf32>
    %c0_130 = arith.constant 0 : index
    %c0_131 = arith.constant 0 : index
    %350 = vector.load %arg9[%c0_130, %c0_131] : memref<8x1xf32, #tpu.memory_space<vmem>>, vector<8x1xf32>
    tpu.vector_store %arg9[%c0_130, %c0_131], %349 {strides = array<i32>} : memref<8x1xf32, #tpu.memory_space<vmem>>, vector<8x1xf32>,
    return
  }
  func.func @transform_0(%arg0: i32) -> (i32, i32, i32) {
    %c0_i32 = arith.constant 0 : i32
    %c0_i32_0 = arith.constant 0 : i32
    %c0_i32_1 = arith.constant 0 : i32
    return %c0_i32, %arg0, %c0_i32_0 : i32, i32, i32
  }
  func.func @transform_1(%arg0: i32) -> (i32, i32, i32) {
    %c0_i32 = arith.constant 0 : i32
    %c0_i32_0 = arith.constant 0 : i32
    %c0_i32_1 = arith.constant 0 : i32
    %c0_i32_2 = arith.constant 0 : i32
    return %c0_i32, %c0_i32_0, %c0_i32_1 : i32, i32, i32
  }
  func.func @transform_2(%arg0: i32) -> (i32, i32) {
    %c0_i32 = arith.constant 0 : i32
    %c0_i32_0 = arith.constant 0 : i32
    %c0_i32_1 = arith.constant 0 : i32
    return %c0_i32, %c0_i32_0 : i32, i32
  }
  func.func @transform_3(%arg0: i32) -> (i32, i32) {
    %c0_i32 = arith.constant 0 : i32
    %c0_i32_0 = arith.constant 0 : i32
    %c0_i32_1 = arith.constant 0 : i32
    return %c0_i32, %c0_i32_0 : i32, i32
  }
  func.func @transform_4(%arg0: i32) -> (i32, i32) {
    %c0_i32 = arith.constant 0 : i32
    %c0_i32_0 = arith.constant 0 : i32
    %c0_i32_1 = arith.constant 0 : i32
    return %c0_i32, %c0_i32_0 : i32, i32
  }
  func.func @transform_5(%arg0: i32) -> (i32, i32) {
    %c0_i32 = arith.constant 0 : i32
    %c0_i32_0 = arith.constant 0 : i32
    %c0_i32_1 = arith.constant 0 : i32
    return %c0_i32, %c0_i32_0 : i32, i32
  }
  func.func @transform_6(%arg0: i32) -> (i32, i32) {
    %c0_i32 = arith.constant 0 : i32
    %c0_i32_0 = arith.constant 0 : i32
    %c0_i32_1 = arith.constant 0 : i32
    return %c0_i32, %c0_i32_0 : i32, i32
  }
  func.func @transform_7(%arg0: i32) -> (i32, i32) {
    %c0_i32 = arith.constant 0 : i32
    %c0_i32_0 = arith.constant 0 : i32
    %c0_i32_1 = arith.constant 0 : i32
    return %c0_i32, %c0_i32_0 : i32, i32
  }
  func.func @transform_8(%arg0: i32) -> (i32, i32) {
    %c0_i32 = arith.constant 0 : i32
    %c0_i32_0 = arith.constant 0 : i32
    return %arg0, %c0_i32 : i32, i32
  }
}

</mosaic_0001>

<llo_original>
// kernel: custom_mel11_forward.1
$region0: #{custom_mel11_forward.1}
  #allocation0 [shape = 'u32[]', space=smem, size = 0x4, offset = 0x4, fixed_abs, tag = 'smem constant byte address 0x4 - core index']
  #allocation1 [shape = 'u32[144,128]{1,0:T(1,128)}', space=vmem, size = 0x12000, scoped, tag = 'internal scratch']
  #allocation2 [shape = 'f32[64,512]{1,0:T(8,128)}', space=vmem, size = 0x20000, scoped, tag = 'scratch operand']
  #allocation3 [shape = 'f32[1,1]{1,0:T(1,128)S(1)}', space=vmem, size = 0x200, scoped, tag = 'scoped memory for custom_mel11_forward.1']
  %s0 = inlined_call_operand.vmem [shape: bf16[26,8,128], index: 0, kind: input, shape index: {}]
  %s1 = inlined_call_operand.hbm [shape: bf16[3,128,128], index: 1, kind: input, shape index: {}]
  %s2 = inlined_call_operand.vmem [shape: f32[1,128], index: 2, kind: input, shape index: {}]
  %s3 = inlined_call_operand.vmem [shape: bf16[128,512], index: 3, kind: input, shape index: {}]
  %s4 = inlined_call_operand.hbm [shape: bf16[128,512], index: 4, kind: input, shape index: {}]
  %s5 = inlined_call_operand.vmem [shape: f32[1,512], index: 5, kind: input, shape index: {}]
  %s6 = inlined_call_operand.vmem [shape: f32[128,1], index: 6, kind: input, shape index: {}]
  %s7 = inlined_call_operand.<no memory space> [shape: f32[1,1], index: 7, kind: input, shape index: {}]
  %s8 = inlined_call_operand.vmem [shape: f32[8,1], index: 8, kind: output, shape index: {}]
  %s9 = sld [smem:[#allocation0]]
  $region50: #{custom_mel11_forward.1} parent=0
    _
  %s11 = ssub.s32 1, %s9
  %s12 = scalar_select 0, %s11, %s9
  %v13 = vstv %s7
  %14 = vst [vmem:[#allocation3] sm:$0x1] %v13
  $region1: #{custom_mel11_forward.1} parent=0
    #allocation4 [shape = 'u8[98304]{0}', space=vmem, size = 0x18000, scoped, tag = 'input window, operand 1, single buffered']
    #allocation5 [shape = 's32[1]{0}', space=sflag, size = 0x4, scoped, tag = 'scoped memory for custom_mel11_forward.1']
    #allocation6 [shape = 'u8[131072]{0}', space=vmem, size = 0x20000, scoped, tag = 'input window, operand 4, single buffered']
    #allocation7 [shape = 's32[1]{0}', space=sflag, size = 0x4, scoped, tag = 'scoped memory for custom_mel11_forward.1']
    %15 = vsyncpa [#allocation5], 0
    %16 = vsyncpa [#allocation7], 0
    // Predicated region
    $region2: #{custom_mel11_forward.1} parent=1 // pred_check
      _
    $region3: #{custom_mel11_forward.1} parent=1 // pred_check_branch
      %18 = sbr.rel (0) target = $region5
    $region4: #{custom_mel11_forward.1} parent=1 // pred_region
      _
    $region5: #{custom_mel11_forward.1} parent=1 // pred_fallthru
      _
    // Predicated region
    $region6: #{custom_mel11_forward.1} parent=1 // pred_check
      _
    $region7: #{custom_mel11_forward.1} parent=1 // pred_check_branch
      %20 = sbr.rel (0) target = $region9
    $region8: #{custom_mel11_forward.1} parent=1 // pred_region
      %s22 = ssub.s32 3072, 3072
      %23 = vsyncadd [#allocation5], %s22
      %s24 = sshll.u32 [#allocation4], 4
      %s25 = int_to_ptr.vmem [resolvable:$true] %s24
      %30 = dma.hbm_to_vmem [thread:$0]  %s1, 3072, %s25, [#allocation5], 64, 64, 4
    $region9: #{custom_mel11_forward.1} parent=1 // pred_fallthru
      _
    // Predicated region
    $region10: #{custom_mel11_forward.1} parent=1 // pred_check
      _
    $region11: #{custom_mel11_forward.1} parent=1 // pred_check_branch
      %32 = sbr.rel (0) target = $region13
    $region12: #{custom_mel11_forward.1} parent=1 // pred_region
      _
    $region13: #{custom_mel11_forward.1} parent=1 // pred_fallthru
      _
    // Predicated region
    $region14: #{custom_mel11_forward.1} parent=1 // pred_check
      _
    $region15: #{custom_mel11_forward.1} parent=1 // pred_check_branch
      %34 = sbr.rel (0) target = $region17
    $region16: #{custom_mel11_forward.1} parent=1 // pred_region
      _
    $region17: #{custom_mel11_forward.1} parent=1 // pred_fallthru
      _
    // Predicated region
    $region18: #{custom_mel11_forward.1} parent=1 // pred_check
      _
    $region19: #{custom_mel11_forward.1} parent=1 // pred_check_branch
      %36 = sbr.rel (0) target = $region21
    $region20: #{custom_mel11_forward.1} parent=1 // pred_region
      %s38 = ssub.s32 4096, 4096
      %39 = vsyncadd [#allocation7], %s38
      %s40 = sshll.u32 [#allocation6], 4
      %s41 = int_to_ptr.vmem [resolvable:$true] %s40
      %46 = dma.hbm_to_vmem [thread:$0]  %s4, 4096, %s41, [#allocation7], 256, 256, 16
    $region21: #{custom_mel11_forward.1} parent=1 // pred_fallthru
      _
    // Predicated region
    $region22: #{custom_mel11_forward.1} parent=1 // pred_check
      _
    $region23: #{custom_mel11_forward.1} parent=1 // pred_check_branch
      %48 = sbr.rel (0) target = $region25
    $region24: #{custom_mel11_forward.1} parent=1 // pred_region
      _
    $region25: #{custom_mel11_forward.1} parent=1 // pred_fallthru
      _
    // Predicated region
    $region26: #{custom_mel11_forward.1} parent=1 // pred_check
      _
    $region27: #{custom_mel11_forward.1} parent=1 // pred_check_branch
      %50 = sbr.rel (0) target = $region29
    $region28: #{custom_mel11_forward.1} parent=1 // pred_region
      _
    $region29: #{custom_mel11_forward.1} parent=1 // pred_fallthru
      _
    // Predicated region
    $region30: #{custom_mel11_forward.1} parent=1 // pred_check
      _
    $region31: #{custom_mel11_forward.1} parent=1 // pred_check_branch
      %52 = sbr.rel (0) target = $region33
    $region32: #{custom_mel11_forward.1} parent=1 // pred_region
      _
    $region33: #{custom_mel11_forward.1} parent=1 // pred_fallthru
      _
    // Predicated region
    $region34: #{custom_mel11_forward.1} parent=1 // pred_check
      _
    $region35: #{custom_mel11_forward.1} parent=1 // pred_check_branch
      %54 = sbr.rel (0) target = $region37
    $region36: #{custom_mel11_forward.1} parent=1 // pred_region
      %55 = dma.done [#allocation5], 3072
    $region37: #{custom_mel11_forward.1} parent=1 // pred_fallthru
      _
    // Predicated region
    $region38: #{custom_mel11_forward.1} parent=1 // pred_check
      _
    $region39: #{custom_mel11_forward.1} parent=1 // pred_check_branch
      %57 = sbr.rel (0) target = $region41
    $region40: #{custom_mel11_forward.1} parent=1 // pred_region
      %58 = dma.done [#allocation7], 4096
    $region41: #{custom_mel11_forward.1} parent=1 // pred_fallthru
      _
    %v60 = vld [vmem:[%s0] sm:$0xf]
    %v61 = vld [vmem:[%s0 + $0x4] sm:$0xf]
    %v62 = vld [vmem:[%s0 + $0x8] sm:$0xf]
    %v63 = vld [vmem:[%s0 + $0xc] sm:$0xf]
    %v64 = vld [vmem:[%s0 + $0x10] sm:$0xf]
    %v65 = vld [vmem:[%s0 + $0x14] sm:$0xf]
    %v66 = vld [vmem:[%s0 + $0x18] sm:$0xf]
    %v67 = vld [vmem:[%s0 + $0x1c] sm:$0xf]
    %v68 = vld [vmem:[%s0 + $0x20] sm:$0xf]
    %v69 = vld [vmem:[%s0 + $0x24] sm:$0xf]
    %v70 = vld [vmem:[%s0 + $0x28] sm:$0xf]
    %v71 = vld [vmem:[%s0 + $0x2c] sm:$0xf]
    %v72 = vld [vmem:[%s0 + $0x30] sm:$0xf]
    %v73 = vld [vmem:[%s0 + $0x34] sm:$0xf]
    %v74 = vld [vmem:[%s0 + $0x38] sm:$0xf]
    %v75 = vld [vmem:[%s0 + $0x3c] sm:$0xf]
    %v76 = vld [vmem:[%s0 + $0x40] sm:$0xf]
    %v77 = vld [vmem:[%s0 + $0x44] sm:$0xf]
    %v78 = vld [vmem:[%s0 + $0x48] sm:$0xf]
    %v79 = vld [vmem:[%s0 + $0x4c] sm:$0xf]
    %v80 = vld [vmem:[%s0 + $0x50] sm:$0xf]
    %v81 = vld [vmem:[%s0 + $0x54] sm:$0xf]
    %v82 = vld [vmem:[%s0 + $0x58] sm:$0xf]
    %v83 = vld [vmem:[%s0 + $0x5c] sm:$0xf]
    %v84 = vld [vmem:[%s0 + $0x60] sm:$0xf]
    %v85 = vld [vmem:[%s0 + $0x64] sm:$0xf]
    %v86 = vld [vmem:[#allocation4] sm:$0xf]
    %v87 = vld [vmem:[#allocation4 + $0x4] sm:$0xf]
    %v88 = vld [vmem:[#allocation4 + $0x8] sm:$0xf]
    %v89 = vld [vmem:[#allocation4 + $0xc] sm:$0xf]
    %v90 = vld [vmem:[#allocation4 + $0x10] sm:$0xf]
    %v91 = vld [vmem:[#allocation4 + $0x14] sm:$0xf]
    %v92 = vld [vmem:[#allocation4 + $0x18] sm:$0xf]
    %v93 = vld [vmem:[#allocation4 + $0x1c] sm:$0xf]
    %v94 = vld [vmem:[#allocation4 + $0x20] sm:$0xf]
    %v95 = vld [vmem:[#allocation4 + $0x24] sm:$0xf]
    %v96 = vld [vmem:[#allocation4 + $0x28] sm:$0xf]
    %v97 = vld [vmem:[#allocation4 + $0x2c] sm:$0xf]
    %v98 = vld [vmem:[#allocation4 + $0x30] sm:$0xf]
    %v99 = vld [vmem:[#allocation4 + $0x34] sm:$0xf]
    %v100 = vld [vmem:[#allocation4 + $0x38] sm:$0xf]
    %v101 = vld [vmem:[#allocation4 + $0x3c] sm:$0xf]
    %s102 = scalar_lea.vmem [#allocation4], 64
    %v103 = vld [vmem:[%s102] sm:$0xf]
    %v104 = vld [vmem:[%s102 + $0x4] sm:$0xf]
    %v105 = vld [vmem:[%s102 + $0x8] sm:$0xf]
    %v106 = vld [vmem:[%s102 + $0xc] sm:$0xf]
    %v107 = vld [vmem:[%s102 + $0x10] sm:$0xf]
    %v108 = vld [vmem:[%s102 + $0x14] sm:$0xf]
    %v109 = vld [vmem:[%s102 + $0x18] sm:$0xf]
    %v110 = vld [vmem:[%s102 + $0x1c] sm:$0xf]
    %v111 = vld [vmem:[%s102 + $0x20] sm:$0xf]
    %v112 = vld [vmem:[%s102 + $0x24] sm:$0xf]
    %v113 = vld [vmem:[%s102 + $0x28] sm:$0xf]
    %v114 = vld [vmem:[%s102 + $0x2c] sm:$0xf]
    %v115 = vld [vmem:[%s102 + $0x30] sm:$0xf]
    %v116 = vld [vmem:[%s102 + $0x34] sm:$0xf]
    %v117 = vld [vmem:[%s102 + $0x38] sm:$0xf]
    %v118 = vld [vmem:[%s102 + $0x3c] sm:$0xf]
    %v143 = vunpack.c.l.b16 %v61
    %v144 = vunpack.c.l.b16 %v62
    %v145 = vunpack.c.l.b16 %v63
    %v146 = vunpack.c.l.b16 %v64
    %v147 = vunpack.c.l.b16 %v65
    %v148 = vunpack.c.l.b16 %v66
    %v149 = vunpack.c.l.b16 %v67
    %v150 = vunpack.c.l.b16 %v68
    %v151 = vunpack.c.l.b16 %v69
    %v152 = vunpack.c.l.b16 %v70
    %v153 = vunpack.c.l.b16 %v71
    %v154 = vunpack.c.l.b16 %v72
    %v155 = vunpack.c.l.b16 %v73
    %v156 = vunpack.c.l.b16 %v74
    %v157 = vunpack.c.l.b16 %v75
    %v158 = vunpack.c.l.b16 %v76
    %v159 = vunpack.c.l.b16 %v77
    %v160 = vunpack.c.l.b16 %v78
    %v161 = vunpack.c.l.b16 %v79
    %v162 = vunpack.c.l.b16 %v80
    %v163 = vunpack.c.l.b16 %v81
    %v164 = vunpack.c.l.b16 %v82
    %v165 = vunpack.c.l.b16 %v83
    %v166 = vunpack.c.l.b16 %v84
    %v167 = vpack.c.b16 %v144, %v143
    %v168 = vpack.c.b16 %v146, %v145
    %v169 = vpack.c.b16 %v148, %v147
    %v170 = vpack.c.b16 %v150, %v149
    %v171 = vpack.c.b16 %v152, %v151
    %v172 = vpack.c.b16 %v154, %v153
    %v173 = vpack.c.b16 %v156, %v155
    %v174 = vpack.c.b16 %v158, %v157
    %v175 = vpack.c.b16 %v160, %v159
    %v176 = vpack.c.b16 %v162, %v161
    %v177 = vpack.c.b16 %v164, %v163
    %v178 = vpack.c.b16 %v166, %v165
    %v207 = vunpack.c.l.b16 %v103
    %v208 = vunpack.c.l.b16 %v104
    %v209 = vunpack.c.l.b16 %v105
    %v210 = vunpack.c.l.b16 %v106
    %v211 = vunpack.c.l.b16 %v107
    %v212 = vunpack.c.l.b16 %v108
    %v213 = vunpack.c.l.b16 %v109
    %v214 = vunpack.c.l.b16 %v110
    %v215 = vunpack.c.l.b16 %v111
    %v216 = vunpack.c.l.b16 %v112
    %v217 = vunpack.c.l.b16 %v113
    %v218 = vunpack.c.l.b16 %v114
    %v219 = vunpack.c.l.b16 %v115
    %v220 = vunpack.c.l.b16 %v116
    %v221 = vunpack.c.l.b16 %v117
    %v222 = vunpack.c.l.b16 %v118
    %v223 = vpack.c.b16 %v208, %v207
    %v224 = vpack.c.b16 %v210, %v209
    %v225 = vpack.c.b16 %v212, %v211
    %v226 = vpack.c.b16 %v214, %v213
    %v227 = vpack.c.b16 %v216, %v215
    %v228 = vpack.c.b16 %v218, %v217
    %v229 = vpack.c.b16 %v220, %v219
    %v230 = vpack.c.b16 %v222, %v221
    %239 = vmatprep.subr.bf16.mxu0 0
    %240 = vmatpush1.bf16.msra.mxu0 %v223
    %241 = vmatprep.subr.bf16.mxu0 0
    %242 = vmatpush1.bf16.msra.mxu0 %v224
    %243 = vmatprep.subr.bf16.mxu0 0
    %244 = vmatpush1.bf16.msra.mxu0 %v225
    %245 = vmatprep.subr.bf16.mxu0 0
    %246 = vmatpush1.bf16.msra.mxu0 %v226
    %247 = vmatprep.subr.bf16.mxu0 0
    %248 = vmatpush1.bf16.msra.mxu0 %v227
    %249 = vmatprep.subr.bf16.mxu0 0
    %250 = vmatpush1.bf16.msra.mxu0 %v228
    %251 = vmatprep.subr.bf16.mxu0 0
    %252 = vmatpush1.bf16.msra.mxu0 %v229
    %253 = vmatprep.subr.bf16.mxu0 0
    %254 = vmatpush1.bf16.msra.mxu0 %v230
    %255 = vmatprep.subr.bf16.mxu0 0
    %256 = vmatpush1.bf16.msra.mxu0 0
    %257 = vmatprep.subr.bf16.mxu0 0
    %258 = vmatpush1.bf16.msra.mxu0 0
    %259 = vmatprep.subr.bf16.mxu0 0
    %260 = vmatpush1.bf16.msra.mxu0 0
    %261 = vmatprep.subr.bf16.mxu0 0
    %262 = vmatpush1.bf16.msra.mxu0 0
    %263 = vmatprep.subr.bf16.mxu0 0
    %264 = vmatpush1.bf16.msra.mxu0 0
    %265 = vmatprep.subr.bf16.mxu0 0
    %266 = vmatpush1.bf16.msra.mxu0 0
    %267 = vmatprep.subr.bf16.mxu0 0
    %268 = vmatpush1.bf16.msra.mxu0 0
    %269 = vmatprep.subr.bf16.mxu0 0
    %270 = vmatpush1.bf16.msra.mxu0 0
    %271 = vmatprep.mubr.bf16.mxu0 0
    %272 = vmatmul.mubr.bf16.gmra.mrb[0].mxu0 %v167
    %v273 = vpop.f32.mrb[0].mxu0
    %v274 = vadd.f32 0.0, %v273
    %v275 = vpop.f32.mrb[0].mxu0
    %v276 = vpop.f32.mrb[0].mxu0
    %v277 = vadd.f32 0.0, %v276
    %v278 = vpop.f32.mrb[0].mxu0
    %279 = vmatprep.mubr.bf16.mxu0 0
    %280 = vmatmul.mubr.bf16.gmra.mrb[0].mxu0 %v168
    %v281 = vpop.f32.mrb[0].mxu0
    %v282 = vadd.f32 0.0, %v281
    %v283 = vpop.f32.mrb[0].mxu0
    %v284 = vpop.f32.mrb[0].mxu0
    %v285 = vadd.f32 0.0, %v284
    %v286 = vpop.f32.mrb[0].mxu0
    %287 = vmatprep.mubr.bf16.mxu0 0
    %288 = vmatmul.mubr.bf16.gmra.mrb[0].mxu0 %v169
    %v289 = vpop.f32.mrb[0].mxu0
    %v290 = vadd.f32 0.0, %v289
    %v291 = vpop.f32.mrb[0].mxu0
    %v292 = vpop.f32.mrb[0].mxu0
    %v293 = vadd.f32 0.0, %v292
    %v294 = vpop.f32.mrb[0].mxu0
    %295 = vmatprep.mubr.bf16.mxu0 0
    %296 = vmatmul.mubr.bf16.gmra.mrb[0].mxu0 %v170
    %v297 = vpop.f32.mrb[0].mxu0
    %v298 = vadd.f32 0.0, %v297
    %v299 = vpop.f32.mrb[0].mxu0
    %v300 = vpop.f32.mrb[0].mxu0
    %v301 = vadd.f32 0.0, %v300
    %v302 = vpop.f32.mrb[0].mxu0
    %303 = vmatprep.mubr.bf16.mxu0 0
    %304 = vmatmul.mubr.bf16.gmra.mrb[0].mxu0 %v171
    %v305 = vpop.f32.mrb[0].mxu0
    %v306 = vadd.f32 0.0, %v305
    %v307 = vpop.f32.mrb[0].mxu0
    %v308 = vpop.f32.mrb[0].mxu0
    %v309 = vadd.f32 0.0, %v308
    %v310 = vpop.f32.mrb[0].mxu0
    %311 = vmatprep.mubr.bf16.mxu0 0
    %312 = vmatmul.mubr.bf16.gmra.mrb[0].mxu0 %v172
    %v313 = vpop.f32.mrb[0].mxu0
    %v314 = vadd.f32 0.0, %v313
    %v315 = vpop.f32.mrb[0].mxu0
    %v316 = vpop.f32.mrb[0].mxu0
    %v317 = vadd.f32 0.0, %v316
    %v318 = vpop.f32.mrb[0].mxu0
    %319 = vmatprep.mubr.bf16.mxu0 0
    %320 = vmatmul.mubr.bf16.gmra.mrb[0].mxu0 %v173
    %v321 = vpop.f32.mrb[0].mxu0
    %v322 = vadd.f32 0.0, %v321
    %v323 = vpop.f32.mrb[0].mxu0
    %v324 = vpop.f32.mrb[0].mxu0
    %v325 = vadd.f32 0.0, %v324
    %v326 = vpop.f32.mrb[0].mxu0
    %327 = vmatprep.mubr.bf16.mxu0 0
    %328 = vmatmul.mubr.bf16.gmra.mrb[0].mxu0 %v174
    %v329 = vpop.f32.mrb[0].mxu0
    %v330 = vadd.f32 0.0, %v329
    %v331 = vpop.f32.mrb[0].mxu0
    %v332 = vpop.f32.mrb[0].mxu0
    %v333 = vadd.f32 0.0, %v332
    %v334 = vpop.f32.mrb[0].mxu0
    %335 = vmatprep.mubr.bf16.mxu0 0
    %336 = vmatmul.mubr.bf16.gmra.mrb[0].mxu0 %v175
    %v337 = vpop.f32.mrb[0].mxu0
    %v338 = vadd.f32 0.0, %v337
    %v339 = vpop.f32.mrb[0].mxu0
    %v340 = vpop.f32.mrb[0].mxu0
    %v341 = vadd.f32 0.0, %v340
    %v342 = vpop.f32.mrb[0].mxu0
    %343 = vmatprep.mubr.bf16.mxu0 0
    %344 = vmatmul.mubr.bf16.gmra.mrb[0].mxu0 %v176
    %v345 = vpop.f32.mrb[0].mxu0
    %v346 = vadd.f32 0.0, %v345
    %v347 = vpop.f32.mrb[0].mxu0
    %v348 = vpop.f32.mrb[0].mxu0
    %v349 = vadd.f32 0.0, %v348
    %v350 = vpop.f32.mrb[0].mxu0
    %351 = vmatprep.mubr.bf16.mxu0 0
    %352 = vmatmul.mubr.bf16.gmra.mrb[0].mxu0 %v177
    %v353 = vpop.f32.mrb[0].mxu0
    %v354 = vadd.f32 0.0, %v353
    %v355 = vpop.f32.mrb[0].mxu0
    %v356 = vpop.f32.mrb[0].mxu0
    %v357 = vadd.f32 0.0, %v356
    %v358 = vpop.f32.mrb[0].mxu0
    %359 = vmatprep.mubr.bf16.mxu0 0
    %360 = vmatmul.mubr.bf16.gmra.mrb[0].mxu0 %v178
    %v361 = vpop.f32.mrb[0].mxu0
    %v362 = vadd.f32 0.0, %v361
    %v363 = vpop.f32.mrb[0].mxu0
    %v364 = vpop.f32.mrb[0].mxu0
    %v365 = vadd.f32 0.0, %v364
    %v366 = vpop.f32.mrb[0].mxu0
    %367 = vdwg.mxu0
    %v369 = vunpack.c.l.b16 %v60
    %v370 = vpack.c.b16 %v143, %v369
    %v371 = vpack.c.b16 %v145, %v144
    %v372 = vpack.c.b16 %v147, %v146
    %v373 = vpack.c.b16 %v149, %v148
    %v374 = vpack.c.b16 %v151, %v150
    %v375 = vpack.c.b16 %v153, %v152
    %v376 = vpack.c.b16 %v155, %v154
    %v377 = vpack.c.b16 %v157, %v156
    %v378 = vpack.c.b16 %v159, %v158
    %v379 = vpack.c.b16 %v161, %v160
    %v380 = vpack.c.b16 %v163, %v162
    %v381 = vpack.c.b16 %v165, %v164
    %v410 = vunpack.c.l.b16 %v86
    %v411 = vunpack.c.l.b16 %v87
    %v412 = vunpack.c.l.b16 %v88
    %v413 = vunpack.c.l.b16 %v89
    %v414 = vunpack.c.l.b16 %v90
    %v415 = vunpack.c.l.b16 %v91
    %v416 = vunpack.c.l.b16 %v92
    %v417 = vunpack.c.l.b16 %v93
    %v418 = vunpack.c.l.b16 %v94
    %v419 = vunpack.c.l.b16 %v95
    %v420 = vunpack.c.l.b16 %v96
    %v421 = vunpack.c.l.b16 %v97
    %v422 = vunpack.c.l.b16 %v98
    %v423 = vunpack.c.l.b16 %v99
    %v424 = vunpack.c.l.b16 %v100
    %v425 = vunpack.c.l.b16 %v101
    %v426 = vpack.c.b16 %v411, %v410
    %v427 = vpack.c.b16 %v413, %v412
    %v428 = vpack.c.b16 %v415, %v414
    %v429 = vpack.c.b16 %v417, %v416
    %v430 = vpack.c.b16 %v419, %v418
    %v431 = vpack.c.b16 %v421, %v420
    %v432 = vpack.c.b16 %v423, %v422
    %v433 = vpack.c.b16 %v425, %v424
    %442 = vmatprep.subr.bf16.mxu0 0
    %443 = vmatpush1.bf16.msra.mxu0 %v426
    %444 = vmatprep.subr.bf16.mxu0 0
    %445 = vmatpush1.bf16.msra.mxu0 %v427
    %446 = vmatprep.subr.bf16.mxu0 0
    %447 = vmatpush1.bf16.msra.mxu0 %v428
    %448 = vmatprep.subr.bf16.mxu0 0
    %449 = vmatpush1.bf16.msra.mxu0 %v429
    %450 = vmatprep.subr.bf16.mxu0 0
    %451 = vmatpush1.bf16.msra.mxu0 %v430
    %452 = vmatprep.subr.bf16.mxu0 0
    %453 = vmatpush1.bf16.msra.mxu0 %v431
    %454 = vmatprep.subr.bf16.mxu0 0
    %455 = vmatpush1.bf16.msra.mxu0 %v432
    %456 = vmatprep.subr.bf16.mxu0 0
    %457 = vmatpush1.bf16.msra.mxu0 %v433
    %458 = vmatprep.subr.bf16.mxu0 0
    %459 = vmatpush1.bf16.msra.mxu0 0
    %460 = vmatprep.subr.bf16.mxu0 0
    %461 = vmatpush1.bf16.msra.mxu0 0
    %462 = vmatprep.subr.bf16.mxu0 0
    %463 = vmatpush1.bf16.msra.mxu0 0
    %464 = vmatprep.subr.bf16.mxu0 0
    %465 = vmatpush1.bf16.msra.mxu0 0
    %466 = vmatprep.subr.bf16.mxu0 0
    %467 = vmatpush1.bf16.msra.mxu0 0
    %468 = vmatprep.subr.bf16.mxu0 0
    %469 = vmatpush1.bf16.msra.mxu0 0
    %470 = vmatprep.subr.bf16.mxu0 0
    %471 = vmatpush1.bf16.msra.mxu0 0
    %472 = vmatprep.subr.bf16.mxu0 0
    %473 = vmatpush1.bf16.msra.mxu0 0
    %474 = vmatprep.mubr.bf16.mxu0 0
    %475 = vmatmul.mubr.bf16.gmra.mrb[0].mxu0 %v370
    %v476 = vpop.f32.mrb[0].mxu0
    %v477 = vadd.f32 %v274, %v476
    %v478 = vpop.f32.mrb[0].mxu0
    %v479 = vpop.f32.mrb[0].mxu0
    %v480 = vadd.f32 %v277, %v479
    %v481 = vpop.f32.mrb[0].mxu0
    %482 = vmatprep.mubr.bf16.mxu0 0
    %483 = vmatmul.mubr.bf16.gmra.mrb[0].mxu0 %v371
    %v484 = vpop.f32.mrb[0].mxu0
    %v485 = vadd.f32 %v282, %v484
    %v486 = vpop.f32.mrb[0].mxu0
    %v487 = vpop.f32.mrb[0].mxu0
    %v488 = vadd.f32 %v285, %v487
    %v489 = vpop.f32.mrb[0].mxu0
    %490 = vmatprep.mubr.bf16.mxu0 0
    %491 = vmatmul.mubr.bf16.gmra.mrb[0].mxu0 %v372
    %v492 = vpop.f32.mrb[0].mxu0
    %v493 = vadd.f32 %v290, %v492
    %v494 = vpop.f32.mrb[0].mxu0
    %v495 = vpop.f32.mrb[0].mxu0
    %v496 = vadd.f32 %v293, %v495
    %v497 = vpop.f32.mrb[0].mxu0
    %498 = vmatprep.mubr.bf16.mxu0 0
    %499 = vmatmul.mubr.bf16.gmra.mrb[0].mxu0 %v373
    %v500 = vpop.f32.mrb[0].mxu0
    %v501 = vadd.f32 %v298, %v500
    %v502 = vpop.f32.mrb[0].mxu0
    %v503 = vpop.f32.mrb[0].mxu0
    %v504 = vadd.f32 %v301, %v503
    %v505 = vpop.f32.mrb[0].mxu0
    %506 = vmatprep.mubr.bf16.mxu0 0
    %507 = vmatmul.mubr.bf16.gmra.mrb[0].mxu0 %v374
    %v508 = vpop.f32.mrb[0].mxu0
    %v509 = vadd.f32 %v306, %v508
    %v510 = vpop.f32.mrb[0].mxu0
    %v511 = vpop.f32.mrb[0].mxu0
    %v512 = vadd.f32 %v309, %v511
    %v513 = vpop.f32.mrb[0].mxu0
    %514 = vmatprep.mubr.bf16.mxu0 0
    %515 = vmatmul.mubr.bf16.gmra.mrb[0].mxu0 %v375
    %v516 = vpop.f32.mrb[0].mxu0
    %v517 = vadd.f32 %v314, %v516
    %v518 = vpop.f32.mrb[0].mxu0
    %v519 = vpop.f32.mrb[0].mxu0
    %v520 = vadd.f32 %v317, %v519
    %v521 = vpop.f32.mrb[0].mxu0
    %522 = vmatprep.mubr.bf16.mxu0 0
    %523 = vmatmul.mubr.bf16.gmra.mrb[0].mxu0 %v376
    %v524 = vpop.f32.mrb[0].mxu0
    %v525 = vadd.f32 %v322, %v524
    %v526 = vpop.f32.mrb[0].mxu0
    %v527 = vpop.f32.mrb[0].mxu0
    %v528 = vadd.f32 %v325, %v527
    %v529 = vpop.f32.mrb[0].mxu0
    %530 = vmatprep.mubr.bf16.mxu0 0
    %531 = vmatmul.mubr.bf16.gmra.mrb[0].mxu0 %v377
    %v532 = vpop.f32.mrb[0].mxu0
    %v533 = vadd.f32 %v330, %v532
    %v534 = vpop.f32.mrb[0].mxu0
    %v535 = vpop.f32.mrb[0].mxu0
    %v536 = vadd.f32 %v333, %v535
    %v537 = vpop.f32.mrb[0].mxu0
    %538 = vmatprep.mubr.bf16.mxu0 0
    %539 = vmatmul.mubr.bf16.gmra.mrb[0].mxu0 %v378
    %v540 = vpop.f32.mrb[0].mxu0
    %v541 = vadd.f32 %v338, %v540
    %v542 = vpop.f32.mrb[0].mxu0
    %v543 = vpop.f32.mrb[0].mxu0
    %v544 = vadd.f32 %v341, %v543
    %v545 = vpop.f32.mrb[0].mxu0
    %546 = vmatprep.mubr.bf16.mxu0 0
    %547 = vmatmul.mubr.bf16.gmra.mrb[0].mxu0 %v379
    %v548 = vpop.f32.mrb[0].mxu0
    %v549 = vadd.f32 %v346, %v548
    %v550 = vpop.f32.mrb[0].mxu0
    %v551 = vpop.f32.mrb[0].mxu0
    %v552 = vadd.f32 %v349, %v551
    %v553 = vpop.f32.mrb[0].mxu0
    %554 = vmatprep.mubr.bf16.mxu0 0
    %555 = vmatmul.mubr.bf16.gmra.mrb[0].mxu0 %v380
    %v556 = vpop.f32.mrb[0].mxu0
    %v557 = vadd.f32 %v354, %v556
    %v558 = vpop.f32.mrb[0].mxu0
    %v559 = vpop.f32.mrb[0].mxu0
    %v560 = vadd.f32 %v357, %v559
    %v561 = vpop.f32.mrb[0].mxu0
    %562 = vmatprep.mubr.bf16.mxu0 0
    %563 = vmatmul.mubr.bf16.gmra.mrb[0].mxu0 %v381
    %v564 = vpop.f32.mrb[0].mxu0
    %v565 = vadd.f32 %v362, %v564
    %v566 = vpop.f32.mrb[0].mxu0
    %v567 = vpop.f32.mrb[0].mxu0
    %v568 = vadd.f32 %v365, %v567
    %v569 = vpop.f32.mrb[0].mxu0
    %570 = vdwg.mxu0
    %s571 = scalar_lea.vmem [#allocation4], 128
    %v572 = vld [vmem:[%s571] sm:$0xf]
    %v573 = vld [vmem:[%s571 + $0x4] sm:$0xf]
    %v574 = vld [vmem:[%s571 + $0x8] sm:$0xf]
    %v575 = vld [vmem:[%s571 + $0xc] sm:$0xf]
    %v576 = vld [vmem:[%s571 + $0x10] sm:$0xf]
    %v577 = vld [vmem:[%s571 + $0x14] sm:$0xf]
    %v578 = vld [vmem:[%s571 + $0x18] sm:$0xf]
    %v579 = vld [vmem:[%s571 + $0x1c] sm:$0xf]
    %v580 = vld [vmem:[%s571 + $0x20] sm:$0xf]
    %v581 = vld [vmem:[%s571 + $0x24] sm:$0xf]
    %v582 = vld [vmem:[%s571 + $0x28] sm:$0xf]
    %v583 = vld [vmem:[%s571 + $0x2c] sm:$0xf]
    %v584 = vld [vmem:[%s571 + $0x30] sm:$0xf]
    %v585 = vld [vmem:[%s571 + $0x34] sm:$0xf]
    %v586 = vld [vmem:[%s571 + $0x38] sm:$0xf]
    %v587 = vld [vmem:[%s571 + $0x3c] sm:$0xf]
    %v589 = vunpack.c.l.b16 %v85
    %v590 = vpack.c.b16 %v589, %v166
    %v608 = vunpack.c.l.b16 %v572
    %v609 = vunpack.c.l.b16 %v573
    %v610 = vunpack.c.l.b16 %v574
    %v611 = vunpack.c.l.b16 %v575
    %v612 = vunpack.c.l.b16 %v576
    %v613 = vunpack.c.l.b16 %v577
    %v614 = vunpack.c.l.b16 %v578
    %v615 = vunpack.c.l.b16 %v579
    %v616 = vunpack.c.l.b16 %v580
    %v617 = vunpack.c.l.b16 %v581
    %v618 = vunpack.c.l.b16 %v582
    %v619 = vunpack.c.l.b16 %v583
    %v620 = vunpack.c.l.b16 %v584
    %v621 = vunpack.c.l.b16 %v585
    %v622 = vunpack.c.l.b16 %v586
    %v623 = vunpack.c.l.b16 %v587
    %v624 = vpack.c.b16 %v609, %v608
    %v625 = vpack.c.b16 %v611, %v610
    %v626 = vpack.c.b16 %v613, %v612
    %v627 = vpack.c.b16 %v615, %v614
    %v628 = vpack.c.b16 %v617, %v616
    %v629 = vpack.c.b16 %v619, %v618
    %v630 = vpack.c.b16 %v621, %v620
    %v631 = vpack.c.b16 %v623, %v622
    %640 = vmatprep.subr.bf16.mxu0 0
    %641 = vmatpush1.bf16.msra.mxu0 %v624
    %642 = vmatprep.subr.bf16.mxu0 0
    %643 = vmatpush1.bf16.msra.mxu0 %v625
    %644 = vmatprep.subr.bf16.mxu0 0
    %645 = vmatpush1.bf16.msra.mxu0 %v626
    %646 = vmatprep.subr.bf16.mxu0 0
    %647 = vmatpush1.bf16.msra.mxu0 %v627
    %648 = vmatprep.subr.bf16.mxu0 0
    %649 = vmatpush1.bf16.msra.mxu0 %v628
    %650 = vmatprep.subr.bf16.mxu0 0
    %651 = vmatpush1.bf16.msra.mxu0 %v629
    %652 = vmatprep.subr.bf16.mxu0 0
    %653 = vmatpush1.bf16.msra.mxu0 %v630
    %654 = vmatprep.subr.bf16.mxu0 0
    %655 = vmatpush1.bf16.msra.mxu0 %v631
    %656 = vmatprep.subr.bf16.mxu0 0
    %657 = vmatpush1.bf16.msra.mxu0 0
    %658 = vmatprep.subr.bf16.mxu0 0
    %659 = vmatpush1.bf16.msra.mxu0 0
    %660 = vmatprep.subr.bf16.mxu0 0
    %661 = vmatpush1.bf16.msra.mxu0 0
    %662 = vmatprep.subr.bf16.mxu0 0
    %663 = vmatpush1.bf16.msra.mxu0 0
    %664 = vmatprep.subr.bf16.mxu0 0
    %665 = vmatpush1.bf16.msra.mxu0 0
    %666 = vmatprep.subr.bf16.mxu0 0
    %667 = vmatpush1.bf16.msra.mxu0 0
    %668 = vmatprep.subr.bf16.mxu0 0
    %669 = vmatpush1.bf16.msra.mxu0 0
    %670 = vmatprep.subr.bf16.mxu0 0
    %671 = vmatpush1.bf16.msra.mxu0 0
    %672 = vmatprep.mubr.bf16.mxu0 0
    %673 = vmatmul.mubr.bf16.gmra.mrb[0].mxu0 %v371
    %v674 = vpop.f32.mrb[0].mxu0
    %v675 = vadd.f32 0.0, %v674
    %v676 = vpop.f32.mrb[0].mxu0
    %v677 = vpop.f32.mrb[0].mxu0
    %v678 = vadd.f32 0.0, %v677
    %v679 = vpop.f32.mrb[0].mxu0
    %680 = vmatprep.mubr.bf16.mxu0 0
    %681 = vmatmul.mubr.bf16.gmra.mrb[0].mxu0 %v372
    %v682 = vpop.f32.mrb[0].mxu0
    %v683 = vadd.f32 0.0, %v682
    %v684 = vpop.f32.mrb[0].mxu0
    %v685 = vpop.f32.mrb[0].mxu0
    %v686 = vadd.f32 0.0, %v685
    %v687 = vpop.f32.mrb[0].mxu0
    %688 = vmatprep.mubr.bf16.mxu0 0
    %689 = vmatmul.mubr.bf16.gmra.mrb[0].mxu0 %v373
    %v690 = vpop.f32.mrb[0].mxu0
    %v691 = vadd.f32 0.0, %v690
    %v692 = vpop.f32.mrb[0].mxu0
    %v693 = vpop.f32.mrb[0].mxu0
    %v694 = vadd.f32 0.0, %v693
    %v695 = vpop.f32.mrb[0].mxu0
    %696 = vmatprep.mubr.bf16.mxu0 0
    %697 = vmatmul.mubr.bf16.gmra.mrb[0].mxu0 %v374
    %v698 = vpop.f32.mrb[0].mxu0
    %v699 = vadd.f32 0.0, %v698
    %v700 = vpop.f32.mrb[0].mxu0
    %v701 = vpop.f32.mrb[0].mxu0
    %v702 = vadd.f32 0.0, %v701
    %v703 = vpop.f32.mrb[0].mxu0
    %704 = vmatprep.mubr.bf16.mxu0 0
    %705 = vmatmul.mubr.bf16.gmra.mrb[0].mxu0 %v375
    %v706 = vpop.f32.mrb[0].mxu0
    %v707 = vadd.f32 0.0, %v706
    %v708 = vpop.f32.mrb[0].mxu0
    %v709 = vpop.f32.mrb[0].mxu0
    %v710 = vadd.f32 0.0, %v709
    %v711 = vpop.f32.mrb[0].mxu0
    %712 = vmatprep.mubr.bf16.mxu0 0
    %713 = vmatmul.mubr.bf16.gmra.mrb[0].mxu0 %v376
    %v714 = vpop.f32.mrb[0].mxu0
    %v715 = vadd.f32 0.0, %v714
    %v716 = vpop.f32.mrb[0].mxu0
    %v717 = vpop.f32.mrb[0].mxu0
    %v718 = vadd.f32 0.0, %v717
    %v719 = vpop.f32.mrb[0].mxu0
    %720 = vmatprep.mubr.bf16.mxu0 0
    %721 = vmatmul.mubr.bf16.gmra.mrb[0].mxu0 %v377
    %v722 = vpop.f32.mrb[0].mxu0
    %v723 = vadd.f32 0.0, %v722
    %v724 = vpop.f32.mrb[0].mxu0
    %v725 = vpop.f32.mrb[0].mxu0
    %v726 = vadd.f32 0.0, %v725
    %v727 = vpop.f32.mrb[0].mxu0
    %728 = vmatprep.mubr.bf16.mxu0 0
    %729 = vmatmul.mubr.bf16.gmra.mrb[0].mxu0 %v378
    %v730 = vpop.f32.mrb[0].mxu0
    %v731 = vadd.f32 0.0, %v730
    %v732 = vpop.f32.mrb[0].mxu0
    %v733 = vpop.f32.mrb[0].mxu0
    %v734 = vadd.f32 0.0, %v733
    %v735 = vpop.f32.mrb[0].mxu0
    %736 = vmatprep.mubr.bf16.mxu0 0
    %737 = vmatmul.mubr.bf16.gmra.mrb[0].mxu0 %v379
    %v738 = vpop.f32.mrb[0].mxu0
    %v739 = vadd.f32 0.0, %v738
    %v740 = vpop.f32.mrb[0].mxu0
    %v741 = vpop.f32.mrb[0].mxu0
    %v742 = vadd.f32 0.0, %v741
    %v743 = vpop.f32.mrb[0].mxu0
    %744 = vmatprep.mubr.bf16.mxu0 0
    %745 = vmatmul.mubr.bf16.gmra.mrb[0].mxu0 %v380
    %v746 = vpop.f32.mrb[0].mxu0
    %v747 = vadd.f32 0.0, %v746
    %v748 = vpop.f32.mrb[0].mxu0
    %v749 = vpop.f32.mrb[0].mxu0
    %v750 = vadd.f32 0.0, %v749
    %v751 = vpop.f32.mrb[0].mxu0
    %752 = vmatprep.mubr.bf16.mxu0 0
    %753 = vmatmul.mubr.bf16.gmra.mrb[0].mxu0 %v381
    %v754 = vpop.f32.mrb[0].mxu0
    %v755 = vadd.f32 0.0, %v754
    %v756 = vpop.f32.mrb[0].mxu0
    %v757 = vpop.f32.mrb[0].mxu0
    %v758 = vadd.f32 0.0, %v757
    %v759 = vpop.f32.mrb[0].mxu0
    %760 = vmatprep.mubr.bf16.mxu0 0
    %761 = vmatmul.mubr.bf16.gmra.mrb[0].mxu0 %v590
    %v762 = vpop.f32.mrb[0].mxu0
    %v763 = vadd.f32 0.0, %v762
    %v764 = vpop.f32.mrb[0].mxu0
    %v765 = vpop.f32.mrb[0].mxu0
    %v766 = vadd.f32 0.0, %v765
    %v767 = vpop.f32.mrb[0].mxu0
    %768 = vdwg.mxu0
    %v769 = vadd.f32 %v477, %v675
    %v770 = vadd.f32 %v480, %v678
    %v771 = vadd.f32 %v485, %v683
    %v772 = vadd.f32 %v488, %v686
    %v773 = vadd.f32 %v493, %v691
    %v774 = vadd.f32 %v496, %v694
    %v775 = vadd.f32 %v501, %v699
    %v776 = vadd.f32 %v504, %v702
    %v777 = vadd.f32 %v509, %v707
    %v778 = vadd.f32 %v512, %v710
    %v779 = vadd.f32 %v517, %v715
    %v780 = vadd.f32 %v520, %v718
    %v781 = vadd.f32 %v525, %v723
    %v782 = vadd.f32 %v528, %v726
    %v783 = vadd.f32 %v533, %v731
    %v784 = vadd.f32 %v536, %v734
    %v785 = vadd.f32 %v541, %v739
    %v786 = vadd.f32 %v544, %v742
    %v787 = vadd.f32 %v549, %v747
    %v788 = vadd.f32 %v552, %v750
    %v789 = vadd.f32 %v557, %v755
    %v790 = vadd.f32 %v560, %v758
    %v791 = vadd.f32 %v565, %v763
    %v792 = vadd.f32 %v568, %v766
    %v793 = vld [vmem:[%s2] sm:$0x1]
    %v795 = vlaneseq
    %v796 = vshrl.u32 %v795, 7
    %v797 = vsub.s32 0, %v796
    %v798 = vrot.slane %v793, %v797
    %v800 = vadd.f32 %v769, %v798
    %v801 = vadd.f32 %v770, %v798
    %v802 = vadd.f32 %v771, %v798
    %v803 = vadd.f32 %v772, %v798
    %v804 = vadd.f32 %v773, %v798
    %v805 = vadd.f32 %v774, %v798
    %v806 = vadd.f32 %v775, %v798
    %v807 = vadd.f32 %v776, %v798
    %v808 = vadd.f32 %v777, %v798
    %v809 = vadd.f32 %v778, %v798
    %v810 = vadd.f32 %v779, %v798
    %v811 = vadd.f32 %v780, %v798
    %v812 = vadd.f32 %v781, %v798
    %v813 = vadd.f32 %v782, %v798
    %v814 = vadd.f32 %v783, %v798
    %v815 = vadd.f32 %v784, %v798
    %v816 = vadd.f32 %v785, %v798
    %v817 = vadd.f32 %v786, %v798
    %v818 = vadd.f32 %v787, %v798
    %v819 = vadd.f32 %v788, %v798
    %v820 = vadd.f32 %v789, %v798
    %v821 = vadd.f32 %v790, %v798
    %v822 = vadd.f32 %v791, %v798
    %v823 = vadd.f32 %v792, %v798
    %v824 = vmax.f32 %v800, 0.0
    %v825 = vmax.f32 %v801, 0.0
    %v826 = vmax.f32 %v802, 0.0
    %v827 = vmax.f32 %v803, 0.0
    %v828 = vmax.f32 %v804, 0.0
    %v829 = vmax.f32 %v805, 0.0
    %v830 = vmax.f32 %v806, 0.0
    %v831 = vmax.f32 %v807, 0.0
    %v832 = vmax.f32 %v808, 0.0
    %v833 = vmax.f32 %v809, 0.0
    %v834 = vmax.f32 %v810, 0.0
    %v835 = vmax.f32 %v811, 0.0
    %v836 = vmax.f32 %v812, 0.0
    %v837 = vmax.f32 %v813, 0.0
    %v838 = vmax.f32 %v814, 0.0
    %v839 = vmax.f32 %v815, 0.0
    %v840 = vmax.f32 %v816, 0.0
    %v841 = vmax.f32 %v817, 0.0
    %v842 = vmax.f32 %v818, 0.0
    %v843 = vmax.f32 %v819, 0.0
    %v844 = vmax.f32 %v820, 0.0
    %v845 = vmax.f32 %v821, 0.0
    %v846 = vmax.f32 %v822, 0.0
    %v847 = vmax.f32 %v823, 0.0
    %v848 = vmax.f32 %v824, %v825
    %v849 = vmax.f32 %v848, %v826
    %v850 = vmax.f32 %v827, %v828
    %v851 = vmax.f32 %v850, %v829
    %v852 = vmax.f32 %v830, %v831
    %v853 = vmax.f32 %v852, %v832
    %v854 = vmax.f32 %v833, %v834
    %v855 = vmax.f32 %v854, %v835
    %v856 = vmax.f32 %v836, %v837
    %v857 = vmax.f32 %v856, %v838
    %v858 = vmax.f32 %v839, %v840
    %v859 = vmax.f32 %v858, %v841
    %v860 = vmax.f32 %v842, %v843
    %v861 = vmax.f32 %v860, %v844
    %v862 = vmax.f32 %v845, %v846
    %v863 = vmax.f32 %v862, %v847
    %v864 = vpack.c.bf16 %v851, %v849
    %v865 = vpack.c.bf16 %v855, %v853
    %v866 = vpack.c.bf16 %v859, %v857
    %v867 = vpack.c.bf16 %v863, %v861
    %v868 = vld [vmem:[%s3] sm:$0xff]
    %v869 = vld [vmem:[%s3 + $0x8] sm:$0xff]
    %v870 = vld [vmem:[%s3 + $0x10] sm:$0xff]
    %v871 = vld [vmem:[%s3 + $0x18] sm:$0xff]
    %v872 = vld [vmem:[%s3 + $0x20] sm:$0xff]
    %v873 = vld [vmem:[%s3 + $0x28] sm:$0xff]
    %v874 = vld [vmem:[%s3 + $0x30] sm:$0xff]
    %v875 = vld [vmem:[%s3 + $0x38] sm:$0xff]
    %v876 = vld [vmem:[%s3 + $0x40] sm:$0xff]
    %v877 = vld [vmem:[%s3 + $0x48] sm:$0xff]
    %v878 = vld [vmem:[%s3 + $0x50] sm:$0xff]
    %v879 = vld [vmem:[%s3 + $0x58] sm:$0xff]
    %v880 = vld [vmem:[%s3 + $0x60] sm:$0xff]
    %v881 = vld [vmem:[%s3 + $0x68] sm:$0xff]
    %v882 = vld [vmem:[%s3 + $0x70] sm:$0xff]
    %v883 = vld [vmem:[%s3 + $0x78] sm:$0xff]
    %v884 = vld [vmem:[%s3 + $0x80] sm:$0xff]
    %v885 = vld [vmem:[%s3 + $0x88] sm:$0xff]
    %v886 = vld [vmem:[%s3 + $0x90] sm:$0xff]
    %v887 = vld [vmem:[%s3 + $0x98] sm:$0xff]
    %v888 = vld [vmem:[%s3 + $0xa0] sm:$0xff]
    %v889 = vld [vmem:[%s3 + $0xa8] sm:$0xff]
    %v890 = vld [vmem:[%s3 + $0xb0] sm:$0xff]
    %v891 = vld [vmem:[%s3 + $0xb8] sm:$0xff]
    %v892 = vld [vmem:[%s3 + $0xc0] sm:$0xff]
    %v893 = vld [vmem:[%s3 + $0xc8] sm:$0xff]
    %v894 = vld [vmem:[%s3 + $0xd0] sm:$0xff]
    %v895 = vld [vmem:[%s3 + $0xd8] sm:$0xff]
    %v896 = vld [vmem:[%s3 + $0xe0] sm:$0xff]
    %v897 = vld [vmem:[%s3 + $0xe8] sm:$0xff]
    %v898 = vld [vmem:[%s3 + $0xf0] sm:$0xff]
    %v899 = vld [vmem:[%s3 + $0xf8] sm:$0xff]
    %v900 = vld [vmem:[%s5] sm:$0xf]
    %v902 = vlaneseq
    %v903 = vshrl.u32 %v902, 7
    %v904 = vsub.s32 0, %v903
    %v905 = vrot.slane %v900, %v904
    %v906 = vlaneseq
    %v907 = vshrl.u32 %v906, 7
    %v908 = vsub.s32 1, %v907
    %v909 = vrot.slane %v900, %v908
    %v910 = vlaneseq
    %v911 = vshrl.u32 %v910, 7
    %v912 = vsub.s32 2, %v911
    %v913 = vrot.slane %v900, %v912
    %v914 = vlaneseq
    %v915 = vshrl.u32 %v914, 7
    %v916 = vsub.s32 3, %v915
    %v917 = vrot.slane %v900, %v916
    %v954 = vunpack.c.l.b16 %v868
    %v955 = vunpack.c.h.b16 %v868
    %v956 = vunpack.c.l.b16 %v869
    %v957 = vunpack.c.h.b16 %v869
    %v958 = vunpack.c.l.b16 %v870
    %v959 = vunpack.c.h.b16 %v870
    %v960 = vunpack.c.l.b16 %v871
    %v961 = vunpack.c.h.b16 %v871
    %v962 = vunpack.c.l.b16 %v872
    %v963 = vunpack.c.h.b16 %v872
    %v964 = vunpack.c.l.b16 %v873
    %v965 = vunpack.c.h.b16 %v873
    %v966 = vunpack.c.l.b16 %v874
    %v967 = vunpack.c.h.b16 %v874
    %v968 = vunpack.c.l.b16 %v875
    %v969 = vunpack.c.h.b16 %v875
    %v970 = vunpack.c.l.b16 %v876
    %v971 = vunpack.c.h.b16 %v876
    %v972 = vunpack.c.l.b16 %v877
    %v973 = vunpack.c.h.b16 %v877
    %v974 = vunpack.c.l.b16 %v878
    %v975 = vunpack.c.h.b16 %v878
    %v976 = vunpack.c.l.b16 %v879
    %v977 = vunpack.c.h.b16 %v879
    %v978 = vunpack.c.l.b16 %v880
    %v979 = vunpack.c.h.b16 %v880
    %v980 = vunpack.c.l.b16 %v881
    %v981 = vunpack.c.h.b16 %v881
    %v982 = vunpack.c.l.b16 %v882
    %v983 = vunpack.c.h.b16 %v882
    %v984 = vunpack.c.l.b16 %v883
    %v985 = vunpack.c.h.b16 %v883
    %v986 = vunpack.c.l.b16 %v884
    %v987 = vunpack.c.h.b16 %v884
    %v988 = vunpack.c.l.b16 %v885
    %v989 = vunpack.c.h.b16 %v885
    %v990 = vunpack.c.l.b16 %v886
    %v991 = vunpack.c.h.b16 %v886
    %v992 = vunpack.c.l.b16 %v887
    %v993 = vunpack.c.h.b16 %v887
    %v994 = vunpack.c.l.b16 %v888
    %v995 = vunpack.c.h.b16 %v888
    %v996 = vunpack.c.l.b16 %v889
    %v997 = vunpack.c.h.b16 %v889
    %v998 = vunpack.c.l.b16 %v890
    %v999 = vunpack.c.h.b16 %v890
    %v1000 = vunpack.c.l.b16 %v891
    %v1001 = vunpack.c.h.b16 %v891
    %v1002 = vunpack.c.l.b16 %v892
    %v1003 = vunpack.c.h.b16 %v892
    %v1004 = vunpack.c.l.b16 %v893
    %v1005 = vunpack.c.h.b16 %v893
    %v1006 = vunpack.c.l.b16 %v894
    %v1007 = vunpack.c.h.b16 %v894
    %v1008 = vunpack.c.l.b16 %v895
    %v1009 = vunpack.c.h.b16 %v895
    %v1010 = vunpack.c.l.b16 %v896
    %v1011 = vunpack.c.h.b16 %v896
    %v1012 = vunpack.c.l.b16 %v897
    %v1013 = vunpack.c.h.b16 %v897
    %v1014 = vunpack.c.l.b16 %v898
    %v1015 = vunpack.c.h.b16 %v898
    %v1016 = vunpack.c.l.b16 %v899
    %v1017 = vunpack.c.h.b16 %v899
    %v1018 = vpack.c.b16 %v958, %v954
    %v1019 = vpack.c.b16 %v959, %v955
    %v1020 = vpack.c.b16 %v960, %v956
    %v1021 = vpack.c.b16 %v961, %v957
    %v1022 = vpack.c.b16 %v966, %v962
    %v1023 = vpack.c.b16 %v967, %v963
    %v1024 = vpack.c.b16 %v968, %v964
    %v1025 = vpack.c.b16 %v969, %v965
    %v1026 = vpack.c.b16 %v974, %v970
    %v1027 = vpack.c.b16 %v975, %v971
    %v1028 = vpack.c.b16 %v976, %v972
    %v1029 = vpack.c.b16 %v977, %v973
    %v1030 = vpack.c.b16 %v982, %v978
    %v1031 = vpack.c.b16 %v983, %v979
    %v1032 = vpack.c.b16 %v984, %v980
    %v1033 = vpack.c.b16 %v985, %v981
    %v1034 = vpack.c.b16 %v990, %v986
    %v1035 = vpack.c.b16 %v991, %v987
    %v1036 = vpack.c.b16 %v992, %v988
    %v1037 = vpack.c.b16 %v993, %v989
    %v1038 = vpack.c.b16 %v998, %v994
    %v1039 = vpack.c.b16 %v999, %v995
    %v1040 = vpack.c.b16 %v1000, %v996
    %v1041 = vpack.c.b16 %v1001, %v997
    %v1042 = vpack.c.b16 %v1006, %v1002
    %v1043 = vpack.c.b16 %v1007, %v1003
    %v1044 = vpack.c.b16 %v1008, %v1004
    %v1045 = vpack.c.b16 %v1009, %v1005
    %v1046 = vpack.c.b16 %v1014, %v1010
    %v1047 = vpack.c.b16 %v1015, %v1011
    %v1048 = vpack.c.b16 %v1016, %v1012
    %v1049 = vpack.c.b16 %v1017, %v1013
    %1082 = vmatprep.subr.bf16.mxu0 %v1019
    %1083 = vmatpush1.bf16.msra.mxu0 %v1018
    %1084 = vmatprep.subr.bf16.mxu0 %v1023
    %1085 = vmatpush1.bf16.msra.mxu0 %v1022
    %1086 = vmatprep.subr.bf16.mxu0 %v1027
    %1087 = vmatpush1.bf16.msra.mxu0 %v1026
    %1088 = vmatprep.subr.bf16.mxu0 %v1031
    %1089 = vmatpush1.bf16.msra.mxu0 %v1030
    %1090 = vmatprep.subr.bf16.mxu0 %v1035
    %1091 = vmatpush1.bf16.msra.mxu0 %v1034
    %1092 = vmatprep.subr.bf16.mxu0 %v1039
    %1093 = vmatpush1.bf16.msra.mxu0 %v1038
    %1094 = vmatprep.subr.bf16.mxu0 %v1043
    %1095 = vmatpush1.bf16.msra.mxu0 %v1042
    %1096 = vmatprep.subr.bf16.mxu0 %v1047
    %1097 = vmatpush1.bf16.msra.mxu0 %v1046
    %1098 = vmatprep.subr.bf16.mxu0 0
    %1099 = vmatpush1.bf16.msra.mxu0 0
    %1100 = vmatprep.subr.bf16.mxu0 0
    %1101 = vmatpush1.bf16.msra.mxu0 0
    %1102 = vmatprep.subr.bf16.mxu0 0
    %1103 = vmatpush1.bf16.msra.mxu0 0
    %1104 = vmatprep.subr.bf16.mxu0 0
    %1105 = vmatpush1.bf16.msra.mxu0 0
    %1106 = vmatprep.subr.bf16.mxu0 0
    %1107 = vmatpush1.bf16.msra.mxu0 0
    %1108 = vmatprep.subr.bf16.mxu0 0
    %1109 = vmatpush1.bf16.msra.mxu0 0
    %1110 = vmatprep.subr.bf16.mxu0 0
    %1111 = vmatpush1.bf16.msra.mxu0 0
    %1112 = vmatprep.subr.bf16.mxu0 0
    %1113 = vmatpush1.bf16.msra.mxu0 0
    %1114 = vmatprep.mubr.bf16.mxu0 0
    %1115 = vmatmul.mubr.bf16.gmra.mrb[0].mxu0 %v864
    %v1116 = vpop.f32.mrb[0].mxu0
    %v1117 = vadd.f32 %v905, %v1116
    %v1118 = vpop.f32.mrb[0].mxu0
    %v1119 = vadd.f32 %v909, %v1118
    %v1120 = vpop.f32.mrb[0].mxu0
    %v1121 = vadd.f32 %v905, %v1120
    %v1122 = vpop.f32.mrb[0].mxu0
    %v1123 = vadd.f32 %v909, %v1122
    %1124 = vmatprep.mubr.bf16.mxu0 0
    %1125 = vmatmul.mubr.bf16.gmra.mrb[0].mxu0 %v865
    %v1126 = vpop.f32.mrb[0].mxu0
    %v1127 = vadd.f32 %v905, %v1126
    %v1128 = vpop.f32.mrb[0].mxu0
    %v1129 = vadd.f32 %v909, %v1128
    %v1130 = vpop.f32.mrb[0].mxu0
    %v1131 = vadd.f32 %v905, %v1130
    %v1132 = vpop.f32.mrb[0].mxu0
    %v1133 = vadd.f32 %v909, %v1132
    %1134 = vmatprep.mubr.bf16.mxu0 0
    %1135 = vmatmul.mubr.bf16.gmra.mrb[0].mxu0 %v866
    %v1136 = vpop.f32.mrb[0].mxu0
    %v1137 = vadd.f32 %v905, %v1136
    %v1138 = vpop.f32.mrb[0].mxu0
    %v1139 = vadd.f32 %v909, %v1138
    %v1140 = vpop.f32.mrb[0].mxu0
    %v1141 = vadd.f32 %v905, %v1140
    %v1142 = vpop.f32.mrb[0].mxu0
    %v1143 = vadd.f32 %v909, %v1142
    %1144 = vmatprep.mubr.bf16.mxu0 0
    %1145 = vmatmul.mubr.bf16.gmra.mrb[0].mxu0 %v867
    %v1146 = vpop.f32.mrb[0].mxu0
    %v1147 = vadd.f32 %v905, %v1146
    %v1148 = vpop.f32.mrb[0].mxu0
    %v1149 = vadd.f32 %v909, %v1148
    %v1150 = vpop.f32.mrb[0].mxu0
    %v1151 = vadd.f32 %v905, %v1150
    %v1152 = vpop.f32.mrb[0].mxu0
    %v1153 = vadd.f32 %v909, %v1152
    %1154 = vdwg.mxu0
    %1155 = vmatprep.subr.bf16.mxu0 %v1021
    %1156 = vmatpush1.bf16.msra.mxu0 %v1020
    %1157 = vmatprep.subr.bf16.mxu0 %v1025
    %1158 = vmatpush1.bf16.msra.mxu0 %v1024
    %1159 = vmatprep.subr.bf16.mxu0 %v1029
    %1160 = vmatpush1.bf16.msra.mxu0 %v1028
    %1161 = vmatprep.subr.bf16.mxu0 %v1033
    %1162 = vmatpush1.bf16.msra.mxu0 %v1032
    %1163 = vmatprep.subr.bf16.mxu0 %v1037
    %1164 = vmatpush1.bf16.msra.mxu0 %v1036
    %1165 = vmatprep.subr.bf16.mxu0 %v1041
    %1166 = vmatpush1.bf16.msra.mxu0 %v1040
    %1167 = vmatprep.subr.bf16.mxu0 %v1045
    %1168 = vmatpush1.bf16.msra.mxu0 %v1044
    %1169 = vmatprep.subr.bf16.mxu0 %v1049
    %1170 = vmatpush1.bf16.msra.mxu0 %v1048
    %1171 = vmatprep.subr.bf16.mxu0 0
    %1172 = vmatpush1.bf16.msra.mxu0 0
    %1173 = vmatprep.subr.bf16.mxu0 0
    %1174 = vmatpush1.bf16.msra.mxu0 0
    %1175 = vmatprep.subr.bf16.mxu0 0
    %1176 = vmatpush1.bf16.msra.mxu0 0
    %1177 = vmatprep.subr.bf16.mxu0 0
    %1178 = vmatpush1.bf16.msra.mxu0 0
    %1179 = vmatprep.subr.bf16.mxu0 0
    %1180 = vmatpush1.bf16.msra.mxu0 0
    %1181 = vmatprep.subr.bf16.mxu0 0
    %1182 = vmatpush1.bf16.msra.mxu0 0
    %1183 = vmatprep.subr.bf16.mxu0 0
    %1184 = vmatpush1.bf16.msra.mxu0 0
    %1185 = vmatprep.subr.bf16.mxu0 0
    %1186 = vmatpush1.bf16.msra.mxu0 0
    %1187 = vmatprep.mubr.bf16.mxu0 0
    %1188 = vmatmul.mubr.bf16.gmra.mrb[0].mxu0 %v864
    %v1189 = vpop.f32.mrb[0].mxu0
    %v1190 = vadd.f32 %v913, %v1189
    %v1191 = vpop.f32.mrb[0].mxu0
    %v1192 = vadd.f32 %v917, %v1191
    %v1193 = vpop.f32.mrb[0].mxu0
    %v1194 = vadd.f32 %v913, %v1193
    %v1195 = vpop.f32.mrb[0].mxu0
    %v1196 = vadd.f32 %v917, %v1195
    %1197 = vmatprep.mubr.bf16.mxu0 0
    %1198 = vmatmul.mubr.bf16.gmra.mrb[0].mxu0 %v865
    %v1199 = vpop.f32.mrb[0].mxu0
    %v1200 = vadd.f32 %v913, %v1199
    %v1201 = vpop.f32.mrb[0].mxu0
    %v1202 = vadd.f32 %v917, %v1201
    %v1203 = vpop.f32.mrb[0].mxu0
    %v1204 = vadd.f32 %v913, %v1203
    %v1205 = vpop.f32.mrb[0].mxu0
    %v1206 = vadd.f32 %v917, %v1205
    %1207 = vmatprep.mubr.bf16.mxu0 0
    %1208 = vmatmul.mubr.bf16.gmra.mrb[0].mxu0 %v866
    %v1209 = vpop.f32.mrb[0].mxu0
    %v1210 = vadd.f32 %v913, %v1209
    %v1211 = vpop.f32.mrb[0].mxu0
    %v1212 = vadd.f32 %v917, %v1211
    %v1213 = vpop.f32.mrb[0].mxu0
    %v1214 = vadd.f32 %v913, %v1213
    %v1215 = vpop.f32.mrb[0].mxu0
    %v1216 = vadd.f32 %v917, %v1215
    %1217 = vmatprep.mubr.bf16.mxu0 0
    %1218 = vmatmul.mubr.bf16.gmra.mrb[0].mxu0 %v867
    %v1219 = vpop.f32.mrb[0].mxu0
    %v1220 = vadd.f32 %v913, %v1219
    %v1221 = vpop.f32.mrb[0].mxu0
    %v1222 = vadd.f32 %v917, %v1221
    %v1223 = vpop.f32.mrb[0].mxu0
    %v1224 = vadd.f32 %v913, %v1223
    %v1225 = vpop.f32.mrb[0].mxu0
    %v1226 = vadd.f32 %v917, %v1225
    %1227 = vdwg.mxu0
    %1228 = vst [vmem:[#allocation2] sm:$0xff] %v1117
    %1229 = vst [vmem:[#allocation2 + $0x8] sm:$0xff] %v1119
    %1230 = vst [vmem:[#allocation2 + $0x10] sm:$0xff] %v1190
    %1231 = vst [vmem:[#allocation2 + $0x18] sm:$0xff] %v1192
    %1232 = vst [vmem:[#allocation2 + $0x20] sm:$0xff] %v1121
    %1233 = vst [vmem:[#allocation2 + $0x28] sm:$0xff] %v1123
    %1234 = vst [vmem:[#allocation2 + $0x30] sm:$0xff] %v1194
    %1235 = vst [vmem:[#allocation2 + $0x38] sm:$0xff] %v1196
    %1236 = vst [vmem:[#allocation2 + $0x40] sm:$0xff] %v1127
    %1237 = vst [vmem:[#allocation2 + $0x48] sm:$0xff] %v1129
    %1238 = vst [vmem:[#allocation2 + $0x50] sm:$0xff] %v1200
    %1239 = vst [vmem:[#allocation2 + $0x58] sm:$0xff] %v1202
    %1240 = vst [vmem:[#allocation2 + $0x60] sm:$0xff] %v1131
    %1241 = vst [vmem:[#allocation2 + $0x68] sm:$0xff] %v1133
    %1242 = vst [vmem:[#allocation2 + $0x70] sm:$0xff] %v1204
    %1243 = vst [vmem:[#allocation2 + $0x78] sm:$0xff] %v1206
    %1244 = vst [vmem:[#allocation2 + $0x80] sm:$0xff] %v1137
    %1245 = vst [vmem:[#allocation2 + $0x88] sm:$0xff] %v1139
    %1246 = vst [vmem:[#allocation2 + $0x90] sm:$0xff] %v1210
    %1247 = vst [vmem:[#allocation2 + $0x98] sm:$0xff] %v1212
    %1248 = vst [vmem:[#allocation2 + $0xa0] sm:$0xff] %v1141
    %1249 = vst [vmem:[#allocation2 + $0xa8] sm:$0xff] %v1143
    %1250 = vst [vmem:[#allocation2 + $0xb0] sm:$0xff] %v1214
    %1251 = vst [vmem:[#allocation2 + $0xb8] sm:$0xff] %v1216
    %1252 = vst [vmem:[#allocation2 + $0xc0] sm:$0xff] %v1147
    %1253 = vst [vmem:[#allocation2 + $0xc8] sm:$0xff] %v1149
    %1254 = vst [vmem:[#allocation2 + $0xd0] sm:$0xff] %v1220
    %1255 = vst [vmem:[#allocation2 + $0xd8] sm:$0xff] %v1222
    %1256 = vst [vmem:[#allocation2 + $0xe0] sm:$0xff] %v1151
    %1257 = vst [vmem:[#allocation2 + $0xe8] sm:$0xff] %v1153
    %1258 = vst [vmem:[#allocation2 + $0xf0] sm:$0xff] %v1224
    %1259 = vst [vmem:[#allocation2 + $0xf8] sm:$0xff] %v1226
    %v1260 = vld [vmem:[#allocation6] sm:$0xff]
    %v1261 = vld [vmem:[#allocation6 + $0x8] sm:$0xff]
    %v1262 = vld [vmem:[#allocation6 + $0x10] sm:$0xff]
    %v1263 = vld [vmem:[#allocation6 + $0x18] sm:$0xff]
    %v1264 = vld [vmem:[#allocation6 + $0x20] sm:$0xff]
    %v1265 = vld [vmem:[#allocation6 + $0x28] sm:$0xff]
    %v1266 = vld [vmem:[#allocation6 + $0x30] sm:$0xff]
    %v1267 = vld [vmem:[#allocation6 + $0x38] sm:$0xff]
    %v1268 = vld [vmem:[#allocation6 + $0x40] sm:$0xff]
    %v1269 = vld [vmem:[#allocation6 + $0x48] sm:$0xff]
    %v1270 = vld [vmem:[#allocation6 + $0x50] sm:$0xff]
    %v1271 = vld [vmem:[#allocation6 + $0x58] sm:$0xff]
    %v1272 = vld [vmem:[#allocation6 + $0x60] sm:$0xff]
    %v1273 = vld [vmem:[#allocation6 + $0x68] sm:$0xff]
    %v1274 = vld [vmem:[#allocation6 + $0x70] sm:$0xff]
    %v1275 = vld [vmem:[#allocation6 + $0x78] sm:$0xff]
    %v1276 = vld [vmem:[#allocation6 + $0x80] sm:$0xff]
    %v1277 = vld [vmem:[#allocation6 + $0x88] sm:$0xff]
    %v1278 = vld [vmem:[#allocation6 + $0x90] sm:$0xff]
    %v1279 = vld [vmem:[#allocation6 + $0x98] sm:$0xff]
    %v1280 = vld [vmem:[#allocation6 + $0xa0] sm:$0xff]
    %v1281 = vld [vmem:[#allocation6 + $0xa8] sm:$0xff]
    %v1282 = vld [vmem:[#allocation6 + $0xb0] sm:$0xff]
    %v1283 = vld [vmem:[#allocation6 + $0xb8] sm:$0xff]
    %v1284 = vld [vmem:[#allocation6 + $0xc0] sm:$0xff]
    %v1285 = vld [vmem:[#allocation6 + $0xc8] sm:$0xff]
    %v1286 = vld [vmem:[#allocation6 + $0xd0] sm:$0xff]
    %v1287 = vld [vmem:[#allocation6 + $0xd8] sm:$0xff]
    %v1288 = vld [vmem:[#allocation6 + $0xe0] sm:$0xff]
    %v1289 = vld [vmem:[#allocation6 + $0xe8] sm:$0xff]
    %v1290 = vld [vmem:[#allocation6 + $0xf0] sm:$0xff]
    %v1291 = vld [vmem:[#allocation6 + $0xf8] sm:$0xff]
    %s1292 = smul.u32 0, 4
    %s1293 = smul.addr %s1292, 8
    %s1294 = scalar_lea.vmem [#allocation2], %s1293
    %v1295 = vld [vmem:[%s1294] sm:$0xff]
    %v1296 = vld [vmem:[%s1294 + $0x8] sm:$0xff]
    %v1297 = vld [vmem:[%s1294 + $0x10] sm:$0xff]
    %v1298 = vld [vmem:[%s1294 + $0x18] sm:$0xff]
    %v1331 = vunpack.c.l.b16 %v1260
    %v1332 = vunpack.c.h.b16 %v1260
    %v1333 = vunpack.c.l.b16 %v1261
    %v1334 = vunpack.c.h.b16 %v1261
    %v1335 = vunpack.c.l.b16 %v1262
    %v1336 = vunpack.c.h.b16 %v1262
    %v1337 = vunpack.c.l.b16 %v1263
    %v1338 = vunpack.c.h.b16 %v1263
    %v1339 = vunpack.c.l.b16 %v1264
    %v1340 = vunpack.c.h.b16 %v1264
    %v1341 = vunpack.c.l.b16 %v1265
    %v1342 = vunpack.c.h.b16 %v1265
    %v1343 = vunpack.c.l.b16 %v1266
    %v1344 = vunpack.c.h.b16 %v1266
    %v1345 = vunpack.c.l.b16 %v1267
    %v1346 = vunpack.c.h.b16 %v1267
    %v1347 = vunpack.c.l.b16 %v1268
    %v1348 = vunpack.c.h.b16 %v1268
    %v1349 = vunpack.c.l.b16 %v1269
    %v1350 = vunpack.c.h.b16 %v1269
    %v1351 = vunpack.c.l.b16 %v1270
    %v1352 = vunpack.c.h.b16 %v1270
    %v1353 = vunpack.c.l.b16 %v1271
    %v1354 = vunpack.c.h.b16 %v1271
    %v1355 = vunpack.c.l.b16 %v1272
    %v1356 = vunpack.c.h.b16 %v1272
    %v1357 = vunpack.c.l.b16 %v1273
    %v1358 = vunpack.c.h.b16 %v1273
    %v1359 = vunpack.c.l.b16 %v1274
    %v1360 = vunpack.c.h.b16 %v1274
    %v1361 = vunpack.c.l.b16 %v1275
    %v1362 = vunpack.c.h.b16 %v1275
    %v1363 = vunpack.c.l.b16 %v1276
    %v1364 = vunpack.c.h.b16 %v1276
    %v1365 = vunpack.c.l.b16 %v1277
    %v1366 = vunpack.c.h.b16 %v1277
    %v1367 = vunpack.c.l.b16 %v1278
    %v1368 = vunpack.c.h.b16 %v1278
    %v1369 = vunpack.c.l.b16 %v1279
    %v1370 = vunpack.c.h.b16 %v1279
    %v1371 = vunpack.c.l.b16 %v1280
    %v1372 = vunpack.c.h.b16 %v1280
    %v1373 = vunpack.c.l.b16 %v1281
    %v1374 = vunpack.c.h.b16 %v1281
    %v1375 = vunpack.c.l.b16 %v1282
    %v1376 = vunpack.c.h.b16 %v1282
    %v1377 = vunpack.c.l.b16 %v1283
    %v1378 = vunpack.c.h.b16 %v1283
    %v1379 = vunpack.c.l.b16 %v1284
    %v1380 = vunpack.c.h.b16 %v1284
    %v1381 = vunpack.c.l.b16 %v1285
    %v1382 = vunpack.c.h.b16 %v1285
    %v1383 = vunpack.c.l.b16 %v1286
    %v1384 = vunpack.c.h.b16 %v1286
    %v1385 = vunpack.c.l.b16 %v1287
    %v1386 = vunpack.c.h.b16 %v1287
    %v1387 = vunpack.c.l.b16 %v1288
    %v1388 = vunpack.c.h.b16 %v1288
    %v1389 = vunpack.c.l.b16 %v1289
    %v1390 = vunpack.c.h.b16 %v1289
    %v1391 = vunpack.c.l.b16 %v1290
    %v1392 = vunpack.c.h.b16 %v1290
    %v1393 = vunpack.c.l.b16 %v1291
    %v1394 = vunpack.c.h.b16 %v1291
    %v1395 = vpack.c.b16 %v1335, %v1331
    %v1396 = vpack.c.b16 %v1336, %v1332
    %v1397 = vpack.c.b16 %v1337, %v1333
    %v1398 = vpack.c.b16 %v1338, %v1334
    %v1399 = vpack.c.b16 %v1343, %v1339
    %v1400 = vpack.c.b16 %v1344, %v1340
    %v1401 = vpack.c.b16 %v1345, %v1341
    %v1402 = vpack.c.b16 %v1346, %v1342
    %v1403 = vpack.c.b16 %v1351, %v1347
    %v1404 = vpack.c.b16 %v1352, %v1348
    %v1405 = vpack.c.b16 %v1353, %v1349
    %v1406 = vpack.c.b16 %v1354, %v1350
    %v1407 = vpack.c.b16 %v1359, %v1355
    %v1408 = vpack.c.b16 %v1360, %v1356
    %v1409 = vpack.c.b16 %v1361, %v1357
    %v1410 = vpack.c.b16 %v1362, %v1358
    %v1411 = vpack.c.b16 %v1367, %v1363
    %v1412 = vpack.c.b16 %v1368, %v1364
    %v1413 = vpack.c.b16 %v1369, %v1365
    %v1414 = vpack.c.b16 %v1370, %v1366
    %v1415 = vpack.c.b16 %v1375, %v1371
    %v1416 = vpack.c.b16 %v1376, %v1372
    %v1417 = vpack.c.b16 %v1377, %v1373
    %v1418 = vpack.c.b16 %v1378, %v1374
    %v1419 = vpack.c.b16 %v1383, %v1379
    %v1420 = vpack.c.b16 %v1384, %v1380
    %v1421 = vpack.c.b16 %v1385, %v1381
    %v1422 = vpack.c.b16 %v1386, %v1382
    %v1423 = vpack.c.b16 %v1391, %v1387
    %v1424 = vpack.c.b16 %v1392, %v1388
    %v1425 = vpack.c.b16 %v1393, %v1389
    %v1426 = vpack.c.b16 %v1394, %v1390
    %1459 = vmatprep.subr.bf16.mxu0 %v1396
    %1460 = vmatpush1.bf16.msra.mxu0 %v1395
    %1461 = vmatprep.subr.bf16.mxu0 %v1400
    %1462 = vmatpush1.bf16.msra.mxu0 %v1399
    %1463 = vmatprep.subr.bf16.mxu0 %v1404
    %1464 = vmatpush1.bf16.msra.mxu0 %v1403
    %1465 = vmatprep.subr.bf16.mxu0 %v1408
    %1466 = vmatpush1.bf16.msra.mxu0 %v1407
    %1467 = vmatprep.subr.bf16.mxu0 %v1412
    %1468 = vmatpush1.bf16.msra.mxu0 %v1411
    %1469 = vmatprep.subr.bf16.mxu0 %v1416
    %1470 = vmatpush1.bf16.msra.mxu0 %v1415
    %1471 = vmatprep.subr.bf16.mxu0 %v1420
    %1472 = vmatpush1.bf16.msra.mxu0 %v1419
    %1473 = vmatprep.subr.bf16.mxu0 %v1424
    %1474 = vmatpush1.bf16.msra.mxu0 %v1423
    %1475 = vmatprep.subr.bf16.mxu0 0
    %1476 = vmatpush1.bf16.msra.mxu0 0
    %1477 = vmatprep.subr.bf16.mxu0 0
    %1478 = vmatpush1.bf16.msra.mxu0 0
    %1479 = vmatprep.subr.bf16.mxu0 0
    %1480 = vmatpush1.bf16.msra.mxu0 0
    %1481 = vmatprep.subr.bf16.mxu0 0
    %1482 = vmatpush1.bf16.msra.mxu0 0
    %1483 = vmatprep.subr.bf16.mxu0 0
    %1484 = vmatpush1.bf16.msra.mxu0 0
    %1485 = vmatprep.subr.bf16.mxu0 0
    %1486 = vmatpush1.bf16.msra.mxu0 0
    %1487 = vmatprep.subr.bf16.mxu0 0
    %1488 = vmatpush1.bf16.msra.mxu0 0
    %1489 = vmatprep.subr.bf16.mxu0 0
    %1490 = vmatpush1.bf16.msra.mxu0 0
    %1491 = vmatprep.mubr.bf16.mxu0 0
    %1492 = vmatmul.mubr.bf16.gmra.mrb[0].mxu0 0
    %v1493 = vpop.f32.mrb[0].mxu0
    %v1494 = vadd.f32 0.0, %v1493
    %v1495 = vpop.f32.mrb[0].mxu0
    %v1496 = vadd.f32 0.0, %v1495
    %v1497 = vpop.f32.mrb[0].mxu0
    %v1498 = vpop.f32.mrb[0].mxu0
    %1499 = vdwg.mxu0
    %1500 = vmatprep.subr.bf16.mxu0 %v1398
    %1501 = vmatpush1.bf16.msra.mxu0 %v1397
    %1502 = vmatprep.subr.bf16.mxu0 %v1402
    %1503 = vmatpush1.bf16.msra.mxu0 %v1401
    %1504 = vmatprep.subr.bf16.mxu0 %v1406
    %1505 = vmatpush1.bf16.msra.mxu0 %v1405
    %1506 = vmatprep.subr.bf16.mxu0 %v1410
    %1507 = vmatpush1.bf16.msra.mxu0 %v1409
    %1508 = vmatprep.subr.bf16.mxu0 %v1414
    %1509 = vmatpush1.bf16.msra.mxu0 %v1413
    %1510 = vmatprep.subr.bf16.mxu0 %v1418
    %1511 = vmatpush1.bf16.msra.mxu0 %v1417
    %1512 = vmatprep.subr.bf16.mxu0 %v1422
    %1513 = vmatpush1.bf16.msra.mxu0 %v1421
    %1514 = vmatprep.subr.bf16.mxu0 %v1426
    %1515 = vmatpush1.bf16.msra.mxu0 %v1425
    %1516 = vmatprep.subr.bf16.mxu0 0
    %1517 = vmatpush1.bf16.msra.mxu0 0
    %1518 = vmatprep.subr.bf16.mxu0 0
    %1519 = vmatpush1.bf16.msra.mxu0 0
    %1520 = vmatprep.subr.bf16.mxu0 0
    %1521 = vmatpush1.bf16.msra.mxu0 0
    %1522 = vmatprep.subr.bf16.mxu0 0
    %1523 = vmatpush1.bf16.msra.mxu0 0
    %1524 = vmatprep.subr.bf16.mxu0 0
    %1525 = vmatpush1.bf16.msra.mxu0 0
    %1526 = vmatprep.subr.bf16.mxu0 0
    %1527 = vmatpush1.bf16.msra.mxu0 0
    %1528 = vmatprep.subr.bf16.mxu0 0
    %1529 = vmatpush1.bf16.msra.mxu0 0
    %1530 = vmatprep.subr.bf16.mxu0 0
    %1531 = vmatpush1.bf16.msra.mxu0 0
    %1532 = vmatprep.mubr.bf16.mxu0 0
    %1533 = vmatmul.mubr.bf16.gmra.mrb[0].mxu0 0
    %v1534 = vpop.f32.mrb[0].mxu0
    %v1535 = vadd.f32 0.0, %v1534
    %v1536 = vpop.f32.mrb[0].mxu0
    %v1537 = vadd.f32 0.0, %v1536
    %v1538 = vpop.f32.mrb[0].mxu0
    %v1539 = vpop.f32.mrb[0].mxu0
    %1540 = vdwg.mxu0
    %v1541 = vadd.f32 %v1295, %v1494
    %v1542 = vadd.f32 %v1296, %v1496
    %v1543 = vadd.f32 %v1297, %v1535
    %v1544 = vadd.f32 %v1298, %v1537
    %v1545 = vmul.f32 %v1541, 0.5
    %v1546 = vtanh.pop %v1545
    %v1547 = vmul.f32 %v1546, 0.5
    %v1548 = vadd.f32 %v1547, 0.5
    %v1549 = vmul.f32 %v1542, 0.5
    %v1550 = vtanh.pop %v1549
    %v1551 = vmul.f32 %v1550, 0.5
    %v1552 = vadd.f32 %v1551, 0.5
    %v1553 = vtanh.pop %v1543
    %v1554 = vmul.f32 %v1544, 0.5
    %v1555 = vtanh.pop %v1554
    %v1556 = vmul.f32 %v1555, 0.5
    %v1557 = vadd.f32 %v1556, 0.5
    %v1558 = vmul.f32 %v1552, 0.0
    %v1559 = vmul.f32 %v1548, %v1553
    %v1560 = vadd.f32 %v1558, %v1559
    %v1561 = vtanh.pop %v1560
    %v1562 = vmul.f32 %v1557, %v1561
    %s1563 = smul.u32 1, 4
    %s1564 = smul.addr %s1563, 8
    %s1565 = scalar_lea.vmem [#allocation2], %s1564
    %v1566 = vld [vmem:[%s1565] sm:$0xff]
    %v1567 = vld [vmem:[%s1565 + $0x8] sm:$0xff]
    %v1568 = vld [vmem:[%s1565 + $0x10] sm:$0xff]
    %v1569 = vld [vmem:[%s1565 + $0x18] sm:$0xff]
    %v1570 = vpack.c.bf16 %v1562, %v1562
    %1571 = vmatprep.subr.bf16.mxu0 %v1396
    %1572 = vmatpush1.bf16.msra.mxu0 %v1395
    %1573 = vmatprep.subr.bf16.mxu0 %v1400
    %1574 = vmatpush1.bf16.msra.mxu0 %v1399
    %1575 = vmatprep.subr.bf16.mxu0 %v1404
    %1576 = vmatpush1.bf16.msra.mxu0 %v1403
    %1577 = vmatprep.subr.bf16.mxu0 %v1408
    %1578 = vmatpush1.bf16.msra.mxu0 %v1407
    %1579 = vmatprep.subr.bf16.mxu0 %v1412
    %1580 = vmatpush1.bf16.msra.mxu0 %v1411
    %1581 = vmatprep.subr.bf16.mxu0 %v1416
    %1582 = vmatpush1.bf16.msra.mxu0 %v1415
    %1583 = vmatprep.subr.bf16.mxu0 %v1420
    %1584 = vmatpush1.bf16.msra.mxu0 %v1419
    %1585 = vmatprep.subr.bf16.mxu0 %v1424
    %1586 = vmatpush1.bf16.msra.mxu0 %v1423
    %1587 = vmatprep.subr.bf16.mxu0 0
    %1588 = vmatpush1.bf16.msra.mxu0 0
    %1589 = vmatprep.subr.bf16.mxu0 0
    %1590 = vmatpush1.bf16.msra.mxu0 0
    %1591 = vmatprep.subr.bf16.mxu0 0
    %1592 = vmatpush1.bf16.msra.mxu0 0
    %1593 = vmatprep.subr.bf16.mxu0 0
    %1594 = vmatpush1.bf16.msra.mxu0 0
    %1595 = vmatprep.subr.bf16.mxu0 0
    %1596 = vmatpush1.bf16.msra.mxu0 0
    %1597 = vmatprep.subr.bf16.mxu0 0
    %1598 = vmatpush1.bf16.msra.mxu0 0
    %1599 = vmatprep.subr.bf16.mxu0 0
    %1600 = vmatpush1.bf16.msra.mxu0 0
    %1601 = vmatprep.subr.bf16.mxu0 0
    %1602 = vmatpush1.bf16.msra.mxu0 0
    %1603 = vmatprep.mubr.bf16.mxu0 0
    %1604 = vmatmul.mubr.bf16.gmra.mrb[0].mxu0 %v1570
    %v1605 = vpop.f32.mrb[0].mxu0
    %v1606 = vadd.f32 0.0, %v1605
    %v1607 = vpop.f32.mrb[0].mxu0
    %v1608 = vadd.f32 0.0, %v1607
    %v1609 = vpop.f32.mrb[0].mxu0
    %v1610 = vpop.f32.mrb[0].mxu0
    %1611 = vdwg.mxu0
    %1612 = vmatprep.subr.bf16.mxu0 %v1398
    %1613 = vmatpush1.bf16.msra.mxu0 %v1397
    %1614 = vmatprep.subr.bf16.mxu0 %v1402
    %1615 = vmatpush1.bf16.msra.mxu0 %v1401
    %1616 = vmatprep.subr.bf16.mxu0 %v1406
    %1617 = vmatpush1.bf16.msra.mxu0 %v1405
    %1618 = vmatprep.subr.bf16.mxu0 %v1410
    %1619 = vmatpush1.bf16.msra.mxu0 %v1409
    %1620 = vmatprep.subr.bf16.mxu0 %v1414
    %1621 = vmatpush1.bf16.msra.mxu0 %v1413
    %1622 = vmatprep.subr.bf16.mxu0 %v1418
    %1623 = vmatpush1.bf16.msra.mxu0 %v1417
    %1624 = vmatprep.subr.bf16.mxu0 %v1422
    %1625 = vmatpush1.bf16.msra.mxu0 %v1421
    %1626 = vmatprep.subr.bf16.mxu0 %v1426
    %1627 = vmatpush1.bf16.msra.mxu0 %v1425
    %1628 = vmatprep.subr.bf16.mxu0 0
    %1629 = vmatpush1.bf16.msra.mxu0 0
    %1630 = vmatprep.subr.bf16.mxu0 0
    %1631 = vmatpush1.bf16.msra.mxu0 0
    %1632 = vmatprep.subr.bf16.mxu0 0
    %1633 = vmatpush1.bf16.msra.mxu0 0
    %1634 = vmatprep.subr.bf16.mxu0 0
    %1635 = vmatpush1.bf16.msra.mxu0 0
    %1636 = vmatprep.subr.bf16.mxu0 0
    %1637 = vmatpush1.bf16.msra.mxu0 0
    %1638 = vmatprep.subr.bf16.mxu0 0
    %1639 = vmatpush1.bf16.msra.mxu0 0
    %1640 = vmatprep.subr.bf16.mxu0 0
    %1641 = vmatpush1.bf16.msra.mxu0 0
    %1642 = vmatprep.subr.bf16.mxu0 0
    %1643 = vmatpush1.bf16.msra.mxu0 0
    %1644 = vmatprep.mubr.bf16.mxu0 0
    %1645 = vmatmul.mubr.bf16.gmra.mrb[0].mxu0 %v1570
    %v1646 = vpop.f32.mrb[0].mxu0
    %v1647 = vadd.f32 0.0, %v1646
    %v1648 = vpop.f32.mrb[0].mxu0
    %v1649 = vadd.f32 0.0, %v1648
    %v1650 = vpop.f32.mrb[0].mxu0
    %v1651 = vpop.f32.mrb[0].mxu0
    %1652 = vdwg.mxu0
    %v1653 = vadd.f32 %v1566, %v1606
    %v1654 = vadd.f32 %v1567, %v1608
    %v1655 = vadd.f32 %v1568, %v1647
    %v1656 = vadd.f32 %v1569, %v1649
    %v1657 = vmul.f32 %v1653, 0.5
    %v1658 = vtanh.pop %v1657
    %v1659 = vmul.f32 %v1658, 0.5
    %v1660 = vadd.f32 %v1659, 0.5
    %v1661 = vmul.f32 %v1654, 0.5
    %v1662 = vtanh.pop %v1661
    %v1663 = vmul.f32 %v1662, 0.5
    %v1664 = vadd.f32 %v1663, 0.5
    %v1665 = vtanh.pop %v1655
    %v1666 = vmul.f32 %v1656, 0.5
    %v1667 = vtanh.pop %v1666
    %v1668 = vmul.f32 %v1667, 0.5
    %v1669 = vadd.f32 %v1668, 0.5
    %v1670 = vmul.f32 %v1664, %v1560
    %v1671 = vmul.f32 %v1660, %v1665
    %v1672 = vadd.f32 %v1670, %v1671
    %v1673 = vtanh.pop %v1672
    %v1674 = vmul.f32 %v1669, %v1673
    %s1675 = smul.u32 2, 4
    %s1676 = smul.addr %s1675, 8
    %s1677 = scalar_lea.vmem [#allocation2], %s1676
    %v1678 = vld [vmem:[%s1677] sm:$0xff]
    %v1679 = vld [vmem:[%s1677 + $0x8] sm:$0xff]
    %v1680 = vld [vmem:[%s1677 + $0x10] sm:$0xff]
    %v1681 = vld [vmem:[%s1677 + $0x18] sm:$0xff]
    %v1682 = vpack.c.bf16 %v1674, %v1674
    %1683 = vmatprep.subr.bf16.mxu0 %v1396
    %1684 = vmatpush1.bf16.msra.mxu0 %v1395
    %1685 = vmatprep.subr.bf16.mxu0 %v1400
    %1686 = vmatpush1.bf16.msra.mxu0 %v1399
    %1687 = vmatprep.subr.bf16.mxu0 %v1404
    %1688 = vmatpush1.bf16.msra.mxu0 %v1403
    %1689 = vmatprep.subr.bf16.mxu0 %v1408
    %1690 = vmatpush1.bf16.msra.mxu0 %v1407
    %1691 = vmatprep.subr.bf16.mxu0 %v1412
    %1692 = vmatpush1.bf16.msra.mxu0 %v1411
    %1693 = vmatprep.subr.bf16.mxu0 %v1416
    %1694 = vmatpush1.bf16.msra.mxu0 %v1415
    %1695 = vmatprep.subr.bf16.mxu0 %v1420
    %1696 = vmatpush1.bf16.msra.mxu0 %v1419
    %1697 = vmatprep.subr.bf16.mxu0 %v1424
    %1698 = vmatpush1.bf16.msra.mxu0 %v1423
    %1699 = vmatprep.subr.bf16.mxu0 0
    %1700 = vmatpush1.bf16.msra.mxu0 0
    %1701 = vmatprep.subr.bf16.mxu0 0
    %1702 = vmatpush1.bf16.msra.mxu0 0
    %1703 = vmatprep.subr.bf16.mxu0 0
    %1704 = vmatpush1.bf16.msra.mxu0 0
    %1705 = vmatprep.subr.bf16.mxu0 0
    %1706 = vmatpush1.bf16.msra.mxu0 0
    %1707 = vmatprep.subr.bf16.mxu0 0
    %1708 = vmatpush1.bf16.msra.mxu0 0
    %1709 = vmatprep.subr.bf16.mxu0 0
    %1710 = vmatpush1.bf16.msra.mxu0 0
    %1711 = vmatprep.subr.bf16.mxu0 0
    %1712 = vmatpush1.bf16.msra.mxu0 0
    %1713 = vmatprep.subr.bf16.mxu0 0
    %1714 = vmatpush1.bf16.msra.mxu0 0
    %1715 = vmatprep.mubr.bf16.mxu0 0
    %1716 = vmatmul.mubr.bf16.gmra.mrb[0].mxu0 %v1682
    %v1717 = vpop.f32.mrb[0].mxu0
    %v1718 = vadd.f32 0.0, %v1717
    %v1719 = vpop.f32.mrb[0].mxu0
    %v1720 = vadd.f32 0.0, %v1719
    %v1721 = vpop.f32.mrb[0].mxu0
    %v1722 = vpop.f32.mrb[0].mxu0
    %1723 = vdwg.mxu0
    %1724 = vmatprep.subr.bf16.mxu0 %v1398
    %1725 = vmatpush1.bf16.msra.mxu0 %v1397
    %1726 = vmatprep.subr.bf16.mxu0 %v1402
    %1727 = vmatpush1.bf16.msra.mxu0 %v1401
    %1728 = vmatprep.subr.bf16.mxu0 %v1406
    %1729 = vmatpush1.bf16.msra.mxu0 %v1405
    %1730 = vmatprep.subr.bf16.mxu0 %v1410
    %1731 = vmatpush1.bf16.msra.mxu0 %v1409
    %1732 = vmatprep.subr.bf16.mxu0 %v1414
    %1733 = vmatpush1.bf16.msra.mxu0 %v1413
    %1734 = vmatprep.subr.bf16.mxu0 %v1418
    %1735 = vmatpush1.bf16.msra.mxu0 %v1417
    %1736 = vmatprep.subr.bf16.mxu0 %v1422
    %1737 = vmatpush1.bf16.msra.mxu0 %v1421
    %1738 = vmatprep.subr.bf16.mxu0 %v1426
    %1739 = vmatpush1.bf16.msra.mxu0 %v1425
    %1740 = vmatprep.subr.bf16.mxu0 0
    %1741 = vmatpush1.bf16.msra.mxu0 0
    %1742 = vmatprep.subr.bf16.mxu0 0
    %1743 = vmatpush1.bf16.msra.mxu0 0
    %1744 = vmatprep.subr.bf16.mxu0 0
    %1745 = vmatpush1.bf16.msra.mxu0 0
    %1746 = vmatprep.subr.bf16.mxu0 0
    %1747 = vmatpush1.bf16.msra.mxu0 0
    %1748 = vmatprep.subr.bf16.mxu0 0
    %1749 = vmatpush1.bf16.msra.mxu0 0
    %1750 = vmatprep.subr.bf16.mxu0 0
    %1751 = vmatpush1.bf16.msra.mxu0 0
    %1752 = vmatprep.subr.bf16.mxu0 0
    %1753 = vmatpush1.bf16.msra.mxu0 0
    %1754 = vmatprep.subr.bf16.mxu0 0
    %1755 = vmatpush1.bf16.msra.mxu0 0
    %1756 = vmatprep.mubr.bf16.mxu0 0
    %1757 = vmatmul.mubr.bf16.gmra.mrb[0].mxu0 %v1682
    %v1758 = vpop.f32.mrb[0].mxu0
    %v1759 = vadd.f32 0.0, %v1758
    %v1760 = vpop.f32.mrb[0].mxu0
    %v1761 = vadd.f32 0.0, %v1760
    %v1762 = vpop.f32.mrb[0].mxu0
    %v1763 = vpop.f32.mrb[0].mxu0
    %1764 = vdwg.mxu0
    %v1765 = vadd.f32 %v1678, %v1718
    %v1766 = vadd.f32 %v1679, %v1720
    %v1767 = vadd.f32 %v1680, %v1759
    %v1768 = vadd.f32 %v1681, %v1761
    %v1769 = vmul.f32 %v1765, 0.5
    %v1770 = vtanh.pop %v1769
    %v1771 = vmul.f32 %v1770, 0.5
    %v1772 = vadd.f32 %v1771, 0.5
    %v1773 = vmul.f32 %v1766, 0.5
    %v1774 = vtanh.pop %v1773
    %v1775 = vmul.f32 %v1774, 0.5
    %v1776 = vadd.f32 %v1775, 0.5
    %v1777 = vtanh.pop %v1767
    %v1778 = vmul.f32 %v1768, 0.5
    %v1779 = vtanh.pop %v1778
    %v1780 = vmul.f32 %v1779, 0.5
    %v1781 = vadd.f32 %v1780, 0.5
    %v1782 = vmul.f32 %v1776, %v1672
    %v1783 = vmul.f32 %v1772, %v1777
    %v1784 = vadd.f32 %v1782, %v1783
    %v1785 = vtanh.pop %v1784
    %v1786 = vmul.f32 %v1781, %v1785
    %s1787 = smul.u32 3, 4
    %s1788 = smul.addr %s1787, 8
    %s1789 = scalar_lea.vmem [#allocation2], %s1788
    %v1790 = vld [vmem:[%s1789] sm:$0xff]
    %v1791 = vld [vmem:[%s1789 + $0x8] sm:$0xff]
    %v1792 = vld [vmem:[%s1789 + $0x10] sm:$0xff]
    %v1793 = vld [vmem:[%s1789 + $0x18] sm:$0xff]
    %v1794 = vpack.c.bf16 %v1786, %v1786
    %1795 = vmatprep.subr.bf16.mxu0 %v1396
    %1796 = vmatpush1.bf16.msra.mxu0 %v1395
    %1797 = vmatprep.subr.bf16.mxu0 %v1400
    %1798 = vmatpush1.bf16.msra.mxu0 %v1399
    %1799 = vmatprep.subr.bf16.mxu0 %v1404
    %1800 = vmatpush1.bf16.msra.mxu0 %v1403
    %1801 = vmatprep.subr.bf16.mxu0 %v1408
    %1802 = vmatpush1.bf16.msra.mxu0 %v1407
    %1803 = vmatprep.subr.bf16.mxu0 %v1412
    %1804 = vmatpush1.bf16.msra.mxu0 %v1411
    %1805 = vmatprep.subr.bf16.mxu0 %v1416
    %1806 = vmatpush1.bf16.msra.mxu0 %v1415
    %1807 = vmatprep.subr.bf16.mxu0 %v1420
    %1808 = vmatpush1.bf16.msra.mxu0 %v1419
    %1809 = vmatprep.subr.bf16.mxu0 %v1424
    %1810 = vmatpush1.bf16.msra.mxu0 %v1423
    %1811 = vmatprep.subr.bf16.mxu0 0
    %1812 = vmatpush1.bf16.msra.mxu0 0
    %1813 = vmatprep.subr.bf16.mxu0 0
    %1814 = vmatpush1.bf16.msra.mxu0 0
    %1815 = vmatprep.subr.bf16.mxu0 0
    %1816 = vmatpush1.bf16.msra.mxu0 0
    %1817 = vmatprep.subr.bf16.mxu0 0
    %1818 = vmatpush1.bf16.msra.mxu0 0
    %1819 = vmatprep.subr.bf16.mxu0 0
    %1820 = vmatpush1.bf16.msra.mxu0 0
    %1821 = vmatprep.subr.bf16.mxu0 0
    %1822 = vmatpush1.bf16.msra.mxu0 0
    %1823 = vmatprep.subr.bf16.mxu0 0
    %1824 = vmatpush1.bf16.msra.mxu0 0
    %1825 = vmatprep.subr.bf16.mxu0 0
    %1826 = vmatpush1.bf16.msra.mxu0 0
    %1827 = vmatprep.mubr.bf16.mxu0 0
    %1828 = vmatmul.mubr.bf16.gmra.mrb[0].mxu0 %v1794
    %v1829 = vpop.f32.mrb[0].mxu0
    %v1830 = vadd.f32 0.0, %v1829
    %v1831 = vpop.f32.mrb[0].mxu0
    %v1832 = vadd.f32 0.0, %v1831
    %v1833 = vpop.f32.mrb[0].mxu0
    %v1834 = vpop.f32.mrb[0].mxu0
    %1835 = vdwg.mxu0
    %1836 = vmatprep.subr.bf16.mxu0 %v1398
    %1837 = vmatpush1.bf16.msra.mxu0 %v1397
    %1838 = vmatprep.subr.bf16.mxu0 %v1402
    %1839 = vmatpush1.bf16.msra.mxu0 %v1401
    %1840 = vmatprep.subr.bf16.mxu0 %v1406
    %1841 = vmatpush1.bf16.msra.mxu0 %v1405
    %1842 = vmatprep.subr.bf16.mxu0 %v1410
    %1843 = vmatpush1.bf16.msra.mxu0 %v1409
    %1844 = vmatprep.subr.bf16.mxu0 %v1414
    %1845 = vmatpush1.bf16.msra.mxu0 %v1413
    %1846 = vmatprep.subr.bf16.mxu0 %v1418
    %1847 = vmatpush1.bf16.msra.mxu0 %v1417
    %1848 = vmatprep.subr.bf16.mxu0 %v1422
    %1849 = vmatpush1.bf16.msra.mxu0 %v1421
    %1850 = vmatprep.subr.bf16.mxu0 %v1426
    %1851 = vmatpush1.bf16.msra.mxu0 %v1425
    %1852 = vmatprep.subr.bf16.mxu0 0
    %1853 = vmatpush1.bf16.msra.mxu0 0
    %1854 = vmatprep.subr.bf16.mxu0 0
    %1855 = vmatpush1.bf16.msra.mxu0 0
    %1856 = vmatprep.subr.bf16.mxu0 0
    %1857 = vmatpush1.bf16.msra.mxu0 0
    %1858 = vmatprep.subr.bf16.mxu0 0
    %1859 = vmatpush1.bf16.msra.mxu0 0
    %1860 = vmatprep.subr.bf16.mxu0 0
    %1861 = vmatpush1.bf16.msra.mxu0 0
    %1862 = vmatprep.subr.bf16.mxu0 0
    %1863 = vmatpush1.bf16.msra.mxu0 0
    %1864 = vmatprep.subr.bf16.mxu0 0
    %1865 = vmatpush1.bf16.msra.mxu0 0
    %1866 = vmatprep.subr.bf16.mxu0 0
    %1867 = vmatpush1.bf16.msra.mxu0 0
    %1868 = vmatprep.mubr.bf16.mxu0 0
    %1869 = vmatmul.mubr.bf16.gmra.mrb[0].mxu0 %v1794
    %v1870 = vpop.f32.mrb[0].mxu0
    %v1871 = vadd.f32 0.0, %v1870
    %v1872 = vpop.f32.mrb[0].mxu0
    %v1873 = vadd.f32 0.0, %v1872
    %v1874 = vpop.f32.mrb[0].mxu0
    %v1875 = vpop.f32.mrb[0].mxu0
    %1876 = vdwg.mxu0
    %v1877 = vadd.f32 %v1790, %v1830
    %v1878 = vadd.f32 %v1791, %v1832
    %v1879 = vadd.f32 %v1792, %v1871
    %v1880 = vadd.f32 %v1793, %v1873
    %v1881 = vmul.f32 %v1877, 0.5
    %v1882 = vtanh.pop %v1881
    %v1883 = vmul.f32 %v1882, 0.5
    %v1884 = vadd.f32 %v1883, 0.5
    %v1885 = vmul.f32 %v1878, 0.5
    %v1886 = vtanh.pop %v1885
    %v1887 = vmul.f32 %v1886, 0.5
    %v1888 = vadd.f32 %v1887, 0.5
    %v1889 = vtanh.pop %v1879
    %v1890 = vmul.f32 %v1880, 0.5
    %v1891 = vtanh.pop %v1890
    %v1892 = vmul.f32 %v1891, 0.5
    %v1893 = vadd.f32 %v1892, 0.5
    %v1894 = vmul.f32 %v1888, %v1784
    %v1895 = vmul.f32 %v1884, %v1889
    %v1896 = vadd.f32 %v1894, %v1895
    %v1897 = vtanh.pop %v1896
    %v1898 = vmul.f32 %v1893, %v1897
    %s1899 = smul.u32 4, 4
    %s1900 = smul.addr %s1899, 8
    %s1901 = scalar_lea.vmem [#allocation2], %s1900
    %v1902 = vld [vmem:[%s1901] sm:$0xff]
    %v1903 = vld [vmem:[%s1901 + $0x8] sm:$0xff]
    %v1904 = vld [vmem:[%s1901 + $0x10] sm:$0xff]
    %v1905 = vld [vmem:[%s1901 + $0x18] sm:$0xff]
    %v1906 = vpack.c.bf16 %v1898, %v1898
    %1907 = vmatprep.subr.bf16.mxu0 %v1396
    %1908 = vmatpush1.bf16.msra.mxu0 %v1395
    %1909 = vmatprep.subr.bf16.mxu0 %v1400
    %1910 = vmatpush1.bf16.msra.mxu0 %v1399
    %1911 = vmatprep.subr.bf16.mxu0 %v1404
    %1912 = vmatpush1.bf16.msra.mxu0 %v1403
    %1913 = vmatprep.subr.bf16.mxu0 %v1408
    %1914 = vmatpush1.bf16.msra.mxu0 %v1407
    %1915 = vmatprep.subr.bf16.mxu0 %v1412
    %1916 = vmatpush1.bf16.msra.mxu0 %v1411
    %1917 = vmatprep.subr.bf16.mxu0 %v1416
    %1918 = vmatpush1.bf16.msra.mxu0 %v1415
    %1919 = vmatprep.subr.bf16.mxu0 %v1420
    %1920 = vmatpush1.bf16.msra.mxu0 %v1419
    %1921 = vmatprep.subr.bf16.mxu0 %v1424
    %1922 = vmatpush1.bf16.msra.mxu0 %v1423
    %1923 = vmatprep.subr.bf16.mxu0 0
    %1924 = vmatpush1.bf16.msra.mxu0 0
    %1925 = vmatprep.subr.bf16.mxu0 0
    %1926 = vmatpush1.bf16.msra.mxu0 0
    %1927 = vmatprep.subr.bf16.mxu0 0
    %1928 = vmatpush1.bf16.msra.mxu0 0
    %1929 = vmatprep.subr.bf16.mxu0 0
    %1930 = vmatpush1.bf16.msra.mxu0 0
    %1931 = vmatprep.subr.bf16.mxu0 0
    %1932 = vmatpush1.bf16.msra.mxu0 0
    %1933 = vmatprep.subr.bf16.mxu0 0
    %1934 = vmatpush1.bf16.msra.mxu0 0
    %1935 = vmatprep.subr.bf16.mxu0 0
    %1936 = vmatpush1.bf16.msra.mxu0 0
    %1937 = vmatprep.subr.bf16.mxu0 0
    %1938 = vmatpush1.bf16.msra.mxu0 0
    %1939 = vmatprep.mubr.bf16.mxu0 0
    %1940 = vmatmul.mubr.bf16.gmra.mrb[0].mxu0 %v1906
    %v1941 = vpop.f32.mrb[0].mxu0
    %v1942 = vadd.f32 0.0, %v1941
    %v1943 = vpop.f32.mrb[0].mxu0
    %v1944 = vadd.f32 0.0, %v1943
    %v1945 = vpop.f32.mrb[0].mxu0
    %v1946 = vpop.f32.mrb[0].mxu0
    %1947 = vdwg.mxu0
    %1948 = vmatprep.subr.bf16.mxu0 %v1398
    %1949 = vmatpush1.bf16.msra.mxu0 %v1397
    %1950 = vmatprep.subr.bf16.mxu0 %v1402
    %1951 = vmatpush1.bf16.msra.mxu0 %v1401
    %1952 = vmatprep.subr.bf16.mxu0 %v1406
    %1953 = vmatpush1.bf16.msra.mxu0 %v1405
    %1954 = vmatprep.subr.bf16.mxu0 %v1410
    %1955 = vmatpush1.bf16.msra.mxu0 %v1409
    %1956 = vmatprep.subr.bf16.mxu0 %v1414
    %1957 = vmatpush1.bf16.msra.mxu0 %v1413
    %1958 = vmatprep.subr.bf16.mxu0 %v1418
    %1959 = vmatpush1.bf16.msra.mxu0 %v1417
    %1960 = vmatprep.subr.bf16.mxu0 %v1422
    %1961 = vmatpush1.bf16.msra.mxu0 %v1421
    %1962 = vmatprep.subr.bf16.mxu0 %v1426
    %1963 = vmatpush1.bf16.msra.mxu0 %v1425
    %1964 = vmatprep.subr.bf16.mxu0 0
    %1965 = vmatpush1.bf16.msra.mxu0 0
    %1966 = vmatprep.subr.bf16.mxu0 0
    %1967 = vmatpush1.bf16.msra.mxu0 0
    %1968 = vmatprep.subr.bf16.mxu0 0
    %1969 = vmatpush1.bf16.msra.mxu0 0
    %1970 = vmatprep.subr.bf16.mxu0 0
    %1971 = vmatpush1.bf16.msra.mxu0 0
    %1972 = vmatprep.subr.bf16.mxu0 0
    %1973 = vmatpush1.bf16.msra.mxu0 0
    %1974 = vmatprep.subr.bf16.mxu0 0
    %1975 = vmatpush1.bf16.msra.mxu0 0
    %1976 = vmatprep.subr.bf16.mxu0 0
    %1977 = vmatpush1.bf16.msra.mxu0 0
    %1978 = vmatprep.subr.bf16.mxu0 0
    %1979 = vmatpush1.bf16.msra.mxu0 0
    %1980 = vmatprep.mubr.bf16.mxu0 0
    %1981 = vmatmul.mubr.bf16.gmra.mrb[0].mxu0 %v1906
    %v1982 = vpop.f32.mrb[0].mxu0
    %v1983 = vadd.f32 0.0, %v1982
    %v1984 = vpop.f32.mrb[0].mxu0
    %v1985 = vadd.f32 0.0, %v1984
    %v1986 = vpop.f32.mrb[0].mxu0
    %v1987 = vpop.f32.mrb[0].mxu0
    %1988 = vdwg.mxu0
    %v1989 = vadd.f32 %v1902, %v1942
    %v1990 = vadd.f32 %v1903, %v1944
    %v1991 = vadd.f32 %v1904, %v1983
    %v1992 = vadd.f32 %v1905, %v1985
    %v1993 = vmul.f32 %v1989, 0.5
    %v1994 = vtanh.pop %v1993
    %v1995 = vmul.f32 %v1994, 0.5
    %v1996 = vadd.f32 %v1995, 0.5
    %v1997 = vmul.f32 %v1990, 0.5
    %v1998 = vtanh.pop %v1997
    %v1999 = vmul.f32 %v1998, 0.5
    %v2000 = vadd.f32 %v1999, 0.5
    %v2001 = vtanh.pop %v1991
    %v2002 = vmul.f32 %v1992, 0.5
    %v2003 = vtanh.pop %v2002
    %v2004 = vmul.f32 %v2003, 0.5
    %v2005 = vadd.f32 %v2004, 0.5
    %v2006 = vmul.f32 %v2000, %v1896
    %v2007 = vmul.f32 %v1996, %v2001
    %v2008 = vadd.f32 %v2006, %v2007
    %v2009 = vtanh.pop %v2008
    %v2010 = vmul.f32 %v2005, %v2009
    %s2011 = smul.u32 5, 4
    %s2012 = smul.addr %s2011, 8
    %s2013 = scalar_lea.vmem [#allocation2], %s2012
    %v2014 = vld [vmem:[%s2013] sm:$0xff]
    %v2015 = vld [vmem:[%s2013 + $0x8] sm:$0xff]
    %v2016 = vld [vmem:[%s2013 + $0x10] sm:$0xff]
    %v2017 = vld [vmem:[%s2013 + $0x18] sm:$0xff]
    %v2018 = vpack.c.bf16 %v2010, %v2010
    %2019 = vmatprep.subr.bf16.mxu0 %v1396
    %2020 = vmatpush1.bf16.msra.mxu0 %v1395
    %2021 = vmatprep.subr.bf16.mxu0 %v1400
    %2022 = vmatpush1.bf16.msra.mxu0 %v1399
    %2023 = vmatprep.subr.bf16.mxu0 %v1404
    %2024 = vmatpush1.bf16.msra.mxu0 %v1403
    %2025 = vmatprep.subr.bf16.mxu0 %v1408
    %2026 = vmatpush1.bf16.msra.mxu0 %v1407
    %2027 = vmatprep.subr.bf16.mxu0 %v1412
    %2028 = vmatpush1.bf16.msra.mxu0 %v1411
    %2029 = vmatprep.subr.bf16.mxu0 %v1416
    %2030 = vmatpush1.bf16.msra.mxu0 %v1415
    %2031 = vmatprep.subr.bf16.mxu0 %v1420
    %2032 = vmatpush1.bf16.msra.mxu0 %v1419
    %2033 = vmatprep.subr.bf16.mxu0 %v1424
    %2034 = vmatpush1.bf16.msra.mxu0 %v1423
    %2035 = vmatprep.subr.bf16.mxu0 0
    %2036 = vmatpush1.bf16.msra.mxu0 0
    %2037 = vmatprep.subr.bf16.mxu0 0
    %2038 = vmatpush1.bf16.msra.mxu0 0
    %2039 = vmatprep.subr.bf16.mxu0 0
    %2040 = vmatpush1.bf16.msra.mxu0 0
    %2041 = vmatprep.subr.bf16.mxu0 0
    %2042 = vmatpush1.bf16.msra.mxu0 0
    %2043 = vmatprep.subr.bf16.mxu0 0
    %2044 = vmatpush1.bf16.msra.mxu0 0
    %2045 = vmatprep.subr.bf16.mxu0 0
    %2046 = vmatpush1.bf16.msra.mxu0 0
    %2047 = vmatprep.subr.bf16.mxu0 0
    %2048 = vmatpush1.bf16.msra.mxu0 0
    %2049 = vmatprep.subr.bf16.mxu0 0
    %2050 = vmatpush1.bf16.msra.mxu0 0
    %2051 = vmatprep.mubr.bf16.mxu0 0
    %2052 = vmatmul.mubr.bf16.gmra.mrb[0].mxu0 %v2018
    %v2053 = vpop.f32.mrb[0].mxu0
    %v2054 = vadd.f32 0.0, %v2053
    %v2055 = vpop.f32.mrb[0].mxu0
    %v2056 = vadd.f32 0.0, %v2055
    %v2057 = vpop.f32.mrb[0].mxu0
    %v2058 = vpop.f32.mrb[0].mxu0
    %2059 = vdwg.mxu0
    %2060 = vmatprep.subr.bf16.mxu0 %v1398
    %2061 = vmatpush1.bf16.msra.mxu0 %v1397
    %2062 = vmatprep.subr.bf16.mxu0 %v1402
    %2063 = vmatpush1.bf16.msra.mxu0 %v1401
    %2064 = vmatprep.subr.bf16.mxu0 %v1406
    %2065 = vmatpush1.bf16.msra.mxu0 %v1405
    %2066 = vmatprep.subr.bf16.mxu0 %v1410
    %2067 = vmatpush1.bf16.msra.mxu0 %v1409
    %2068 = vmatprep.subr.bf16.mxu0 %v1414
    %2069 = vmatpush1.bf16.msra.mxu0 %v1413
    %2070 = vmatprep.subr.bf16.mxu0 %v1418
    %2071 = vmatpush1.bf16.msra.mxu0 %v1417
    %2072 = vmatprep.subr.bf16.mxu0 %v1422
    %2073 = vmatpush1.bf16.msra.mxu0 %v1421
    %2074 = vmatprep.subr.bf16.mxu0 %v1426
    %2075 = vmatpush1.bf16.msra.mxu0 %v1425
    %2076 = vmatprep.subr.bf16.mxu0 0
    %2077 = vmatpush1.bf16.msra.mxu0 0
    %2078 = vmatprep.subr.bf16.mxu0 0
    %2079 = vmatpush1.bf16.msra.mxu0 0
    %2080 = vmatprep.subr.bf16.mxu0 0
    %2081 = vmatpush1.bf16.msra.mxu0 0
    %2082 = vmatprep.subr.bf16.mxu0 0
    %2083 = vmatpush1.bf16.msra.mxu0 0
    %2084 = vmatprep.subr.bf16.mxu0 0
    %2085 = vmatpush1.bf16.msra.mxu0 0
    %2086 = vmatprep.subr.bf16.mxu0 0
    %2087 = vmatpush1.bf16.msra.mxu0 0
    %2088 = vmatprep.subr.bf16.mxu0 0
    %2089 = vmatpush1.bf16.msra.mxu0 0
    %2090 = vmatprep.subr.bf16.mxu0 0
    %2091 = vmatpush1.bf16.msra.mxu0 0
    %2092 = vmatprep.mubr.bf16.mxu0 0
    %2093 = vmatmul.mubr.bf16.gmra.mrb[0].mxu0 %v2018
    %v2094 = vpop.f32.mrb[0].mxu0
    %v2095 = vadd.f32 0.0, %v2094
    %v2096 = vpop.f32.mrb[0].mxu0
    %v2097 = vadd.f32 0.0, %v2096
    %v2098 = vpop.f32.mrb[0].mxu0
    %v2099 = vpop.f32.mrb[0].mxu0
    %2100 = vdwg.mxu0
    %v2101 = vadd.f32 %v2014, %v2054
    %v2102 = vadd.f32 %v2015, %v2056
    %v2103 = vadd.f32 %v2016, %v2095
    %v2104 = vadd.f32 %v2017, %v2097
    %v2105 = vmul.f32 %v2101, 0.5
    %v2106 = vtanh.pop %v2105
    %v2107 = vmul.f32 %v2106, 0.5
    %v2108 = vadd.f32 %v2107, 0.5
    %v2109 = vmul.f32 %v2102, 0.5
    %v2110 = vtanh.pop %v2109
    %v2111 = vmul.f32 %v2110, 0.5
    %v2112 = vadd.f32 %v2111, 0.5
    %v2113 = vtanh.pop %v2103
    %v2114 = vmul.f32 %v2104, 0.5
    %v2115 = vtanh.pop %v2114
    %v2116 = vmul.f32 %v2115, 0.5
    %v2117 = vadd.f32 %v2116, 0.5
    %v2118 = vmul.f32 %v2112, %v2008
    %v2119 = vmul.f32 %v2108, %v2113
    %v2120 = vadd.f32 %v2118, %v2119
    %v2121 = vtanh.pop %v2120
    %v2122 = vmul.f32 %v2117, %v2121
    %s2123 = smul.u32 6, 4
    %s2124 = smul.addr %s2123, 8
    %s2125 = scalar_lea.vmem [#allocation2], %s2124
    %v2126 = vld [vmem:[%s2125] sm:$0xff]
    %v2127 = vld [vmem:[%s2125 + $0x8] sm:$0xff]
    %v2128 = vld [vmem:[%s2125 + $0x10] sm:$0xff]
    %v2129 = vld [vmem:[%s2125 + $0x18] sm:$0xff]
    %v2130 = vpack.c.bf16 %v2122, %v2122
    %2131 = vmatprep.subr.bf16.mxu0 %v1396
    %2132 = vmatpush1.bf16.msra.mxu0 %v1395
    %2133 = vmatprep.subr.bf16.mxu0 %v1400
    %2134 = vmatpush1.bf16.msra.mxu0 %v1399
    %2135 = vmatprep.subr.bf16.mxu0 %v1404
    %2136 = vmatpush1.bf16.msra.mxu0 %v1403
    %2137 = vmatprep.subr.bf16.mxu0 %v1408
    %2138 = vmatpush1.bf16.msra.mxu0 %v1407
    %2139 = vmatprep.subr.bf16.mxu0 %v1412
    %2140 = vmatpush1.bf16.msra.mxu0 %v1411
    %2141 = vmatprep.subr.bf16.mxu0 %v1416
    %2142 = vmatpush1.bf16.msra.mxu0 %v1415
    %2143 = vmatprep.subr.bf16.mxu0 %v1420
    %2144 = vmatpush1.bf16.msra.mxu0 %v1419
    %2145 = vmatprep.subr.bf16.mxu0 %v1424
    %2146 = vmatpush1.bf16.msra.mxu0 %v1423
    %2147 = vmatprep.subr.bf16.mxu0 0
    %2148 = vmatpush1.bf16.msra.mxu0 0
    %2149 = vmatprep.subr.bf16.mxu0 0
    %2150 = vmatpush1.bf16.msra.mxu0 0
    %2151 = vmatprep.subr.bf16.mxu0 0
    %2152 = vmatpush1.bf16.msra.mxu0 0
    %2153 = vmatprep.subr.bf16.mxu0 0
    %2154 = vmatpush1.bf16.msra.mxu0 0
    %2155 = vmatprep.subr.bf16.mxu0 0
    %2156 = vmatpush1.bf16.msra.mxu0 0
    %2157 = vmatprep.subr.bf16.mxu0 0
    %2158 = vmatpush1.bf16.msra.mxu0 0
    %2159 = vmatprep.subr.bf16.mxu0 0
    %2160 = vmatpush1.bf16.msra.mxu0 0
    %2161 = vmatprep.subr.bf16.mxu0 0
    %2162 = vmatpush1.bf16.msra.mxu0 0
    %2163 = vmatprep.mubr.bf16.mxu0 0
    %2164 = vmatmul.mubr.bf16.gmra.mrb[0].mxu0 %v2130
    %v2165 = vpop.f32.mrb[0].mxu0
    %v2166 = vadd.f32 0.0, %v2165
    %v2167 = vpop.f32.mrb[0].mxu0
    %v2168 = vadd.f32 0.0, %v2167
    %v2169 = vpop.f32.mrb[0].mxu0
    %v2170 = vpop.f32.mrb[0].mxu0
    %2171 = vdwg.mxu0
    %2172 = vmatprep.subr.bf16.mxu0 %v1398
    %2173 = vmatpush1.bf16.msra.mxu0 %v1397
    %2174 = vmatprep.subr.bf16.mxu0 %v1402
    %2175 = vmatpush1.bf16.msra.mxu0 %v1401
    %2176 = vmatprep.subr.bf16.mxu0 %v1406
    %2177 = vmatpush1.bf16.msra.mxu0 %v1405
    %2178 = vmatprep.subr.bf16.mxu0 %v1410
    %2179 = vmatpush1.bf16.msra.mxu0 %v1409
    %2180 = vmatprep.subr.bf16.mxu0 %v1414
    %2181 = vmatpush1.bf16.msra.mxu0 %v1413
    %2182 = vmatprep.subr.bf16.mxu0 %v1418
    %2183 = vmatpush1.bf16.msra.mxu0 %v1417
    %2184 = vmatprep.subr.bf16.mxu0 %v1422
    %2185 = vmatpush1.bf16.msra.mxu0 %v1421
    %2186 = vmatprep.subr.bf16.mxu0 %v1426
    %2187 = vmatpush1.bf16.msra.mxu0 %v1425
    %2188 = vmatprep.subr.bf16.mxu0 0
    %2189 = vmatpush1.bf16.msra.mxu0 0
    %2190 = vmatprep.subr.bf16.mxu0 0
    %2191 = vmatpush1.bf16.msra.mxu0 0
    %2192 = vmatprep.subr.bf16.mxu0 0
    %2193 = vmatpush1.bf16.msra.mxu0 0
    %2194 = vmatprep.subr.bf16.mxu0 0
    %2195 = vmatpush1.bf16.msra.mxu0 0
    %2196 = vmatprep.subr.bf16.mxu0 0
    %2197 = vmatpush1.bf16.msra.mxu0 0
    %2198 = vmatprep.subr.bf16.mxu0 0
    %2199 = vmatpush1.bf16.msra.mxu0 0
    %2200 = vmatprep.subr.bf16.mxu0 0
    %2201 = vmatpush1.bf16.msra.mxu0 0
    %2202 = vmatprep.subr.bf16.mxu0 0
    %2203 = vmatpush1.bf16.msra.mxu0 0
    %2204 = vmatprep.mubr.bf16.mxu0 0
    %2205 = vmatmul.mubr.bf16.gmra.mrb[0].mxu0 %v2130
    %v2206 = vpop.f32.mrb[0].mxu0
    %v2207 = vadd.f32 0.0, %v2206
    %v2208 = vpop.f32.mrb[0].mxu0
    %v2209 = vadd.f32 0.0, %v2208
    %v2210 = vpop.f32.mrb[0].mxu0
    %v2211 = vpop.f32.mrb[0].mxu0
    %2212 = vdwg.mxu0
    %v2213 = vadd.f32 %v2126, %v2166
    %v2214 = vadd.f32 %v2127, %v2168
    %v2215 = vadd.f32 %v2128, %v2207
    %v2216 = vadd.f32 %v2129, %v2209
    %v2217 = vmul.f32 %v2213, 0.5
    %v2218 = vtanh.pop %v2217
    %v2219 = vmul.f32 %v2218, 0.5
    %v2220 = vadd.f32 %v2219, 0.5
    %v2221 = vmul.f32 %v2214, 0.5
    %v2222 = vtanh.pop %v2221
    %v2223 = vmul.f32 %v2222, 0.5
    %v2224 = vadd.f32 %v2223, 0.5
    %v2225 = vtanh.pop %v2215
    %v2226 = vmul.f32 %v2216, 0.5
    %v2227 = vtanh.pop %v2226
    %v2228 = vmul.f32 %v2227, 0.5
    %v2229 = vadd.f32 %v2228, 0.5
    %v2230 = vmul.f32 %v2224, %v2120
    %v2231 = vmul.f32 %v2220, %v2225
    %v2232 = vadd.f32 %v2230, %v2231
    %v2233 = vtanh.pop %v2232
    %v2234 = vmul.f32 %v2229, %v2233
    %s2235 = smul.u32 7, 4
    %s2236 = smul.addr %s2235, 8
    %s2237 = scalar_lea.vmem [#allocation2], %s2236
    %v2238 = vld [vmem:[%s2237] sm:$0xff]
    %v2239 = vld [vmem:[%s2237 + $0x8] sm:$0xff]
    %v2240 = vld [vmem:[%s2237 + $0x10] sm:$0xff]
    %v2241 = vld [vmem:[%s2237 + $0x18] sm:$0xff]
    %v2242 = vpack.c.bf16 %v2234, %v2234
    %2243 = vmatprep.subr.bf16.mxu0 %v1396
    %2244 = vmatpush1.bf16.msra.mxu0 %v1395
    %2245 = vmatprep.subr.bf16.mxu0 %v1400
    %2246 = vmatpush1.bf16.msra.mxu0 %v1399
    %2247 = vmatprep.subr.bf16.mxu0 %v1404
    %2248 = vmatpush1.bf16.msra.mxu0 %v1403
    %2249 = vmatprep.subr.bf16.mxu0 %v1408
    %2250 = vmatpush1.bf16.msra.mxu0 %v1407
    %2251 = vmatprep.subr.bf16.mxu0 %v1412
    %2252 = vmatpush1.bf16.msra.mxu0 %v1411
    %2253 = vmatprep.subr.bf16.mxu0 %v1416
    %2254 = vmatpush1.bf16.msra.mxu0 %v1415
    %2255 = vmatprep.subr.bf16.mxu0 %v1420
    %2256 = vmatpush1.bf16.msra.mxu0 %v1419
    %2257 = vmatprep.subr.bf16.mxu0 %v1424
    %2258 = vmatpush1.bf16.msra.mxu0 %v1423
    %2259 = vmatprep.subr.bf16.mxu0 0
    %2260 = vmatpush1.bf16.msra.mxu0 0
    %2261 = vmatprep.subr.bf16.mxu0 0
    %2262 = vmatpush1.bf16.msra.mxu0 0
    %2263 = vmatprep.subr.bf16.mxu0 0
    %2264 = vmatpush1.bf16.msra.mxu0 0
    %2265 = vmatprep.subr.bf16.mxu0 0
    %2266 = vmatpush1.bf16.msra.mxu0 0
    %2267 = vmatprep.subr.bf16.mxu0 0
    %2268 = vmatpush1.bf16.msra.mxu0 0
    %2269 = vmatprep.subr.bf16.mxu0 0
    %2270 = vmatpush1.bf16.msra.mxu0 0
    %2271 = vmatprep.subr.bf16.mxu0 0
    %2272 = vmatpush1.bf16.msra.mxu0 0
    %2273 = vmatprep.subr.bf16.mxu0 0
    %2274 = vmatpush1.bf16.msra.mxu0 0
    %2275 = vmatprep.mubr.bf16.mxu0 0
    %2276 = vmatmul.mubr.bf16.gmra.mrb[0].mxu0 %v2242
    %v2277 = vpop.f32.mrb[0].mxu0
    %v2278 = vadd.f32 0.0, %v2277
    %v2279 = vpop.f32.mrb[0].mxu0
    %v2280 = vadd.f32 0.0, %v2279
    %v2281 = vpop.f32.mrb[0].mxu0
    %v2282 = vpop.f32.mrb[0].mxu0
    %2283 = vdwg.mxu0
    %2284 = vmatprep.subr.bf16.mxu0 %v1398
    %2285 = vmatpush1.bf16.msra.mxu0 %v1397
    %2286 = vmatprep.subr.bf16.mxu0 %v1402
    %2287 = vmatpush1.bf16.msra.mxu0 %v1401
    %2288 = vmatprep.subr.bf16.mxu0 %v1406
    %2289 = vmatpush1.bf16.msra.mxu0 %v1405
    %2290 = vmatprep.subr.bf16.mxu0 %v1410
    %2291 = vmatpush1.bf16.msra.mxu0 %v1409
    %2292 = vmatprep.subr.bf16.mxu0 %v1414
    %2293 = vmatpush1.bf16.msra.mxu0 %v1413
    %2294 = vmatprep.subr.bf16.mxu0 %v1418
    %2295 = vmatpush1.bf16.msra.mxu0 %v1417
    %2296 = vmatprep.subr.bf16.mxu0 %v1422
    %2297 = vmatpush1.bf16.msra.mxu0 %v1421
    %2298 = vmatprep.subr.bf16.mxu0 %v1426
    %2299 = vmatpush1.bf16.msra.mxu0 %v1425
    %2300 = vmatprep.subr.bf16.mxu0 0
    %2301 = vmatpush1.bf16.msra.mxu0 0
    %2302 = vmatprep.subr.bf16.mxu0 0
    %2303 = vmatpush1.bf16.msra.mxu0 0
    %2304 = vmatprep.subr.bf16.mxu0 0
    %2305 = vmatpush1.bf16.msra.mxu0 0
    %2306 = vmatprep.subr.bf16.mxu0 0
    %2307 = vmatpush1.bf16.msra.mxu0 0
    %2308 = vmatprep.subr.bf16.mxu0 0
    %2309 = vmatpush1.bf16.msra.mxu0 0
    %2310 = vmatprep.subr.bf16.mxu0 0
    %2311 = vmatpush1.bf16.msra.mxu0 0
    %2312 = vmatprep.subr.bf16.mxu0 0
    %2313 = vmatpush1.bf16.msra.mxu0 0
    %2314 = vmatprep.subr.bf16.mxu0 0
    %2315 = vmatpush1.bf16.msra.mxu0 0
    %2316 = vmatprep.mubr.bf16.mxu0 0
    %2317 = vmatmul.mubr.bf16.gmra.mrb[0].mxu0 %v2242
    %v2318 = vpop.f32.mrb[0].mxu0
    %v2319 = vadd.f32 0.0, %v2318
    %v2320 = vpop.f32.mrb[0].mxu0
    %v2321 = vadd.f32 0.0, %v2320
    %v2322 = vpop.f32.mrb[0].mxu0
    %v2323 = vpop.f32.mrb[0].mxu0
    %2324 = vdwg.mxu0
    %v2325 = vadd.f32 %v2238, %v2278
    %v2326 = vadd.f32 %v2239, %v2280
    %v2327 = vadd.f32 %v2240, %v2319
    %v2328 = vadd.f32 %v2241, %v2321
    %v2329 = vmul.f32 %v2325, 0.5
    %v2330 = vtanh.pop %v2329
    %v2331 = vmul.f32 %v2330, 0.5
    %v2332 = vadd.f32 %v2331, 0.5
    %v2333 = vmul.f32 %v2326, 0.5
    %v2334 = vtanh.pop %v2333
    %v2335 = vmul.f32 %v2334, 0.5
    %v2336 = vadd.f32 %v2335, 0.5
    %v2337 = vtanh.pop %v2327
    %v2338 = vmul.f32 %v2328, 0.5
    %v2339 = vtanh.pop %v2338
    %v2340 = vmul.f32 %v2339, 0.5
    %v2341 = vadd.f32 %v2340, 0.5
    %v2342 = vmul.f32 %v2336, %v2232
    %v2343 = vmul.f32 %v2332, %v2337
    %v2344 = vadd.f32 %v2342, %v2343
    %v2345 = vtanh.pop %v2344
    %v2346 = vmul.f32 %v2341, %v2345
    %v2347 = vld [vmem:[%s6] sm:$0xff]
    %v2348 = vld [vmem:[%s6 + $0x8] sm:$0xff]
    %v2349 = vld [vmem:[%s6 + $0x10] sm:$0xff]
    %v2350 = vld [vmem:[%s6 + $0x18] sm:$0xff]
    %v2351 = vld [vmem:[%s6 + $0x20] sm:$0xff]
    %v2352 = vld [vmem:[%s6 + $0x28] sm:$0xff]
    %v2353 = vld [vmem:[%s6 + $0x30] sm:$0xff]
    %v2354 = vld [vmem:[%s6 + $0x38] sm:$0xff]
    %v2355 = vld [vmem:[%s6 + $0x40] sm:$0xff]
    %v2356 = vld [vmem:[%s6 + $0x48] sm:$0xff]
    %v2357 = vld [vmem:[%s6 + $0x50] sm:$0xff]
    %v2358 = vld [vmem:[%s6 + $0x58] sm:$0xff]
    %v2359 = vld [vmem:[%s6 + $0x60] sm:$0xff]
    %v2360 = vld [vmem:[%s6 + $0x68] sm:$0xff]
    %v2361 = vld [vmem:[%s6 + $0x70] sm:$0xff]
    %v2362 = vld [vmem:[%s6 + $0x78] sm:$0xff]
    %v2363 = vld [vmem:[#allocation3] sm:$0x1]
    %v2365 = vlaneseq
    %v2366 = vshrl.u32 %v2365, 7
    %v2367 = vsub.s32 0, %v2366
    %v2368 = vrot.slane %v2363, %v2367
    %2370 = vmatprep.subr.mxu0 0.0
    %2371 = vmatpush1.msra.mxu0 %v2347
    %2372 = vmatprep.subr.mxu0 0.0
    %2373 = vmatpush1.msra.mxu0 %v2348
    %2374 = vmatprep.subr.mxu0 0.0
    %2375 = vmatpush1.msra.mxu0 %v2349
    %2376 = vmatprep.subr.mxu0 0.0
    %2377 = vmatpush1.msra.mxu0 %v2350
    %2378 = vmatprep.subr.mxu0 0.0
    %2379 = vmatpush1.msra.mxu0 %v2351
    %2380 = vmatprep.subr.mxu0 0.0
    %2381 = vmatpush1.msra.mxu0 %v2352
    %2382 = vmatprep.subr.mxu0 0.0
    %2383 = vmatpush1.msra.mxu0 %v2353
    %2384 = vmatprep.subr.mxu0 0.0
    %2385 = vmatpush1.msra.mxu0 %v2354
    %2386 = vmatprep.subr.mxu0 0.0
    %2387 = vmatpush1.msra.mxu0 %v2355
    %2388 = vmatprep.subr.mxu0 0.0
    %2389 = vmatpush1.msra.mxu0 %v2356
    %2390 = vmatprep.subr.mxu0 0.0
    %2391 = vmatpush1.msra.mxu0 %v2357
    %2392 = vmatprep.subr.mxu0 0.0
    %2393 = vmatpush1.msra.mxu0 %v2358
    %2394 = vmatprep.subr.mxu0 0.0
    %2395 = vmatpush1.msra.mxu0 %v2359
    %2396 = vmatprep.subr.mxu0 0.0
    %2397 = vmatpush1.msra.mxu0 %v2360
    %2398 = vmatprep.subr.mxu0 0.0
    %2399 = vmatpush1.msra.mxu0 %v2361
    %2400 = vmatprep.subr.mxu0 0.0
    %2401 = vmatpush1.msra.mxu0 %v2362
    %2402 = vmatprep.subr.mxu0 0.0
    %2403 = vmatpush1.msra.mxu0 0.0
    %2404 = vmatprep.subr.mxu0 0.0
    %2405 = vmatpush1.msra.mxu0 0.0
    %2406 = vmatprep.subr.mxu0 0.0
    %2407 = vmatpush1.msra.mxu0 0.0
    %2408 = vmatprep.subr.mxu0 0.0
    %2409 = vmatpush1.msra.mxu0 0.0
    %2410 = vmatprep.subr.mxu0 0.0
    %2411 = vmatpush1.msra.mxu0 0.0
    %2412 = vmatprep.subr.mxu0 0.0
    %2413 = vmatpush1.msra.mxu0 0.0
    %2414 = vmatprep.subr.mxu0 0.0
    %2415 = vmatpush1.msra.mxu0 0.0
    %2416 = vmatprep.subr.mxu0 0.0
    %2417 = vmatpush1.msra.mxu0 0.0
    %2418 = vmatprep.subr.mxu0 0.0
    %2419 = vmatpush1.msra.mxu0 0.0
    %2420 = vmatprep.subr.mxu0 0.0
    %2421 = vmatpush1.msra.mxu0 0.0
    %2422 = vmatprep.subr.mxu0 0.0
    %2423 = vmatpush1.msra.mxu0 0.0
    %2424 = vmatprep.subr.mxu0 0.0
    %2425 = vmatpush1.msra.mxu0 0.0
    %2426 = vmatprep.subr.mxu0 0.0
    %2427 = vmatpush1.msra.mxu0 0.0
    %2428 = vmatprep.subr.mxu0 0.0
    %2429 = vmatpush1.msra.mxu0 0.0
    %2430 = vmatprep.subr.mxu0 0.0
    %2431 = vmatpush1.msra.mxu0 0.0
    %2432 = vmatprep.subr.mxu0 0.0
    %2433 = vmatpush1.msra.mxu0 0.0
    %2434 = vmatprep.mubr.f32.mxu0 0.0
    %2435 = vmatmul.mubr.f32.gmra.mrb[0].mxu0 %v2346
    %v2436 = vpop.f32.mrb[0].mxu0
    %v2437 = vadd.f32 %v2368, %v2436
    %v2438 = vpop.f32.mrb[0].mxu0
    %2439 = vdwg.mxu0
    %v2440 = vmul.f32 %v2437, 0.5
    %v2441 = vtanh.pop %v2440
    %v2442 = vmul.f32 %v2441, 0.5
    %v2443 = vadd.f32 %v2442, 0.5
    %vm2444 = vcmask 7168
    %2445 = vst.msk [vmem:[%s8] sm:$0xff] %vm2444, %v2443
    // Predicated region
    $region42: #{custom_mel11_forward.1} parent=1 // pred_check
      _
    $region43: #{custom_mel11_forward.1} parent=1 // pred_check_branch
      %2447 = sbr.rel (0) target = $region45
    $region44: #{custom_mel11_forward.1} parent=1 // pred_region
      _
    $region45: #{custom_mel11_forward.1} parent=1 // pred_fallthru
      _
    // Predicated region
    $region46: #{custom_mel11_forward.1} parent=1 // pred_check
      _
    $region47: #{custom_mel11_forward.1} parent=1 // pred_check_branch
      %2449 = sbr.rel (0) target = $region49
    $region48: #{custom_mel11_forward.1} parent=1 // pred_region
      _
    $region49: #{custom_mel11_forward.1} parent=1 // pred_fallthru
      _
    %2450 = vsyncpa [#allocation5], 1
    %2451 = vsyncpa [#allocation7], 1

</llo_original>
